<compile_context>
chip_gen: v6e
topology: v6e:2x2x1
jax: 0.10.0
libtpu: 0.0.40
codegen_flags: <defaults>
</compile_context>

<pallas_src>
import functools

import jax
import jax.numpy as jnp
from jax import lax
from jax.experimental import pallas as pl
from jax.experimental.pallas import tpu as pltpu

EMB = 128            # embedding_size == input_size == hidden_size
HID = 128
H4 = 4 * HID
TAGS = 7             # tags_num
TP = 8               # padded tag dimension (TPU friendly)
BTILE = 8            # batch tile (= f32 sublane count); batch is padded to this
NEG = -1e9           # safe under max-shifted logsumexp even when accumulated


# ----------------------------------------------------------------------------
# Fused kernel: BiLSTM + tag linear + CRF loss pieces + Viterbi forward pass
# ----------------------------------------------------------------------------
def _fused_kernel(S, B,
                  emb_ref,        # (S, B, EMB)  f32
                  yoh_ref,        # (S, B, TP)   f32  one-hot gold tags
                  lastoh_ref,     # (B, TP)      f32  one-hot last gold tag
                  mask_ref,       # (S, B, 1)    f32
                  wih_ref,        # (EMB, 8*HID) bf16 [W_ih_fwd | W_ih_bwd]
                  whh_f_ref,      # (HID, 4*HID) bf16
                  whh_b_ref,      # (HID, 4*HID) bf16
                  b_ref,          # (1, 8*HID)   f32  [b_fwd | b_bwd] (ih+hh)
                  wlin_f_ref,     # (HID, TP)    bf16
                  wlin_b_ref,     # (HID, TP)    bf16
                  blin_ref,       # (1, TP)      f32
                  trans_ref,      # (TP, TP)     f32
                  start_ref,      # (1, TP)      f32
                  end_ref,        # (1, TP)      f32
                  logits_ref,     # out (S, B, TP) f32  emissions
                  bp_ref,         # out (S, B, TP) int32 Viterbi backpointers
                  fscore_ref,     # out (B, TP)    f32  final Viterbi scores
                  nll_ref,        # out (B, 1)     f32  per-sequence CRF NLL
                  xzf_ref,        # scratch (S, B, 4*HID) f32
                  xzb_ref,        # scratch (S, B, 4*HID) f32
                  hf_ref,         # scratch (S, B, HID)   f32
                  hb_ref):        # scratch (S, B, HID)   f32
    # ---- 1) hoisted input projection: one big MXU matmul ----------------
    x_flat = emb_ref[...].reshape(S * B, EMB).astype(jnp.bfloat16)
    z = jnp.dot(x_flat, wih_ref[...],
                preferred_element_type=jnp.float32) + b_ref[...]      # (S*B, 8H)
    xzf_ref[...] = z[:, :H4].reshape(S, B, H4)
    xzb_ref[...] = z[:, H4:].reshape(S, B, H4)

    whh_f = whh_f_ref[...]
    whh_b = whh_b_ref[...]

    def lstm_cell(zc, c):                     # PyTorch gate order i, f, g, o
        i = jax.nn.sigmoid(zc[:, 0:HID])
        f = jax.nn.sigmoid(zc[:, HID:2 * HID])
        g = jnp.tanh(zc[:, 2 * HID:3 * HID])
        o = jax.nn.sigmoid(zc[:, 3 * HID:4 * HID])
        c_new = f * c + i * g
        h_new = o * jnp.tanh(c_new)
        return h_new, c_new

    # ---- 2) fused fwd/bwd recurrence: two h @ W_hh matmuls per step -----
    def step(s, carry):
        hf, cf, hb, cb = carry
        tb = S - 1 - s
        zf = xzf_ref[s] + jnp.dot(hf.astype(jnp.bfloat16), whh_f,
                                  preferred_element_type=jnp.float32)
        zb = xzb_ref[tb] + jnp.dot(hb.astype(jnp.bfloat16), whh_b,
                                   preferred_element_type=jnp.float32)
        hf_new, cf_new = lstm_cell(zf, cf)
        hb_new, cb_new = lstm_cell(zb, cb)
        hf_ref[s] = hf_new
        hb_ref[tb] = hb_new
        return hf_new, cf_new, hb_new, cb_new

    zeros = jnp.zeros((B, HID), jnp.float32)
    lax.fori_loop(0, S, step, (zeros, zeros, zeros, zeros))

    # ---- 3) tag projection: one matmul over the whole hidden slabs ------
    hf_all = hf_ref[...].reshape(S * B, HID).astype(jnp.bfloat16)
    hb_all = hb_ref[...].reshape(S * B, HID).astype(jnp.bfloat16)
    logits = (jnp.dot(hf_all, wlin_f_ref[...], preferred_element_type=jnp.float32)
              + jnp.dot(hb_all, wlin_b_ref[...], preferred_element_type=jnp.float32)
              + blin_ref[...])                                        # (S*B, TP)
    logits_ref[...] = logits.reshape(S, B, TP)

    # ---- 4) CRF forward (log Z) + gold score + Viterbi forward, one loop -
    trans = trans_ref[...]
    start = start_ref[...]
    end = end_ref[...]

    def lse(x, axis):
        m = jnp.max(x, axis=axis, keepdims=True)
        return m + jnp.log(jnp.sum(jnp.exp(x - m), axis=axis, keepdims=True))

    iota_prev = lax.broadcasted_iota(jnp.int32, (B, TP, TP), 1)
    iota_cur = lax.broadcasted_iota(jnp.int32, (B, TP), 1)

    e0 = logits_ref[0]                                   # (B, TP)
    alpha0 = start + e0                                  # forward / Viterbi init
    gold0 = jnp.sum(alpha0 * yoh_ref[0], axis=1, keepdims=True)   # (B, 1)
    bp_ref[0] = iota_cur

    def body(t, carry):
        alpha, gold, vsc = carry
        e_t = logits_ref[t]                              # (B, TP)
        m = mask_ref[t]                                  # (B, 1)
        y_t = yoh_ref[t]
        y_p = yoh_ref[t - 1]

        # forward algorithm (log partition)
        sc = alpha[:, :, None] + trans[None, :, :] + e_t[:, None, :]
        new_alpha = lse(sc, axis=1)[:, 0, :]
        alpha = jnp.where(m > 0, new_alpha, alpha)

        # gold path score — VPU broadcast-multiply-sum, no MXU round trip
        tr_row = jnp.sum(y_p[:, :, None] * trans[None, :, :], axis=1)  # (B, TP)
        tr = jnp.sum(tr_row * y_t, axis=1, keepdims=True)              # (B, 1)
        em = jnp.sum(e_t * y_t, axis=1, keepdims=True)
        gold = gold + m * (tr + em)

        # Viterbi forward (max + backpointers)
        nm = vsc[:, :, None] + trans[None, :, :] + e_t[:, None, :]
        best = jnp.max(nm, axis=1)                                     # (B, TP)
        is_max = nm >= best[:, None, :]
        ids = jnp.min(jnp.where(is_max, iota_prev, TP), axis=1).astype(jnp.int32)
        ids = jnp.where(m > 0, ids, iota_cur)            # freeze padded steps
        bp_ref[t] = ids
        vsc = jnp.where(m > 0, best, vsc)

        return alpha, gold, vsc

    alpha, gold, vsc = lax.fori_loop(1, S, body, (alpha0, gold0, alpha0))

    log_z = lse(alpha + end, axis=1)                                   # (B, 1)
    gold = gold + jnp.sum(end * lastoh_ref[...], axis=1, keepdims=True)
    nll_ref[...] = log_z - gold
    fscore_ref[...] = vsc + end


def lstm_crf_fused(emb_sbE, yoh_sbt, last_oh, mask_sb1, params):
    S, BP, _ = emb_sbE.shape
    assert BP % BTILE == 0
    nb = BP // BTILE
    kernel = functools.partial(_fused_kernel, S, BTILE)

    def full(shape):  # weights: same block on every grid step (stay resident)
        return pl.BlockSpec(shape, lambda b: tuple(0 for _ in shape))

    grid_spec = pltpu.PrefetchScalarGridSpec(
        num_scalar_prefetch=0,
        grid=(nb,),
        in_specs=[
            pl.BlockSpec((S, BTILE, EMB), lambda b: (0, b, 0)),   # emb
            pl.BlockSpec((S, BTILE, TP), lambda b: (0, b, 0)),    # yoh
            pl.BlockSpec((BTILE, TP), lambda b: (b, 0)),          # last_oh
            pl.BlockSpec((S, BTILE, 1), lambda b: (0, b, 0)),     # mask
            full((EMB, 8 * HID)),                                 # wih (fwd|bwd)
            full((HID, H4)),                                      # whh_f
            full((HID, H4)),                                      # whh_b
            full((1, 8 * HID)),                                   # bias
            full((HID, TP)),                                      # wlin_f
            full((HID, TP)),                                      # wlin_b
            full((1, TP)),                                        # blin
            full((TP, TP)),                                       # trans
            full((1, TP)),                                        # start
            full((1, TP)),                                        # end
        ],
        out_specs=[
            pl.BlockSpec((S, BTILE, TP), lambda b: (0, b, 0)),    # logits
            pl.BlockSpec((S, BTILE, TP), lambda b: (0, b, 0)),    # backpointers
            pl.BlockSpec((BTILE, TP), lambda b: (b, 0)),          # final scores
            pl.BlockSpec((BTILE, 1), lambda b: (b, 0)),           # per-seq NLL
        ],
        scratch_shapes=[
            pltpu.VMEM((S, BTILE, H4), jnp.float32),
            pltpu.VMEM((S, BTILE, H4), jnp.float32),
            pltpu.VMEM((S, BTILE, HID), jnp.float32),
            pltpu.VMEM((S, BTILE, HID), jnp.float32),
        ],
    )
    return pl.pallas_call(
        kernel,
        out_shape=(
            jax.ShapeDtypeStruct((S, BP, TP), jnp.float32),
            jax.ShapeDtypeStruct((S, BP, TP), jnp.int32),
            jax.ShapeDtypeStruct((BP, TP), jnp.float32),
            jax.ShapeDtypeStruct((BP, 1), jnp.float32),
        ),
        grid_spec=grid_spec,
        compiler_params=pltpu.CompilerParams(
            dimension_semantics=("parallel",),
            vmem_limit_bytes=48 * 1024 * 1024),
    )(emb_sbE, yoh_sbt, last_oh, mask_sb1,
      params["wih"], params["whh_f"], params["whh_b"], params["b"],
      params["wlin_f"], params["wlin_b"], params["blin"],
      params["trans"], params["start"], params["end"])


# ----------------------------------------------------------------------------
# Full forward (mirrors LSTM_CRF.forward)
# ----------------------------------------------------------------------------
def lstm_crf_forward(params, x, y, mask):
    B, S = x.shape
    BP = ((B + BTILE - 1) // BTILE) * BTILE
    pad = BP - B

    maskf = mask.astype(jnp.float32)

    # embedding lookup (glue; padding_idx=1 row is zeroed in the table)
    emb = params["embedding"][x]                                   # (B, S, E)

    # Pad the batch to a multiple of BTILE so the kernel's reshapes are pure
    # retiles and every vreg sublane is used; padded rows are sliced off below.
    emb_p = jnp.pad(emb, ((0, pad), (0, 0), (0, 0)))
    y_p = jnp.pad(y, ((0, pad), (0, 0)))
    maskf_p = jnp.pad(maskf, ((0, pad), (0, 0)))

    emb_sbE = jnp.transpose(emb_p, (1, 0, 2))                      # (S, BP, E)
    yoh_sbt = jnp.transpose(jax.nn.one_hot(y_p, TP, dtype=jnp.float32), (1, 0, 2))
    # Guard length-0 rows (incl. batch padding): clamp last index to 0.
    last_idx = jnp.maximum(jnp.sum(maskf_p, axis=1).astype(jnp.int32) - 1, 0)
    last_tag = jnp.take_along_axis(y_p, last_idx[:, None], axis=1)[:, 0]
    last_oh = jax.nn.one_hot(last_tag, TP, dtype=jnp.float32)      # (BP, TP)
    mask_sb1 = jnp.transpose(maskf_p, (1, 0))[:, :, None]          # (S, BP, 1)

    logits_sbt, bp, fscore, nll = lstm_crf_fused(
        emb_sbE, yoh_sbt, last_oh, mask_sb1, params)

    logits = jnp.transpose(logits_sbt, (1, 0, 2))[:B, :, :TAGS]    # (B, S, 7)
    crf_nll = jnp.mean(nll[:B, 0])                                 # mean over real batch

    # Viterbi backtrack (data-dependent gather -> JAX glue outside the kernel)
    best_last = jnp.argmax(fscore, axis=-1).astype(jnp.int32)      # (BP,)

    def backtrack(cur, bp_t):
        prev = jnp.take_along_axis(bp_t, cur[:, None], axis=1)[:, 0]
        return prev, cur

    first, tags_rev = lax.scan(backtrack, best_last, bp[1:][::-1])
    tags_sb = jnp.concatenate([first[None, :], tags_rev[::-1]], axis=0)  # (S, BP)
    tags_bs = tags_sb.T[:B]
    # TODO(synk): PyTorch viterbi_decode returns variable-length python lists;
    # here padded positions are reported as tag 0 in a dense (B, S) tensor.
    targets = jnp.where(mask > 0, tags_bs, 0).astype(jnp.int32)
    return targets, crf_nll, logits


# ----------------------------------------------------------------------------
# Deterministic parameter construction (shapes from LSTM_CRF.__init__)
# ----------------------------------------------------------------------------
def init_params(vocab_size, key):
    ks = jax.random.split(key, 12)

    def nrm(k, shape, std=0.1):
        return std * jax.random.normal(k, shape, dtype=jnp.float32)

    emb = nrm(ks[0], (vocab_size + 1, EMB))
    emb = emb.at[1].set(0.0)                                       # padding_idx = 1

    # PyTorch LSTM weights are (4H, in); stored transposed so kernels do x @ W.
    wih_f = nrm(ks[1], (EMB, H4))
    whh_f = nrm(ks[2], (HID, H4))
    b_f = nrm(ks[3], (1, H4))                                      # b_ih + b_hh folded
    wih_b = nrm(ks[4], (EMB, H4))
    whh_b = nrm(ks[5], (HID, H4))
    b_b = nrm(ks[6], (1, H4))

    wlin = jnp.zeros((2 * HID, TP), jnp.float32).at[:, :TAGS].set(
        nrm(ks[7], (2 * HID, TAGS)))
    blin = jnp.zeros((1, TP), jnp.float32).at[:, :TAGS].set(
        nrm(ks[8], (1, TAGS)))

    # CRF params: padded tag blocked with NEG; safe under max-shifted lse.
    trans = jnp.full((TP, TP), NEG, jnp.float32).at[:TAGS, :TAGS].set(
        nrm(ks[9], (TAGS, TAGS)))
    start = jnp.full((1, TP), NEG, jnp.float32).at[:, :TAGS].set(
        nrm(ks[10], (1, TAGS)))
    end = jnp.full((1, TP), NEG, jnp.float32).at[:, :TAGS].set(
        nrm(ks[11], (1, TAGS)))

    return dict(
        embedding=emb,
        wih=jnp.concatenate([wih_f, wih_b], axis=1).astype(jnp.bfloat16),
        b=jnp.concatenate([b_f, b_b], axis=1),
        whh_f=whh_f.astype(jnp.bfloat16), whh_b=whh_b.astype(jnp.bfloat16),
        wlin_f=wlin[:HID].astype(jnp.bfloat16),
        wlin_b=wlin[HID:].astype(jnp.bfloat16),
        blin=blin, trans=trans, start=start, end=end)


if __name__ == "__main__":
    key = jax.random.PRNGKey(0)
    kp, kx, ky = jax.random.split(key, 3)

    vocab = 50          # synthetic len(vocab2id)
    B, S = 2, 8

    params = init_params(vocab, kp)

    x = jax.random.randint(kx, (B, S), 2, vocab + 1, dtype=jnp.int32)
    y = jax.random.randint(ky, (B, S), 0, TAGS, dtype=jnp.int32)
    lengths = jnp.array([S, 5], dtype=jnp.int32)
    mask = (jnp.arange(S)[None, :] < lengths[:, None]).astype(jnp.int32)
    x = jnp.where(mask > 0, x, 1)       # padded tokens -> padding_idx
    y = jnp.where(mask > 0, y, 0)

    fwd = jax.jit(lstm_crf_forward)
    targets, loss, logits = fwd(params, x, y, mask)
    jax.block_until_ready((targets, loss, logits))
    assert targets.shape == (B, S) and logits.shape == (B, S, TAGS)
    assert bool(jnp.isfinite(loss))
    print("KERNEL_OK")
</pallas_src>

<mosaic_0001>
module attributes {stable_mosaic.version = 11 : i64} {
  func.func @_fused_kernel(%arg0: i32, %arg1: memref<8x8x128xf32, #tpu.memory_space<vmem>>, %arg2: memref<8x8x8xf32, #tpu.memory_space<vmem>>, %arg3: memref<8x8xf32, #tpu.memory_space<vmem>>, %arg4: memref<8x8x1xf32, #tpu.memory_space<vmem>>, %arg5: memref<128x1024xbf16, #tpu.memory_space<vmem>>, %arg6: memref<128x512xbf16, #tpu.memory_space<vmem>>, %arg7: memref<128x512xbf16, #tpu.memory_space<vmem>>, %arg8: memref<1x1024xf32, #tpu.memory_space<vmem>>, %arg9: memref<128x8xbf16, #tpu.memory_space<vmem>>, %arg10: memref<128x8xbf16, #tpu.memory_space<vmem>>, %arg11: memref<1x8xf32, #tpu.memory_space<vmem>>, %arg12: memref<8x8xf32, #tpu.memory_space<vmem>>, %arg13: memref<1x8xf32, #tpu.memory_space<vmem>>, %arg14: memref<1x8xf32, #tpu.memory_space<vmem>>, %arg15: memref<8x8x8xf32, #tpu.memory_space<vmem>>, %arg16: memref<8x8x8xi32, #tpu.memory_space<vmem>>, %arg17: memref<8x8xf32, #tpu.memory_space<vmem>>, %arg18: memref<8x1xf32, #tpu.memory_space<vmem>>, %arg19: memref<8x8x512xf32, #tpu.memory_space<vmem>>, %arg20: memref<8x8x512xf32, #tpu.memory_space<vmem>>, %arg21: memref<8x8x128xf32, #tpu.memory_space<vmem>>, %arg22: memref<8x8x128xf32, #tpu.memory_space<vmem>>) attributes {dimension_semantics = [#tpu.dimension_semantics<parallel>], iteration_bounds = array<i64: 1>, scalar_prefetch = 0 : i64, scratch_operands = 4 : i64, tpu.core_type = #tpu.core_type<tc>, window_params = [{transform_indices = @transform_0, window_bounds = array<i64: 8, 8, 128>}, {transform_indices = @transform_1, window_bounds = array<i64: 8, 8, 8>}, {transform_indices = @transform_2, window_bounds = array<i64: 8, 8>}, {transform_indices = @transform_3, window_bounds = array<i64: 8, 8, 1>}, {pipeline_mode = #tpu.pipeline_mode<synchronous>, transform_indices = @transform_4, window_bounds = array<i64: 128, 1024>}, {pipeline_mode = #tpu.pipeline_mode<synchronous>, transform_indices = @transform_5, window_bounds = array<i64: 128, 512>}, {pipeline_mode = #tpu.pipeline_mode<synchronous>, transform_indices = @transform_6, window_bounds = array<i64: 128, 512>}, {pipeline_mode = #tpu.pipeline_mode<synchronous>, transform_indices = @transform_7, window_bounds = array<i64: 1, 1024>}, {pipeline_mode = #tpu.pipeline_mode<synchronous>, transform_indices = @transform_8, window_bounds = array<i64: 128, 8>}, {pipeline_mode = #tpu.pipeline_mode<synchronous>, transform_indices = @transform_9, window_bounds = array<i64: 128, 8>}, {pipeline_mode = #tpu.pipeline_mode<synchronous>, transform_indices = @transform_10, window_bounds = array<i64: 1, 8>}, {pipeline_mode = #tpu.pipeline_mode<synchronous>, transform_indices = @transform_11, window_bounds = array<i64: 8, 8>}, {pipeline_mode = #tpu.pipeline_mode<synchronous>, transform_indices = @transform_12, window_bounds = array<i64: 1, 8>}, {pipeline_mode = #tpu.pipeline_mode<synchronous>, transform_indices = @transform_13, window_bounds = array<i64: 1, 8>}, {transform_indices = @transform_14, window_bounds = array<i64: 8, 8, 8>}, {transform_indices = @transform_15, window_bounds = array<i64: 8, 8, 8>}, {transform_indices = @transform_16, window_bounds = array<i64: 8, 8>}, {transform_indices = @transform_17, window_bounds = array<i64: 8, 1>}]} {
    %c0 = arith.constant 0 : index
    %c0_0 = arith.constant 0 : index
    %c0_1 = arith.constant 0 : index
    %0 = vector.load %arg1[%c0, %c0_0, %c0_1] : memref<8x8x128xf32, #tpu.memory_space<vmem>>, vector<8x8x128xf32>
    %1 = vector.shape_cast %0 : vector<8x8x128xf32> to vector<64x128xf32>
    %2 = arith.truncf %1 : vector<64x128xf32> to vector<64x128xbf16>
    %c0_2 = arith.constant 0 : index
    %c0_3 = arith.constant 0 : index
    %3 = vector.load %arg5[%c0_2, %c0_3] : memref<128x1024xbf16, #tpu.memory_space<vmem>>, vector<128x1024xbf16>
    %cst = arith.constant dense<0.000000e+00> : vector<64x1024xf32>
    %4 = tpu.matmul %2, %3, %cst {dimension_numbers = #tpu.dot_dimension_numbers<[1], [0], [0], [1], [0, 0, 1, 1], [], []>} : vector<64x128xbf16>, vector<128x1024xbf16>, vector<64x1024xf32> -> vector<64x1024xf32>
    %c0_4 = arith.constant 0 : index
    %c0_5 = arith.constant 0 : index
    %5 = vector.load %arg8[%c0_4, %c0_5] : memref<1x1024xf32, #tpu.memory_space<vmem>>, vector<1x1024xf32>
    %6 = vector.broadcast %5 : vector<1x1024xf32> to vector<64x1024xf32>
    %7 = arith.addf %4, %6 : vector<64x1024xf32>
    %8 = vector.extract_strided_slice %7 {offsets = [0, 0], sizes = [64, 512], strides = [1, 1]} : vector<64x1024xf32> to vector<64x512xf32>
    %9 = vector.shape_cast %8 : vector<64x512xf32> to vector<8x8x512xf32>
    %c0_6 = arith.constant 0 : index
    %c0_7 = arith.constant 0 : index
    %c0_8 = arith.constant 0 : index
    %10 = vector.load %arg19[%c0_6, %c0_7, %c0_8] : memref<8x8x512xf32, #tpu.memory_space<vmem>>, vector<8x8x512xf32>
    tpu.vector_store %arg19[%c0_6, %c0_7, %c0_8], %9 {strides = array<i32>} : memref<8x8x512xf32, #tpu.memory_space<vmem>>, vector<8x8x512xf32>,
    %11 = vector.extract_strided_slice %7 {offsets = [0, 512], sizes = [64, 512], strides = [1, 1]} : vector<64x1024xf32> to vector<64x512xf32>
    %12 = vector.shape_cast %11 : vector<64x512xf32> to vector<8x8x512xf32>
    %c0_9 = arith.constant 0 : index
    %c0_10 = arith.constant 0 : index
    %c0_11 = arith.constant 0 : index
    %13 = vector.load %arg20[%c0_9, %c0_10, %c0_11] : memref<8x8x512xf32, #tpu.memory_space<vmem>>, vector<8x8x512xf32>
    tpu.vector_store %arg20[%c0_9, %c0_10, %c0_11], %12 {strides = array<i32>} : memref<8x8x512xf32, #tpu.memory_space<vmem>>, vector<8x8x512xf32>,
    %c0_12 = arith.constant 0 : index
    %c0_13 = arith.constant 0 : index
    %14 = vector.load %arg6[%c0_12, %c0_13] : memref<128x512xbf16, #tpu.memory_space<vmem>>, vector<128x512xbf16>
    %c0_14 = arith.constant 0 : index
    %c0_15 = arith.constant 0 : index
    %15 = vector.load %arg7[%c0_14, %c0_15] : memref<128x512xbf16, #tpu.memory_space<vmem>>, vector<128x512xbf16>
    %cst_16 = arith.constant 0.000000e+00 : f32
    %16 = vector.broadcast %cst_16 : f32 to vector<8x128xf32>
    %c0_i32 = arith.constant 0 : i32
    %c8_i32 = arith.constant 8 : i32
    %17 = arith.addi %c0_i32, %c8_i32 : i32
    %c1_i32 = arith.constant 1 : i32
    %18:4 = scf.for %arg23 = %c0_i32 to %17 step %c1_i32 iter_args(%arg24 = %16, %arg25 = %16, %arg26 = %16, %arg27 = %16) -> (vector<8x128xf32>, vector<8x128xf32>, vector<8x128xf32>, vector<8x128xf32>)  : i32 {
      %c7_i32_63 = arith.constant 7 : i32
      %76 = arith.subi %c7_i32_63, %arg23 : i32
      %77 = arith.index_cast %arg23 : i32 to index
      %c0_64 = arith.constant 0 : index
      %c0_65 = arith.constant 0 : index
      %78 = vector.load %arg19[%77, %c0_64, %c0_65] : memref<8x8x512xf32, #tpu.memory_space<vmem>>, vector<1x8x512xf32>
      %79 = vector.shape_cast %78 : vector<1x8x512xf32> to vector<8x512xf32>
      %80 = arith.truncf %arg24 : vector<8x128xf32> to vector<8x128xbf16>
      %cst_66 = arith.constant dense<0.000000e+00> : vector<8x512xf32>
      %81 = tpu.matmul %80, %14, %cst_66 {dimension_numbers = #tpu.dot_dimension_numbers<[1], [0], [0], [1], [0, 0, 1, 1], [], []>} : vector<8x128xbf16>, vector<128x512xbf16>, vector<8x512xf32> -> vector<8x512xf32>
      %82 = arith.addf %79, %81 : vector<8x512xf32>
      %83 = arith.index_cast %76 : i32 to index
      %c0_67 = arith.constant 0 : index
      %c0_68 = arith.constant 0 : index
      %84 = vector.load %arg20[%83, %c0_67, %c0_68] : memref<8x8x512xf32, #tpu.memory_space<vmem>>, vector<1x8x512xf32>
      %85 = vector.shape_cast %84 : vector<1x8x512xf32> to vector<8x512xf32>
      %86 = arith.truncf %arg26 : vector<8x128xf32> to vector<8x128xbf16>
      %cst_69 = arith.constant dense<0.000000e+00> : vector<8x512xf32>
      %87 = tpu.matmul %86, %15, %cst_69 {dimension_numbers = #tpu.dot_dimension_numbers<[1], [0], [0], [1], [0, 0, 1, 1], [], []>} : vector<8x128xbf16>, vector<128x512xbf16>, vector<8x512xf32> -> vector<8x512xf32>
      %88 = arith.addf %85, %87 : vector<8x512xf32>
      %89 = vector.extract_strided_slice %82 {offsets = [0, 0], sizes = [8, 128], strides = [1, 1]} : vector<8x512xf32> to vector<8x128xf32>
      %90 = arith.negf %89 : vector<8x128xf32>
      %91 = math.exp %90 : vector<8x128xf32>
      %cst_70 = arith.constant 1.000000e+00 : f32
      %92 = vector.broadcast %cst_70 : f32 to vector<8x128xf32>
      %93 = arith.addf %92, %91 : vector<8x128xf32>
      %94 = arith.divf %92, %93 : vector<8x128xf32>
      %95 = vector.extract_strided_slice %82 {offsets = [0, 128], sizes = [8, 128], strides = [1, 1]} : vector<8x512xf32> to vector<8x128xf32>
      %96 = arith.negf %95 : vector<8x128xf32>
      %97 = math.exp %96 : vector<8x128xf32>
      %cst_71 = arith.constant 1.000000e+00 : f32
      %98 = vector.broadcast %cst_71 : f32 to vector<8x128xf32>
      %99 = arith.addf %98, %97 : vector<8x128xf32>
      %100 = arith.divf %98, %99 : vector<8x128xf32>
      %101 = vector.extract_strided_slice %82 {offsets = [0, 256], sizes = [8, 128], strides = [1, 1]} : vector<8x512xf32> to vector<8x128xf32>
      %102 = math.tanh %101 : vector<8x128xf32>
      %103 = vector.extract_strided_slice %82 {offsets = [0, 384], sizes = [8, 128], strides = [1, 1]} : vector<8x512xf32> to vector<8x128xf32>
      %104 = arith.negf %103 : vector<8x128xf32>
      %105 = math.exp %104 : vector<8x128xf32>
      %cst_72 = arith.constant 1.000000e+00 : f32
      %106 = vector.broadcast %cst_72 : f32 to vector<8x128xf32>
      %107 = arith.addf %106, %105 : vector<8x128xf32>
      %108 = arith.divf %106, %107 : vector<8x128xf32>
      %109 = arith.mulf %100, %arg25 : vector<8x128xf32>
      %110 = arith.mulf %94, %102 : vector<8x128xf32>
      %111 = arith.addf %109, %110 : vector<8x128xf32>
      %112 = math.tanh %111 : vector<8x128xf32>
      %113 = arith.mulf %108, %112 : vector<8x128xf32>
      %114 = vector.extract_strided_slice %88 {offsets = [0, 0], sizes = [8, 128], strides = [1, 1]} : vector<8x512xf32> to vector<8x128xf32>
      %115 = arith.negf %114 : vector<8x128xf32>
      %116 = math.exp %115 : vector<8x128xf32>
      %cst_73 = arith.constant 1.000000e+00 : f32
      %117 = vector.broadcast %cst_73 : f32 to vector<8x128xf32>
      %118 = arith.addf %117, %116 : vector<8x128xf32>
      %119 = arith.divf %117, %118 : vector<8x128xf32>
      %120 = vector.extract_strided_slice %88 {offsets = [0, 128], sizes = [8, 128], strides = [1, 1]} : vector<8x512xf32> to vector<8x128xf32>
      %121 = arith.negf %120 : vector<8x128xf32>
      %122 = math.exp %121 : vector<8x128xf32>
      %cst_74 = arith.constant 1.000000e+00 : f32
      %123 = vector.broadcast %cst_74 : f32 to vector<8x128xf32>
      %124 = arith.addf %123, %122 : vector<8x128xf32>
      %125 = arith.divf %123, %124 : vector<8x128xf32>
      %126 = vector.extract_strided_slice %88 {offsets = [0, 256], sizes = [8, 128], strides = [1, 1]} : vector<8x512xf32> to vector<8x128xf32>
      %127 = math.tanh %126 : vector<8x128xf32>
      %128 = vector.extract_strided_slice %88 {offsets = [0, 384], sizes = [8, 128], strides = [1, 1]} : vector<8x512xf32> to vector<8x128xf32>
      %129 = arith.negf %128 : vector<8x128xf32>
      %130 = math.exp %129 : vector<8x128xf32>
      %cst_75 = arith.constant 1.000000e+00 : f32
      %131 = vector.broadcast %cst_75 : f32 to vector<8x128xf32>
      %132 = arith.addf %131, %130 : vector<8x128xf32>
      %133 = arith.divf %131, %132 : vector<8x128xf32>
      %134 = arith.mulf %125, %arg27 : vector<8x128xf32>
      %135 = arith.mulf %119, %127 : vector<8x128xf32>
      %136 = arith.addf %134, %135 : vector<8x128xf32>
      %137 = math.tanh %136 : vector<8x128xf32>
      %138 = arith.mulf %133, %137 : vector<8x128xf32>
      %139 = arith.index_cast %arg23 : i32 to index
      %c0_76 = arith.constant 0 : index
      %c0_77 = arith.constant 0 : index
      %140 = vector.load %arg21[%139, %c0_76, %c0_77] : memref<8x8x128xf32, #tpu.memory_space<vmem>>, vector<1x8x128xf32>
      %141 = vector.shape_cast %140 : vector<1x8x128xf32> to vector<8x128xf32>
      %142 = vector.shape_cast %113 : vector<8x128xf32> to vector<1x8x128xf32>
      tpu.vector_store %arg21[%139, %c0_76, %c0_77], %142 {strides = array<i32>} : memref<8x8x128xf32, #tpu.memory_space<vmem>>, vector<1x8x128xf32>,
      %143 = arith.index_cast %76 : i32 to index
      %c0_78 = arith.constant 0 : index
      %c0_79 = arith.constant 0 : index
      %144 = vector.load %arg22[%143, %c0_78, %c0_79] : memref<8x8x128xf32, #tpu.memory_space<vmem>>, vector<1x8x128xf32>
      %145 = vector.shape_cast %144 : vector<1x8x128xf32> to vector<8x128xf32>
      %146 = vector.shape_cast %138 : vector<8x128xf32> to vector<1x8x128xf32>
      tpu.vector_store %arg22[%143, %c0_78, %c0_79], %146 {strides = array<i32>} : memref<8x8x128xf32, #tpu.memory_space<vmem>>, vector<1x8x128xf32>,
      scf.yield %113, %111, %138, %136 : vector<8x128xf32>, vector<8x128xf32>, vector<8x128xf32>, vector<8x128xf32>
    }
    %c8_i32_17 = arith.constant 8 : i32
    %c0_18 = arith.constant 0 : index
    %c0_19 = arith.constant 0 : index
    %c0_20 = arith.constant 0 : index
    %19 = vector.load %arg21[%c0_18, %c0_19, %c0_20] : memref<8x8x128xf32, #tpu.memory_space<vmem>>, vector<8x8x128xf32>
    %20 = vector.shape_cast %19 : vector<8x8x128xf32> to vector<64x128xf32>
    %21 = arith.truncf %20 : vector<64x128xf32> to vector<64x128xbf16>
    %c0_21 = arith.constant 0 : index
    %c0_22 = arith.constant 0 : index
    %c0_23 = arith.constant 0 : index
    %22 = vector.load %arg22[%c0_21, %c0_22, %c0_23] : memref<8x8x128xf32, #tpu.memory_space<vmem>>, vector<8x8x128xf32>
    %23 = vector.shape_cast %22 : vector<8x8x128xf32> to vector<64x128xf32>
    %24 = arith.truncf %23 : vector<64x128xf32> to vector<64x128xbf16>
    %c0_24 = arith.constant 0 : index
    %c0_25 = arith.constant 0 : index
    %25 = vector.load %arg9[%c0_24, %c0_25] : memref<128x8xbf16, #tpu.memory_space<vmem>>, vector<128x8xbf16>
    %cst_26 = arith.constant dense<0.000000e+00> : vector<64x8xf32>
    %26 = tpu.matmul %21, %25, %cst_26 {dimension_numbers = #tpu.dot_dimension_numbers<[1], [0], [0], [1], [0, 0, 1, 1], [], []>} : vector<64x128xbf16>, vector<128x8xbf16>, vector<64x8xf32> -> vector<64x8xf32>
    %c0_27 = arith.constant 0 : index
    %c0_28 = arith.constant 0 : index
    %27 = vector.load %arg10[%c0_27, %c0_28] : memref<128x8xbf16, #tpu.memory_space<vmem>>, vector<128x8xbf16>
    %cst_29 = arith.constant dense<0.000000e+00> : vector<64x8xf32>
    %28 = tpu.matmul %24, %27, %cst_29 {dimension_numbers = #tpu.dot_dimension_numbers<[1], [0], [0], [1], [0, 0, 1, 1], [], []>} : vector<64x128xbf16>, vector<128x8xbf16>, vector<64x8xf32> -> vector<64x8xf32>
    %29 = arith.addf %26, %28 : vector<64x8xf32>
    %c0_30 = arith.constant 0 : index
    %c0_31 = arith.constant 0 : index
    %30 = vector.load %arg11[%c0_30, %c0_31] : memref<1x8xf32, #tpu.memory_space<vmem>>, vector<1x8xf32>
    %31 = vector.broadcast %30 : vector<1x8xf32> to vector<64x8xf32>
    %32 = arith.addf %29, %31 : vector<64x8xf32>
    %33 = vector.shape_cast %32 : vector<64x8xf32> to vector<8x8x8xf32>
    %c0_32 = arith.constant 0 : index
    %c0_33 = arith.constant 0 : index
    %c0_34 = arith.constant 0 : index
    %34 = vector.load %arg15[%c0_32, %c0_33, %c0_34] : memref<8x8x8xf32, #tpu.memory_space<vmem>>, vector<8x8x8xf32>
    tpu.vector_store %arg15[%c0_32, %c0_33, %c0_34], %33 {strides = array<i32>} : memref<8x8x8xf32, #tpu.memory_space<vmem>>, vector<8x8x8xf32>,
    %c0_35 = arith.constant 0 : index
    %c0_36 = arith.constant 0 : index
    %35 = vector.load %arg12[%c0_35, %c0_36] : memref<8x8xf32, #tpu.memory_space<vmem>>, vector<8x8xf32>
    %c0_37 = arith.constant 0 : index
    %c0_38 = arith.constant 0 : index
    %36 = vector.load %arg13[%c0_37, %c0_38] : memref<1x8xf32, #tpu.memory_space<vmem>>, vector<1x8xf32>
    %c0_39 = arith.constant 0 : index
    %c0_40 = arith.constant 0 : index
    %37 = vector.load %arg14[%c0_39, %c0_40] : memref<1x8xf32, #tpu.memory_space<vmem>>, vector<1x8xf32>
    %38 = tpu.iota {dimensions = array<i32: 1>} : vector<8x8x8xi32>
    %39 = tpu.iota {dimensions = array<i32: 1>} : vector<8x8xi32>
    %c0_41 = arith.constant 0 : index
    %c0_42 = arith.constant 0 : index
    %c0_43 = arith.constant 0 : index
    %40 = vector.load %arg15[%c0_41, %c0_42, %c0_43] : memref<8x8x8xf32, #tpu.memory_space<vmem>>, vector<1x8x8xf32>
    %41 = vector.shape_cast %40 : vector<1x8x8xf32> to vector<8x8xf32>
    %42 = vector.broadcast %36 : vector<1x8xf32> to vector<8x8xf32>
    %43 = arith.addf %42, %41 : vector<8x8xf32>
    %c0_44 = arith.constant 0 : index
    %c0_45 = arith.constant 0 : index
    %c0_46 = arith.constant 0 : index
    %44 = vector.load %arg2[%c0_44, %c0_45, %c0_46] : memref<8x8x8xf32, #tpu.memory_space<vmem>>, vector<1x8x8xf32>
    %45 = vector.shape_cast %44 : vector<1x8x8xf32> to vector<8x8xf32>
    %46 = arith.mulf %43, %45 : vector<8x8xf32>
    %cst_47 = arith.constant dense<0.000000e+00> : vector<8xf32>
    %47 = vector.multi_reduction <add>, %46, %cst_47 [1] : vector<8x8xf32> to vector<8xf32>
    %48 = vector.shape_cast %47 : vector<8xf32> to vector<8x1xf32>
    %c0_48 = arith.constant 0 : index
    %c0_49 = arith.constant 0 : index
    %c0_50 = arith.constant 0 : index
    %49 = vector.load %arg16[%c0_48, %c0_49, %c0_50] : memref<8x8x8xi32, #tpu.memory_space<vmem>>, vector<1x8x8xi32>
    %50 = vector.shape_cast %49 : vector<1x8x8xi32> to vector<8x8xi32>
    %51 = vector.shape_cast %39 : vector<8x8xi32> to vector<1x8x8xi32>
    tpu.vector_store %arg16[%c0_48, %c0_49, %c0_50], %51 {strides = array<i32>} : memref<8x8x8xi32, #tpu.memory_space<vmem>>, vector<1x8x8xi32>,
    %c1_i32_51 = arith.constant 1 : i32
    %c7_i32 = arith.constant 7 : i32
    %52 = arith.addi %c1_i32_51, %c7_i32 : i32
    %c1_i32_52 = arith.constant 1 : i32
    %53:3 = scf.for %arg23 = %c1_i32_51 to %52 step %c1_i32_52 iter_args(%arg24 = %43, %arg25 = %48, %arg26 = %43) -> (vector<8x8xf32>, vector<8x1xf32>, vector<8x8xf32>)  : i32 {
      %76 = arith.index_cast %arg23 : i32 to index
      %c0_63 = arith.constant 0 : index
      %c0_64 = arith.constant 0 : index
      %77 = vector.load %arg15[%76, %c0_63, %c0_64] : memref<8x8x8xf32, #tpu.memory_space<vmem>>, vector<1x8x8xf32>
      %78 = vector.shape_cast %77 : vector<1x8x8xf32> to vector<8x8xf32>
      %79 = arith.index_cast %arg23 : i32 to index
      %c0_65 = arith.constant 0 : index
      %c0_66 = arith.constant 0 : index
      %80 = vector.load %arg4[%79, %c0_65, %c0_66] : memref<8x8x1xf32, #tpu.memory_space<vmem>>, vector<1x8x1xf32>
      %81 = vector.shape_cast %80 : vector<1x8x1xf32> to vector<8x1xf32>
      %82 = arith.index_cast %arg23 : i32 to index
      %c0_67 = arith.constant 0 : index
      %c0_68 = arith.constant 0 : index
      %83 = vector.load %arg2[%82, %c0_67, %c0_68] : memref<8x8x8xf32, #tpu.memory_space<vmem>>, vector<1x8x8xf32>
      %84 = vector.shape_cast %83 : vector<1x8x8xf32> to vector<8x8xf32>
      %c1_i32_69 = arith.constant 1 : i32
      %85 = arith.subi %arg23, %c1_i32_69 : i32
      %86 = arith.index_cast %85 : i32 to index
      %c0_70 = arith.constant 0 : index
      %c0_71 = arith.constant 0 : index
      %87 = vector.load %arg2[%86, %c0_70, %c0_71] : memref<8x8x8xf32, #tpu.memory_space<vmem>>, vector<1x8x8xf32>
      %88 = vector.shape_cast %87 : vector<1x8x8xf32> to vector<8x8xf32>
      %89 = vector.shape_cast %arg24 : vector<8x8xf32> to vector<8x8x1xf32>
      %90 = vector.shape_cast %35 : vector<8x8xf32> to vector<1x8x8xf32>
      %91 = vector.broadcast %89 : vector<8x8x1xf32> to vector<8x8x8xf32>
      %92 = vector.broadcast %90 : vector<1x8x8xf32> to vector<8x8x8xf32>
      %93 = arith.addf %91, %92 : vector<8x8x8xf32>
      %94 = vector.shape_cast %78 : vector<8x8xf32> to vector<8x1x8xf32>
      %95 = vector.broadcast %94 : vector<8x1x8xf32> to vector<8x8x8xf32>
      %96 = arith.addf %93, %95 : vector<8x8x8xf32>
      %cst_72 = arith.constant dense<0xFF800000> : vector<8x8xf32>
      %97 = vector.multi_reduction <maximumf>, %96, %cst_72 [1] : vector<8x8x8xf32> to vector<8x8xf32>
      %98 = vector.shape_cast %97 : vector<8x8xf32> to vector<8x1x8xf32>
      %99 = vector.broadcast %98 : vector<8x1x8xf32> to vector<8x8x8xf32>
      %100 = arith.subf %96, %99 : vector<8x8x8xf32>
      %101 = math.exp %100 : vector<8x8x8xf32>
      %cst_73 = arith.constant dense<0.000000e+00> : vector<8x8xf32>
      %102 = vector.multi_reduction <add>, %101, %cst_73 [1] : vector<8x8x8xf32> to vector<8x8xf32>
      %103 = vector.shape_cast %102 : vector<8x8xf32> to vector<8x1x8xf32>
      %104 = math.log %103 : vector<8x1x8xf32>
      %105 = arith.addf %98, %104 : vector<8x1x8xf32>
      %106 = vector.shape_cast %105 : vector<8x1x8xf32> to vector<8x8xf32>
      %cst_74 = arith.constant 0.000000e+00 : f32
      %107 = vector.broadcast %cst_74 : f32 to vector<8x1xf32>
      %108 = arith.cmpf ogt, %81, %107 : vector<8x1xf32>
      %109 = vector.shape_cast %108 : vector<8x1xi1> to vector<8x1xi1>
      %110 = vector.broadcast %109 : vector<8x1xi1> to vector<8x8xi1>
      %111 = arith.select %110, %106, %arg24 : vector<8x8xi1>, vector<8x8xf32>
      %112 = vector.shape_cast %88 : vector<8x8xf32> to vector<8x8x1xf32>
      %113 = vector.shape_cast %35 : vector<8x8xf32> to vector<1x8x8xf32>
      %114 = vector.broadcast %112 : vector<8x8x1xf32> to vector<8x8x8xf32>
      %115 = vector.broadcast %113 : vector<1x8x8xf32> to vector<8x8x8xf32>
      %116 = arith.mulf %114, %115 : vector<8x8x8xf32>
      %cst_75 = arith.constant dense<0.000000e+00> : vector<8x8xf32>
      %117 = vector.multi_reduction <add>, %116, %cst_75 [1] : vector<8x8x8xf32> to vector<8x8xf32>
      %118 = arith.mulf %117, %84 : vector<8x8xf32>
      %cst_76 = arith.constant dense<0.000000e+00> : vector<8xf32>
      %119 = vector.multi_reduction <add>, %118, %cst_76 [1] : vector<8x8xf32> to vector<8xf32>
      %120 = vector.shape_cast %119 : vector<8xf32> to vector<8x1xf32>
      %121 = arith.mulf %78, %84 : vector<8x8xf32>
      %cst_77 = arith.constant dense<0.000000e+00> : vector<8xf32>
      %122 = vector.multi_reduction <add>, %121, %cst_77 [1] : vector<8x8xf32> to vector<8xf32>
      %123 = vector.shape_cast %122 : vector<8xf32> to vector<8x1xf32>
      %124 = arith.addf %120, %123 : vector<8x1xf32>
      %125 = arith.mulf %81, %124 : vector<8x1xf32>
      %126 = arith.addf %arg25, %125 : vector<8x1xf32>
      %127 = vector.shape_cast %arg26 : vector<8x8xf32> to vector<8x8x1xf32>
      %128 = vector.shape_cast %35 : vector<8x8xf32> to vector<1x8x8xf32>
      %129 = vector.broadcast %127 : vector<8x8x1xf32> to vector<8x8x8xf32>
      %130 = vector.broadcast %128 : vector<1x8x8xf32> to vector<8x8x8xf32>
      %131 = arith.addf %129, %130 : vector<8x8x8xf32>
      %132 = vector.shape_cast %78 : vector<8x8xf32> to vector<8x1x8xf32>
      %133 = vector.broadcast %132 : vector<8x1x8xf32> to vector<8x8x8xf32>
      %134 = arith.addf %131, %133 : vector<8x8x8xf32>
      %cst_78 = arith.constant dense<0xFF800000> : vector<8x8xf32>
      %135 = vector.multi_reduction <maximumf>, %134, %cst_78 [1] : vector<8x8x8xf32> to vector<8x8xf32>
      %136 = vector.shape_cast %135 : vector<8x8xf32> to vector<8x1x8xf32>
      %137 = vector.broadcast %136 : vector<8x1x8xf32> to vector<8x8x8xf32>
      %138 = arith.cmpf oge, %134, %137 : vector<8x8x8xf32>
      %c8_i32_79 = arith.constant 8 : i32
      %139 = vector.broadcast %c8_i32_79 : i32 to vector<8x8x8xi32>
      %140 = arith.select %138, %38, %139 : vector<8x8x8xi1>, vector<8x8x8xi32>
      %cst_80 = arith.constant dense<2147483647> : vector<8x8xi32>
      %141 = vector.multi_reduction <minsi>, %140, %cst_80 [1] : vector<8x8x8xi32> to vector<8x8xi32>
      %cst_81 = arith.constant 0.000000e+00 : f32
      %142 = vector.broadcast %cst_81 : f32 to vector<8x1xf32>
      %143 = arith.cmpf ogt, %81, %142 : vector<8x1xf32>
      %144 = vector.shape_cast %143 : vector<8x1xi1> to vector<8x1xi1>
      %145 = vector.broadcast %144 : vector<8x1xi1> to vector<8x8xi1>
      %146 = arith.select %145, %141, %39 : vector<8x8xi1>, vector<8x8xi32>
      %147 = arith.index_cast %arg23 : i32 to index
      %c0_82 = arith.constant 0 : index
      %c0_83 = arith.constant 0 : index
      %148 = vector.load %arg16[%147, %c0_82, %c0_83] : memref<8x8x8xi32, #tpu.memory_space<vmem>>, vector<1x8x8xi32>
      %149 = vector.shape_cast %148 : vector<1x8x8xi32> to vector<8x8xi32>
      %150 = vector.shape_cast %146 : vector<8x8xi32> to vector<1x8x8xi32>
      tpu.vector_store %arg16[%147, %c0_82, %c0_83], %150 {strides = array<i32>} : memref<8x8x8xi32, #tpu.memory_space<vmem>>, vector<1x8x8xi32>,
      %cst_84 = arith.constant 0.000000e+00 : f32
      %151 = vector.broadcast %cst_84 : f32 to vector<8x1xf32>
      %152 = arith.cmpf ogt, %81, %151 : vector<8x1xf32>
      %153 = vector.shape_cast %152 : vector<8x1xi1> to vector<8x1xi1>
      %154 = vector.broadcast %153 : vector<8x1xi1> to vector<8x8xi1>
      %155 = arith.select %154, %135, %arg26 : vector<8x8xi1>, vector<8x8xf32>
      scf.yield %111, %126, %155 : vector<8x8xf32>, vector<8x1xf32>, vector<8x8xf32>
    }
    %c7_i32_53 = arith.constant 7 : i32
    %54 = vector.broadcast %37 : vector<1x8xf32> to vector<8x8xf32>
    %55 = arith.addf %53#0, %54 : vector<8x8xf32>
    %cst_54 = arith.constant dense<0xFF800000> : vector<8xf32>
    %56 = vector.multi_reduction <maximumf>, %55, %cst_54 [1] : vector<8x8xf32> to vector<8xf32>
    %57 = vector.shape_cast %56 : vector<8xf32> to vector<8x1xf32>
    %58 = vector.broadcast %57 : vector<8x1xf32> to vector<8x8xf32>
    %59 = arith.subf %55, %58 : vector<8x8xf32>
    %60 = math.exp %59 : vector<8x8xf32>
    %cst_55 = arith.constant dense<0.000000e+00> : vector<8xf32>
    %61 = vector.multi_reduction <add>, %60, %cst_55 [1] : vector<8x8xf32> to vector<8xf32>
    %62 = vector.shape_cast %61 : vector<8xf32> to vector<8x1xf32>
    %63 = math.log %62 : vector<8x1xf32>
    %64 = arith.addf %57, %63 : vector<8x1xf32>
    %c0_56 = arith.constant 0 : index
    %c0_57 = arith.constant 0 : index
    %65 = vector.load %arg3[%c0_56, %c0_57] : memref<8x8xf32, #tpu.memory_space<vmem>>, vector<8x8xf32>
    %66 = vector.broadcast %37 : vector<1x8xf32> to vector<8x8xf32>
    %67 = arith.mulf %66, %65 : vector<8x8xf32>
    %cst_58 = arith.constant dense<0.000000e+00> : vector<8xf32>
    %68 = vector.multi_reduction <add>, %67, %cst_58 [1] : vector<8x8xf32> to vector<8xf32>
    %69 = vector.shape_cast %68 : vector<8xf32> to vector<8x1xf32>
    %70 = arith.addf %53#1, %69 : vector<8x1xf32>
    %71 = arith.subf %64, %70 : vector<8x1xf32>
    %c0_59 = arith.constant 0 : index
    %c0_60 = arith.constant 0 : index
    %72 = vector.load %arg18[%c0_59, %c0_60] : memref<8x1xf32, #tpu.memory_space<vmem>>, vector<8x1xf32>
    tpu.vector_store %arg18[%c0_59, %c0_60], %71 {strides = array<i32>} : memref<8x1xf32, #tpu.memory_space<vmem>>, vector<8x1xf32>,
    %73 = vector.broadcast %37 : vector<1x8xf32> to vector<8x8xf32>
    %74 = arith.addf %53#2, %73 : vector<8x8xf32>
    %c0_61 = arith.constant 0 : index
    %c0_62 = arith.constant 0 : index
    %75 = vector.load %arg17[%c0_61, %c0_62] : memref<8x8xf32, #tpu.memory_space<vmem>>, vector<8x8xf32>
    tpu.vector_store %arg17[%c0_61, %c0_62], %74 {strides = array<i32>} : memref<8x8xf32, #tpu.memory_space<vmem>>, vector<8x8xf32>,
    return
  }
  func.func @transform_0(%arg0: i32) -> (i32, i32, i32) {
    %c0_i32 = arith.constant 0 : i32
    %c0_i32_0 = arith.constant 0 : i32
    %c0_i32_1 = arith.constant 0 : i32
    return %c0_i32, %arg0, %c0_i32_0 : i32, i32, i32
  }
  func.func @transform_1(%arg0: i32) -> (i32, i32, i32) {
    %c0_i32 = arith.constant 0 : i32
    %c0_i32_0 = arith.constant 0 : i32
    %c0_i32_1 = arith.constant 0 : i32
    return %c0_i32, %arg0, %c0_i32_0 : i32, i32, i32
  }
  func.func @transform_2(%arg0: i32) -> (i32, i32) {
    %c0_i32 = arith.constant 0 : i32
    %c0_i32_0 = arith.constant 0 : i32
    return %arg0, %c0_i32 : i32, i32
  }
  func.func @transform_3(%arg0: i32) -> (i32, i32, i32) {
    %c0_i32 = arith.constant 0 : i32
    %c0_i32_0 = arith.constant 0 : i32
    %c0_i32_1 = arith.constant 0 : i32
    return %c0_i32, %arg0, %c0_i32_0 : i32, i32, i32
  }
  func.func @transform_4(%arg0: i32) -> (i32, i32) {
    %c0_i32 = arith.constant 0 : i32
    %c0_i32_0 = arith.constant 0 : i32
    %c0_i32_1 = arith.constant 0 : i32
    return %c0_i32, %c0_i32_0 : i32, i32
  }
  func.func @transform_5(%arg0: i32) -> (i32, i32) {
    %c0_i32 = arith.constant 0 : i32
    %c0_i32_0 = arith.constant 0 : i32
    %c0_i32_1 = arith.constant 0 : i32
    return %c0_i32, %c0_i32_0 : i32, i32
  }
  func.func @transform_6(%arg0: i32) -> (i32, i32) {
    %c0_i32 = arith.constant 0 : i32
    %c0_i32_0 = arith.constant 0 : i32
    %c0_i32_1 = arith.constant 0 : i32
    return %c0_i32, %c0_i32_0 : i32, i32
  }
  func.func @transform_7(%arg0: i32) -> (i32, i32) {
    %c0_i32 = arith.constant 0 : i32
    %c0_i32_0 = arith.constant 0 : i32
    %c0_i32_1 = arith.constant 0 : i32
    return %c0_i32, %c0_i32_0 : i32, i32
  }
  func.func @transform_8(%arg0: i32) -> (i32, i32) {
    %c0_i32 = arith.constant 0 : i32
    %c0_i32_0 = arith.constant 0 : i32
    %c0_i32_1 = arith.constant 0 : i32
    return %c0_i32, %c0_i32_0 : i32, i32
  }
  func.func @transform_9(%arg0: i32) -> (i32, i32) {
    %c0_i32 = arith.constant 0 : i32
    %c0_i32_0 = arith.constant 0 : i32
    %c0_i32_1 = arith.constant 0 : i32
    return %c0_i32, %c0_i32_0 : i32, i32
  }
  func.func @transform_10(%arg0: i32) -> (i32, i32) {
    %c0_i32 = arith.constant 0 : i32
    %c0_i32_0 = arith.constant 0 : i32
    %c0_i32_1 = arith.constant 0 : i32
    return %c0_i32, %c0_i32_0 : i32, i32
  }
  func.func @transform_11(%arg0: i32) -> (i32, i32) {
    %c0_i32 = arith.constant 0 : i32
    %c0_i32_0 = arith.constant 0 : i32
    %c0_i32_1 = arith.constant 0 : i32
    return %c0_i32, %c0_i32_0 : i32, i32
  }
  func.func @transform_12(%arg0: i32) -> (i32, i32) {
    %c0_i32 = arith.constant 0 : i32
    %c0_i32_0 = arith.constant 0 : i32
    %c0_i32_1 = arith.constant 0 : i32
    return %c0_i32, %c0_i32_0 : i32, i32
  }
  func.func @transform_13(%arg0: i32) -> (i32, i32) {
    %c0_i32 = arith.constant 0 : i32
    %c0_i32_0 = arith.constant 0 : i32
    %c0_i32_1 = arith.constant 0 : i32
    return %c0_i32, %c0_i32_0 : i32, i32
  }
  func.func @transform_14(%arg0: i32) -> (i32, i32, i32) {
    %c0_i32 = arith.constant 0 : i32
    %c0_i32_0 = arith.constant 0 : i32
    %c0_i32_1 = arith.constant 0 : i32
    return %c0_i32, %arg0, %c0_i32_0 : i32, i32, i32
  }
  func.func @transform_15(%arg0: i32) -> (i32, i32, i32) {
    %c0_i32 = arith.constant 0 : i32
    %c0_i32_0 = arith.constant 0 : i32
    %c0_i32_1 = arith.constant 0 : i32
    return %c0_i32, %arg0, %c0_i32_0 : i32, i32, i32
  }
  func.func @transform_16(%arg0: i32) -> (i32, i32) {
    %c0_i32 = arith.constant 0 : i32
    %c0_i32_0 = arith.constant 0 : i32
    return %arg0, %c0_i32 : i32, i32
  }
  func.func @transform_17(%arg0: i32) -> (i32, i32) {
    %c0_i32 = arith.constant 0 : i32
    %c0_i32_0 = arith.constant 0 : i32
    return %arg0, %c0_i32 : i32, i32
  }
}

</mosaic_0001>

<llo_original>
// kernel: custom-call.8
$region0: #{custom-call.8}
  %s0 = inlined_call_operand.vmem [shape: s32[7,8], index: 0, kind: output, shape index: {}]

// kernel: lstm_crf_forward.1
$region0: #{lstm_crf_forward.1}
  #allocation0 [shape = 'u32[]', space=smem, size = 0x4, offset = 0x4, fixed_abs, tag = 'smem constant byte address 0x4 - core index']
  #allocation1 [shape = 'u32[144,128]{1,0:T(1,128)}', space=vmem, size = 0x12000, scoped, tag = 'internal scratch']
  #allocation2 [shape = 'f32[8,8,512]{2,1,0:T(8,128)}', space=vmem, size = 0x20000, scoped, tag = 'scratch operand']
  #allocation3 [shape = 'f32[8,8,512]{2,1,0:T(8,128)}', space=vmem, size = 0x20000, scoped, tag = 'scratch operand']
  #allocation4 [shape = 'f32[8,8,128]{2,1,0:T(8,128)}', space=vmem, size = 0x8000, scoped, tag = 'scratch operand']
  #allocation5 [shape = 'f32[8,8,128]{2,1,0:T(8,128)}', space=vmem, size = 0x8000, scoped, tag = 'scratch operand']
  %s0 = inlined_call_operand.vmem [shape: f32[8,8,128], index: 0, kind: input, shape index: {}]
  %s1 = inlined_call_operand.vmem [shape: f32[8,8,8], index: 1, kind: input, shape index: {}]
  %s2 = inlined_call_operand.vmem [shape: f32[8,8], index: 2, kind: input, shape index: {}]
  %s3 = inlined_call_operand.vmem [shape: f32[8,8,1], index: 3, kind: input, shape index: {}]
  %s4 = inlined_call_operand.vmem [shape: bf16[128,1024], index: 4, kind: input, shape index: {}]
  %s5 = inlined_call_operand.vmem [shape: bf16[128,512], index: 5, kind: input, shape index: {}]
  %s6 = inlined_call_operand.vmem [shape: bf16[128,512], index: 6, kind: input, shape index: {}]
  %s7 = inlined_call_operand.vmem [shape: f32[1,1024], index: 7, kind: input, shape index: {}]
  %s8 = inlined_call_operand.vmem [shape: bf16[128,8], index: 8, kind: input, shape index: {}]
  %s9 = inlined_call_operand.vmem [shape: bf16[128,8], index: 9, kind: input, shape index: {}]
  %s10 = inlined_call_operand.vmem [shape: f32[1,8], index: 10, kind: input, shape index: {}]
  %s11 = inlined_call_operand.vmem [shape: f32[8,8], index: 11, kind: input, shape index: {}]
  %s12 = inlined_call_operand.vmem [shape: f32[1,8], index: 12, kind: input, shape index: {}]
  %s13 = inlined_call_operand.vmem [shape: f32[1,8], index: 13, kind: input, shape index: {}]
  %s14 = inlined_call_operand.vmem [shape: f32[8,8,8], index: 14, kind: output, shape index: {0}]
  %s15 = inlined_call_operand.vmem [shape: s32[8,8,8], index: 15, kind: output, shape index: {1}]
  %s16 = inlined_call_operand.vmem [shape: f32[8,8], index: 16, kind: output, shape index: {2}]
  %s17 = inlined_call_operand.vmem [shape: f32[8,1], index: 17, kind: output, shape index: {3}]
  %18 = xla_tuple %s14, %s15, %s16, %s17
  %s19 = sld [smem:[#allocation0]]
  $region104: #{lstm_crf_forward.1} parent=0
    _
  %s21 = ssub.s32 1, %s19
  %s22 = scalar_select 0, %s21, %s19
  // Predicated region
  $region2: #{lstm_crf_forward.1} parent=0 // pred_check
    _
  $region3: #{lstm_crf_forward.1} parent=0 // pred_check_branch
    %24 = sbr.rel (0) target = $region5
  $region4: #{lstm_crf_forward.1} parent=0 // pred_region
    _
  $region5: #{lstm_crf_forward.1} parent=0 // pred_fallthru
    _
  // Predicated region
  $region6: #{lstm_crf_forward.1} parent=0 // pred_check
    _
  $region7: #{lstm_crf_forward.1} parent=0 // pred_check_branch
    %26 = sbr.rel (0) target = $region9
  $region8: #{lstm_crf_forward.1} parent=0 // pred_region
    _
  $region9: #{lstm_crf_forward.1} parent=0 // pred_fallthru
    _
  // Predicated region
  $region10: #{lstm_crf_forward.1} parent=0 // pred_check
    _
  $region11: #{lstm_crf_forward.1} parent=0 // pred_check_branch
    %28 = sbr.rel (0) target = $region13
  $region12: #{lstm_crf_forward.1} parent=0 // pred_region
    _
  $region13: #{lstm_crf_forward.1} parent=0 // pred_fallthru
    _
  // Predicated region
  $region14: #{lstm_crf_forward.1} parent=0 // pred_check
    _
  $region15: #{lstm_crf_forward.1} parent=0 // pred_check_branch
    %30 = sbr.rel (0) target = $region17
  $region16: #{lstm_crf_forward.1} parent=0 // pred_region
    _
  $region17: #{lstm_crf_forward.1} parent=0 // pred_fallthru
    _
  // Predicated region
  $region18: #{lstm_crf_forward.1} parent=0 // pred_check
    _
  $region19: #{lstm_crf_forward.1} parent=0 // pred_check_branch
    %32 = sbr.rel (0) target = $region21
  $region20: #{lstm_crf_forward.1} parent=0 // pred_region
    _
  $region21: #{lstm_crf_forward.1} parent=0 // pred_fallthru
    _
  // Predicated region
  $region22: #{lstm_crf_forward.1} parent=0 // pred_check
    _
  $region23: #{lstm_crf_forward.1} parent=0 // pred_check_branch
    %34 = sbr.rel (0) target = $region25
  $region24: #{lstm_crf_forward.1} parent=0 // pred_region
    _
  $region25: #{lstm_crf_forward.1} parent=0 // pred_fallthru
    _
  // Predicated region
  $region26: #{lstm_crf_forward.1} parent=0 // pred_check
    _
  $region27: #{lstm_crf_forward.1} parent=0 // pred_check_branch
    %36 = sbr.rel (0) target = $region29
  $region28: #{lstm_crf_forward.1} parent=0 // pred_region
    _
  $region29: #{lstm_crf_forward.1} parent=0 // pred_fallthru
    _
  // Predicated region
  $region30: #{lstm_crf_forward.1} parent=0 // pred_check
    _
  $region31: #{lstm_crf_forward.1} parent=0 // pred_check_branch
    %38 = sbr.rel (0) target = $region33
  $region32: #{lstm_crf_forward.1} parent=0 // pred_region
    _
  $region33: #{lstm_crf_forward.1} parent=0 // pred_fallthru
    _
  // Predicated region
  $region34: #{lstm_crf_forward.1} parent=0 // pred_check
    _
  $region35: #{lstm_crf_forward.1} parent=0 // pred_check_branch
    %40 = sbr.rel (0) target = $region37
  $region36: #{lstm_crf_forward.1} parent=0 // pred_region
    _
  $region37: #{lstm_crf_forward.1} parent=0 // pred_fallthru
    _
  // Predicated region
  $region38: #{lstm_crf_forward.1} parent=0 // pred_check
    _
  $region39: #{lstm_crf_forward.1} parent=0 // pred_check_branch
    %42 = sbr.rel (0) target = $region41
  $region40: #{lstm_crf_forward.1} parent=0 // pred_region
    _
  $region41: #{lstm_crf_forward.1} parent=0 // pred_fallthru
    _
  // Predicated region
  $region42: #{lstm_crf_forward.1} parent=0 // pred_check
    _
  $region43: #{lstm_crf_forward.1} parent=0 // pred_check_branch
    %44 = sbr.rel (0) target = $region45
  $region44: #{lstm_crf_forward.1} parent=0 // pred_region
    _
  $region45: #{lstm_crf_forward.1} parent=0 // pred_fallthru
    _
  // Predicated region
  $region46: #{lstm_crf_forward.1} parent=0 // pred_check
    _
  $region47: #{lstm_crf_forward.1} parent=0 // pred_check_branch
    %46 = sbr.rel (0) target = $region49
  $region48: #{lstm_crf_forward.1} parent=0 // pred_region
    _
  $region49: #{lstm_crf_forward.1} parent=0 // pred_fallthru
    _
  // Predicated region
  $region50: #{lstm_crf_forward.1} parent=0 // pred_check
    _
  $region51: #{lstm_crf_forward.1} parent=0 // pred_check_branch
    %48 = sbr.rel (0) target = $region53
  $region52: #{lstm_crf_forward.1} parent=0 // pred_region
    _
  $region53: #{lstm_crf_forward.1} parent=0 // pred_fallthru
    _
  // Predicated region
  $region54: #{lstm_crf_forward.1} parent=0 // pred_check
    _
  $region55: #{lstm_crf_forward.1} parent=0 // pred_check_branch
    %50 = sbr.rel (0) target = $region57
  $region56: #{lstm_crf_forward.1} parent=0 // pred_region
    _
  $region57: #{lstm_crf_forward.1} parent=0 // pred_fallthru
    _
  %v52 = vld [vmem:[%s0] sm:$0xff]
  %v53 = vld [vmem:[%s0 + $0x8] sm:$0xff]
  %v54 = vld [vmem:[%s0 + $0x10] sm:$0xff]
  %v55 = vld [vmem:[%s0 + $0x18] sm:$0xff]
  %v56 = vld [vmem:[%s0 + $0x20] sm:$0xff]
  %v57 = vld [vmem:[%s0 + $0x28] sm:$0xff]
  %v58 = vld [vmem:[%s0 + $0x30] sm:$0xff]
  %v59 = vld [vmem:[%s0 + $0x38] sm:$0xff]
  %v60 = vpack.c.bf16 %v53, %v52
  %v61 = vpack.c.bf16 %v55, %v54
  %v62 = vpack.c.bf16 %v57, %v56
  %v63 = vpack.c.bf16 %v59, %v58
  %v64 = vld [vmem:[%s4] sm:$0xff]
  %v65 = vld [vmem:[%s4 + $0x8] sm:$0xff]
  %v66 = vld [vmem:[%s4 + $0x10] sm:$0xff]
  %v67 = vld [vmem:[%s4 + $0x18] sm:$0xff]
  %v68 = vld [vmem:[%s4 + $0x20] sm:$0xff]
  %v69 = vld [vmem:[%s4 + $0x28] sm:$0xff]
  %v70 = vld [vmem:[%s4 + $0x30] sm:$0xff]
  %v71 = vld [vmem:[%s4 + $0x38] sm:$0xff]
  %v72 = vld [vmem:[%s4 + $0x40] sm:$0xff]
  %v73 = vld [vmem:[%s4 + $0x48] sm:$0xff]
  %v74 = vld [vmem:[%s4 + $0x50] sm:$0xff]
  %v75 = vld [vmem:[%s4 + $0x58] sm:$0xff]
  %v76 = vld [vmem:[%s4 + $0x60] sm:$0xff]
  %v77 = vld [vmem:[%s4 + $0x68] sm:$0xff]
  %v78 = vld [vmem:[%s4 + $0x70] sm:$0xff]
  %v79 = vld [vmem:[%s4 + $0x78] sm:$0xff]
  %v80 = vld [vmem:[%s4 + $0x80] sm:$0xff]
  %v81 = vld [vmem:[%s4 + $0x88] sm:$0xff]
  %v82 = vld [vmem:[%s4 + $0x90] sm:$0xff]
  %v83 = vld [vmem:[%s4 + $0x98] sm:$0xff]
  %v84 = vld [vmem:[%s4 + $0xa0] sm:$0xff]
  %v85 = vld [vmem:[%s4 + $0xa8] sm:$0xff]
  %v86 = vld [vmem:[%s4 + $0xb0] sm:$0xff]
  %v87 = vld [vmem:[%s4 + $0xb8] sm:$0xff]
  %v88 = vld [vmem:[%s4 + $0xc0] sm:$0xff]
  %v89 = vld [vmem:[%s4 + $0xc8] sm:$0xff]
  %v90 = vld [vmem:[%s4 + $0xd0] sm:$0xff]
  %v91 = vld [vmem:[%s4 + $0xd8] sm:$0xff]
  %v92 = vld [vmem:[%s4 + $0xe0] sm:$0xff]
  %v93 = vld [vmem:[%s4 + $0xe8] sm:$0xff]
  %v94 = vld [vmem:[%s4 + $0xf0] sm:$0xff]
  %v95 = vld [vmem:[%s4 + $0xf8] sm:$0xff]
  %v96 = vld [vmem:[%s4 + $0x100] sm:$0xff]
  %v97 = vld [vmem:[%s4 + $0x108] sm:$0xff]
  %v98 = vld [vmem:[%s4 + $0x110] sm:$0xff]
  %v99 = vld [vmem:[%s4 + $0x118] sm:$0xff]
  %v100 = vld [vmem:[%s4 + $0x120] sm:$0xff]
  %v101 = vld [vmem:[%s4 + $0x128] sm:$0xff]
  %v102 = vld [vmem:[%s4 + $0x130] sm:$0xff]
  %v103 = vld [vmem:[%s4 + $0x138] sm:$0xff]
  %v104 = vld [vmem:[%s4 + $0x140] sm:$0xff]
  %v105 = vld [vmem:[%s4 + $0x148] sm:$0xff]
  %v106 = vld [vmem:[%s4 + $0x150] sm:$0xff]
  %v107 = vld [vmem:[%s4 + $0x158] sm:$0xff]
  %v108 = vld [vmem:[%s4 + $0x160] sm:$0xff]
  %v109 = vld [vmem:[%s4 + $0x168] sm:$0xff]
  %v110 = vld [vmem:[%s4 + $0x170] sm:$0xff]
  %v111 = vld [vmem:[%s4 + $0x178] sm:$0xff]
  %v112 = vld [vmem:[%s4 + $0x180] sm:$0xff]
  %v113 = vld [vmem:[%s4 + $0x188] sm:$0xff]
  %v114 = vld [vmem:[%s4 + $0x190] sm:$0xff]
  %v115 = vld [vmem:[%s4 + $0x198] sm:$0xff]
  %v116 = vld [vmem:[%s4 + $0x1a0] sm:$0xff]
  %v117 = vld [vmem:[%s4 + $0x1a8] sm:$0xff]
  %v118 = vld [vmem:[%s4 + $0x1b0] sm:$0xff]
  %v119 = vld [vmem:[%s4 + $0x1b8] sm:$0xff]
  %v120 = vld [vmem:[%s4 + $0x1c0] sm:$0xff]
  %v121 = vld [vmem:[%s4 + $0x1c8] sm:$0xff]
  %v122 = vld [vmem:[%s4 + $0x1d0] sm:$0xff]
  %v123 = vld [vmem:[%s4 + $0x1d8] sm:$0xff]
  %v124 = vld [vmem:[%s4 + $0x1e0] sm:$0xff]
  %v125 = vld [vmem:[%s4 + $0x1e8] sm:$0xff]
  %v126 = vld [vmem:[%s4 + $0x1f0] sm:$0xff]
  %v127 = vld [vmem:[%s4 + $0x1f8] sm:$0xff]
  %v128 = vld [vmem:[%s7] sm:$0xff]
  %v130 = vlaneseq
  %v131 = vshrl.u32 %v130, 7
  %v132 = vsub.s32 0, %v131
  %v133 = vrot.slane %v128, %v132
  %v134 = vlaneseq
  %v135 = vshrl.u32 %v134, 7
  %v136 = vsub.s32 1, %v135
  %v137 = vrot.slane %v128, %v136
  %v138 = vlaneseq
  %v139 = vshrl.u32 %v138, 7
  %v140 = vsub.s32 2, %v139
  %v141 = vrot.slane %v128, %v140
  %v142 = vlaneseq
  %v143 = vshrl.u32 %v142, 7
  %v144 = vsub.s32 3, %v143
  %v145 = vrot.slane %v128, %v144
  %v146 = vlaneseq
  %v147 = vshrl.u32 %v146, 7
  %v148 = vsub.s32 4, %v147
  %v149 = vrot.slane %v128, %v148
  %v150 = vlaneseq
  %v151 = vshrl.u32 %v150, 7
  %v152 = vsub.s32 5, %v151
  %v153 = vrot.slane %v128, %v152
  %v154 = vlaneseq
  %v155 = vshrl.u32 %v154, 7
  %v156 = vsub.s32 6, %v155
  %v157 = vrot.slane %v128, %v156
  %v158 = vlaneseq
  %v159 = vshrl.u32 %v158, 7
  %v160 = vsub.s32 7, %v159
  %v161 = vrot.slane %v128, %v160
  %v234 = vunpack.c.l.b16 %v64
  %v235 = vunpack.c.h.b16 %v64
  %v236 = vunpack.c.l.b16 %v65
  %v237 = vunpack.c.h.b16 %v65
  %v238 = vunpack.c.l.b16 %v66
  %v239 = vunpack.c.h.b16 %v66
  %v240 = vunpack.c.l.b16 %v67
  %v241 = vunpack.c.h.b16 %v67
  %v242 = vunpack.c.l.b16 %v68
  %v243 = vunpack.c.h.b16 %v68
  %v244 = vunpack.c.l.b16 %v69
  %v245 = vunpack.c.h.b16 %v69
  %v246 = vunpack.c.l.b16 %v70
  %v247 = vunpack.c.h.b16 %v70
  %v248 = vunpack.c.l.b16 %v71
  %v249 = vunpack.c.h.b16 %v71
  %v250 = vunpack.c.l.b16 %v72
  %v251 = vunpack.c.h.b16 %v72
  %v252 = vunpack.c.l.b16 %v73
  %v253 = vunpack.c.h.b16 %v73
  %v254 = vunpack.c.l.b16 %v74
  %v255 = vunpack.c.h.b16 %v74
  %v256 = vunpack.c.l.b16 %v75
  %v257 = vunpack.c.h.b16 %v75
  %v258 = vunpack.c.l.b16 %v76
  %v259 = vunpack.c.h.b16 %v76
  %v260 = vunpack.c.l.b16 %v77
  %v261 = vunpack.c.h.b16 %v77
  %v262 = vunpack.c.l.b16 %v78
  %v263 = vunpack.c.h.b16 %v78
  %v264 = vunpack.c.l.b16 %v79
  %v265 = vunpack.c.h.b16 %v79
  %v266 = vunpack.c.l.b16 %v80
  %v267 = vunpack.c.h.b16 %v80
  %v268 = vunpack.c.l.b16 %v81
  %v269 = vunpack.c.h.b16 %v81
  %v270 = vunpack.c.l.b16 %v82
  %v271 = vunpack.c.h.b16 %v82
  %v272 = vunpack.c.l.b16 %v83
  %v273 = vunpack.c.h.b16 %v83
  %v274 = vunpack.c.l.b16 %v84
  %v275 = vunpack.c.h.b16 %v84
  %v276 = vunpack.c.l.b16 %v85
  %v277 = vunpack.c.h.b16 %v85
  %v278 = vunpack.c.l.b16 %v86
  %v279 = vunpack.c.h.b16 %v86
  %v280 = vunpack.c.l.b16 %v87
  %v281 = vunpack.c.h.b16 %v87
  %v282 = vunpack.c.l.b16 %v88
  %v283 = vunpack.c.h.b16 %v88
  %v284 = vunpack.c.l.b16 %v89
  %v285 = vunpack.c.h.b16 %v89
  %v286 = vunpack.c.l.b16 %v90
  %v287 = vunpack.c.h.b16 %v90
  %v288 = vunpack.c.l.b16 %v91
  %v289 = vunpack.c.h.b16 %v91
  %v290 = vunpack.c.l.b16 %v92
  %v291 = vunpack.c.h.b16 %v92
  %v292 = vunpack.c.l.b16 %v93
  %v293 = vunpack.c.h.b16 %v93
  %v294 = vunpack.c.l.b16 %v94
  %v295 = vunpack.c.h.b16 %v94
  %v296 = vunpack.c.l.b16 %v95
  %v297 = vunpack.c.h.b16 %v95
  %v298 = vunpack.c.l.b16 %v96
  %v299 = vunpack.c.h.b16 %v96
  %v300 = vunpack.c.l.b16 %v97
  %v301 = vunpack.c.h.b16 %v97
  %v302 = vunpack.c.l.b16 %v98
  %v303 = vunpack.c.h.b16 %v98
  %v304 = vunpack.c.l.b16 %v99
  %v305 = vunpack.c.h.b16 %v99
  %v306 = vunpack.c.l.b16 %v100
  %v307 = vunpack.c.h.b16 %v100
  %v308 = vunpack.c.l.b16 %v101
  %v309 = vunpack.c.h.b16 %v101
  %v310 = vunpack.c.l.b16 %v102
  %v311 = vunpack.c.h.b16 %v102
  %v312 = vunpack.c.l.b16 %v103
  %v313 = vunpack.c.h.b16 %v103
  %v314 = vunpack.c.l.b16 %v104
  %v315 = vunpack.c.h.b16 %v104
  %v316 = vunpack.c.l.b16 %v105
  %v317 = vunpack.c.h.b16 %v105
  %v318 = vunpack.c.l.b16 %v106
  %v319 = vunpack.c.h.b16 %v106
  %v320 = vunpack.c.l.b16 %v107
  %v321 = vunpack.c.h.b16 %v107
  %v322 = vunpack.c.l.b16 %v108
  %v323 = vunpack.c.h.b16 %v108
  %v324 = vunpack.c.l.b16 %v109
  %v325 = vunpack.c.h.b16 %v109
  %v326 = vunpack.c.l.b16 %v110
  %v327 = vunpack.c.h.b16 %v110
  %v328 = vunpack.c.l.b16 %v111
  %v329 = vunpack.c.h.b16 %v111
  %v330 = vunpack.c.l.b16 %v112
  %v331 = vunpack.c.h.b16 %v112
  %v332 = vunpack.c.l.b16 %v113
  %v333 = vunpack.c.h.b16 %v113
  %v334 = vunpack.c.l.b16 %v114
  %v335 = vunpack.c.h.b16 %v114
  %v336 = vunpack.c.l.b16 %v115
  %v337 = vunpack.c.h.b16 %v115
  %v338 = vunpack.c.l.b16 %v116
  %v339 = vunpack.c.h.b16 %v116
  %v340 = vunpack.c.l.b16 %v117
  %v341 = vunpack.c.h.b16 %v117
  %v342 = vunpack.c.l.b16 %v118
  %v343 = vunpack.c.h.b16 %v118
  %v344 = vunpack.c.l.b16 %v119
  %v345 = vunpack.c.h.b16 %v119
  %v346 = vunpack.c.l.b16 %v120
  %v347 = vunpack.c.h.b16 %v120
  %v348 = vunpack.c.l.b16 %v121
  %v349 = vunpack.c.h.b16 %v121
  %v350 = vunpack.c.l.b16 %v122
  %v351 = vunpack.c.h.b16 %v122
  %v352 = vunpack.c.l.b16 %v123
  %v353 = vunpack.c.h.b16 %v123
  %v354 = vunpack.c.l.b16 %v124
  %v355 = vunpack.c.h.b16 %v124
  %v356 = vunpack.c.l.b16 %v125
  %v357 = vunpack.c.h.b16 %v125
  %v358 = vunpack.c.l.b16 %v126
  %v359 = vunpack.c.h.b16 %v126
  %v360 = vunpack.c.l.b16 %v127
  %v361 = vunpack.c.h.b16 %v127
  %v362 = vpack.c.b16 %v242, %v234
  %v363 = vpack.c.b16 %v243, %v235
  %v364 = vpack.c.b16 %v244, %v236
  %v365 = vpack.c.b16 %v245, %v237
  %v366 = vpack.c.b16 %v246, %v238
  %v367 = vpack.c.b16 %v247, %v239
  %v368 = vpack.c.b16 %v248, %v240
  %v369 = vpack.c.b16 %v249, %v241
  %v370 = vpack.c.b16 %v258, %v250
  %v371 = vpack.c.b16 %v259, %v251
  %v372 = vpack.c.b16 %v260, %v252
  %v373 = vpack.c.b16 %v261, %v253
  %v374 = vpack.c.b16 %v262, %v254
  %v375 = vpack.c.b16 %v263, %v255
  %v376 = vpack.c.b16 %v264, %v256
  %v377 = vpack.c.b16 %v265, %v257
  %v378 = vpack.c.b16 %v274, %v266
  %v379 = vpack.c.b16 %v275, %v267
  %v380 = vpack.c.b16 %v276, %v268
  %v381 = vpack.c.b16 %v277, %v269
  %v382 = vpack.c.b16 %v278, %v270
  %v383 = vpack.c.b16 %v279, %v271
  %v384 = vpack.c.b16 %v280, %v272
  %v385 = vpack.c.b16 %v281, %v273
  %v386 = vpack.c.b16 %v290, %v282
  %v387 = vpack.c.b16 %v291, %v283
  %v388 = vpack.c.b16 %v292, %v284
  %v389 = vpack.c.b16 %v293, %v285
  %v390 = vpack.c.b16 %v294, %v286
  %v391 = vpack.c.b16 %v295, %v287
  %v392 = vpack.c.b16 %v296, %v288
  %v393 = vpack.c.b16 %v297, %v289
  %v394 = vpack.c.b16 %v306, %v298
  %v395 = vpack.c.b16 %v307, %v299
  %v396 = vpack.c.b16 %v308, %v300
  %v397 = vpack.c.b16 %v309, %v301
  %v398 = vpack.c.b16 %v310, %v302
  %v399 = vpack.c.b16 %v311, %v303
  %v400 = vpack.c.b16 %v312, %v304
  %v401 = vpack.c.b16 %v313, %v305
  %v402 = vpack.c.b16 %v322, %v314
  %v403 = vpack.c.b16 %v323, %v315
  %v404 = vpack.c.b16 %v324, %v316
  %v405 = vpack.c.b16 %v325, %v317
  %v406 = vpack.c.b16 %v326, %v318
  %v407 = vpack.c.b16 %v327, %v319
  %v408 = vpack.c.b16 %v328, %v320
  %v409 = vpack.c.b16 %v329, %v321
  %v410 = vpack.c.b16 %v338, %v330
  %v411 = vpack.c.b16 %v339, %v331
  %v412 = vpack.c.b16 %v340, %v332
  %v413 = vpack.c.b16 %v341, %v333
  %v414 = vpack.c.b16 %v342, %v334
  %v415 = vpack.c.b16 %v343, %v335
  %v416 = vpack.c.b16 %v344, %v336
  %v417 = vpack.c.b16 %v345, %v337
  %v418 = vpack.c.b16 %v354, %v346
  %v419 = vpack.c.b16 %v355, %v347
  %v420 = vpack.c.b16 %v356, %v348
  %v421 = vpack.c.b16 %v357, %v349
  %v422 = vpack.c.b16 %v358, %v350
  %v423 = vpack.c.b16 %v359, %v351
  %v424 = vpack.c.b16 %v360, %v352
  %v425 = vpack.c.b16 %v361, %v353
  %490 = vmatprep.subr.bf16.mxu0 %v419
  %491 = vmatpush1.bf16.msra.mxu0 %v418
  %492 = vmatprep.subr.bf16.mxu0 %v411
  %493 = vmatpush1.bf16.msra.mxu0 %v410
  %494 = vmatprep.subr.bf16.mxu0 %v403
  %495 = vmatpush1.bf16.msra.mxu0 %v402
  %496 = vmatprep.subr.bf16.mxu0 %v395
  %497 = vmatpush1.bf16.msra.mxu0 %v394
  %498 = vmatprep.subr.bf16.mxu0 %v387
  %499 = vmatpush1.bf16.msra.mxu0 %v386
  %500 = vmatprep.subr.bf16.mxu0 %v379
  %501 = vmatpush1.bf16.msra.mxu0 %v378
  %502 = vmatprep.subr.bf16.mxu0 %v371
  %503 = vmatpush1.bf16.msra.mxu0 %v370
  %504 = vmatprep.subr.bf16.mxu0 %v363
  %505 = vmatpush1.bf16.msra.mxu0 %v362
  %506 = vmatprep.subr.bf16.mxu0 0
  %507 = vmatpush2.bf16.msra.mxu0 0
  %508 = vmatprep.subr.bf16.mxu0 0
  %509 = vmatpush2.bf16.msra.mxu0 0
  %510 = vmatprep.subr.bf16.mxu0 0
  %511 = vmatpush2.bf16.msra.mxu0 0
  %512 = vmatprep.subr.bf16.mxu0 0
  %513 = vmatpush2.bf16.msra.mxu0 0
  %514 = vmatprep.subr.bf16.mxu0 0
  %515 = vmatpush2.bf16.msra.mxu0 0
  %516 = vmatprep.subr.bf16.mxu0 0
  %517 = vmatpush2.bf16.msra.mxu0 0
  %518 = vmatprep.subr.bf16.mxu0 0
  %519 = vmatpush2.bf16.msra.mxu0 0
  %520 = vmatprep.subr.bf16.mxu0 0
  %521 = vmatpush2.bf16.msra.mxu0 0
  %522 = vmatprep.mubr.bf16.mxu0 0
  %523 = vmatmul.mubr.bf16.gmra.mxu0 %v60
  %v524 = vpop.f32.mrf.mxu0
  %v525 = vadd.f32 %v133, %v524
  %v526 = vpop.f32.mrf.mxu0
  %v527 = vadd.f32 %v137, %v526
  %v528 = vpop.f32.mrf.mxu0
  %v529 = vadd.f32 %v133, %v528
  %v530 = vpop.f32.mrf.mxu0
  %v531 = vadd.f32 %v137, %v530
  %532 = vmatprep.mubr.bf16.mxu0 0
  %533 = vmatmul.mubr.bf16.gmra.mxu0 %v61
  %v534 = vpop.f32.mrf.mxu0
  %v535 = vadd.f32 %v133, %v534
  %v536 = vpop.f32.mrf.mxu0
  %v537 = vadd.f32 %v137, %v536
  %v538 = vpop.f32.mrf.mxu0
  %v539 = vadd.f32 %v133, %v538
  %v540 = vpop.f32.mrf.mxu0
  %v541 = vadd.f32 %v137, %v540
  %542 = vmatprep.mubr.bf16.mxu0 0
  %543 = vmatmul.mubr.bf16.gmra.mxu0 %v62
  %v544 = vpop.f32.mrf.mxu0
  %v545 = vadd.f32 %v133, %v544
  %v546 = vpop.f32.mrf.mxu0
  %v547 = vadd.f32 %v137, %v546
  %v548 = vpop.f32.mrf.mxu0
  %v549 = vadd.f32 %v133, %v548
  %v550 = vpop.f32.mrf.mxu0
  %v551 = vadd.f32 %v137, %v550
  %552 = vmatprep.mubr.bf16.mxu0 0
  %553 = vmatmul.mubr.bf16.gmra.mxu0 %v63
  %v554 = vpop.f32.mrf.mxu0
  %v555 = vadd.f32 %v133, %v554
  %v556 = vpop.f32.mrf.mxu0
  %v557 = vadd.f32 %v137, %v556
  %v558 = vpop.f32.mrf.mxu0
  %v559 = vadd.f32 %v133, %v558
  %v560 = vpop.f32.mrf.mxu0
  %v561 = vadd.f32 %v137, %v560
  %562 = vdwg.mxu0
  %563 = vmatprep.subr.bf16.mxu0 %v421
  %564 = vmatpush1.bf16.msra.mxu0 %v420
  %565 = vmatprep.subr.bf16.mxu0 %v413
  %566 = vmatpush1.bf16.msra.mxu0 %v412
  %567 = vmatprep.subr.bf16.mxu0 %v405
  %568 = vmatpush1.bf16.msra.mxu0 %v404
  %569 = vmatprep.subr.bf16.mxu0 %v397
  %570 = vmatpush1.bf16.msra.mxu0 %v396
  %571 = vmatprep.subr.bf16.mxu0 %v389
  %572 = vmatpush1.bf16.msra.mxu0 %v388
  %573 = vmatprep.subr.bf16.mxu0 %v381
  %574 = vmatpush1.bf16.msra.mxu0 %v380
  %575 = vmatprep.subr.bf16.mxu0 %v373
  %576 = vmatpush1.bf16.msra.mxu0 %v372
  %577 = vmatprep.subr.bf16.mxu0 %v365
  %578 = vmatpush1.bf16.msra.mxu0 %v364
  %579 = vmatprep.subr.bf16.mxu0 0
  %580 = vmatpush2.bf16.msra.mxu0 0
  %581 = vmatprep.subr.bf16.mxu0 0
  %582 = vmatpush2.bf16.msra.mxu0 0
  %583 = vmatprep.subr.bf16.mxu0 0
  %584 = vmatpush2.bf16.msra.mxu0 0
  %585 = vmatprep.subr.bf16.mxu0 0
  %586 = vmatpush2.bf16.msra.mxu0 0
  %587 = vmatprep.subr.bf16.mxu0 0
  %588 = vmatpush2.bf16.msra.mxu0 0
  %589 = vmatprep.subr.bf16.mxu0 0
  %590 = vmatpush2.bf16.msra.mxu0 0
  %591 = vmatprep.subr.bf16.mxu0 0
  %592 = vmatpush2.bf16.msra.mxu0 0
  %593 = vmatprep.subr.bf16.mxu0 0
  %594 = vmatpush2.bf16.msra.mxu0 0
  %595 = vmatprep.mubr.bf16.mxu0 0
  %596 = vmatmul.mubr.bf16.gmra.mxu0 %v60
  %v597 = vpop.f32.mrf.mxu0
  %v598 = vadd.f32 %v141, %v597
  %v599 = vpop.f32.mrf.mxu0
  %v600 = vadd.f32 %v145, %v599
  %v601 = vpop.f32.mrf.mxu0
  %v602 = vadd.f32 %v141, %v601
  %v603 = vpop.f32.mrf.mxu0
  %v604 = vadd.f32 %v145, %v603
  %605 = vmatprep.mubr.bf16.mxu0 0
  %606 = vmatmul.mubr.bf16.gmra.mxu0 %v61
  %v607 = vpop.f32.mrf.mxu0
  %v608 = vadd.f32 %v141, %v607
  %v609 = vpop.f32.mrf.mxu0
  %v610 = vadd.f32 %v145, %v609
  %v611 = vpop.f32.mrf.mxu0
  %v612 = vadd.f32 %v141, %v611
  %v613 = vpop.f32.mrf.mxu0
  %v614 = vadd.f32 %v145, %v613
  %615 = vmatprep.mubr.bf16.mxu0 0
  %616 = vmatmul.mubr.bf16.gmra.mxu0 %v62
  %v617 = vpop.f32.mrf.mxu0
  %v618 = vadd.f32 %v141, %v617
  %v619 = vpop.f32.mrf.mxu0
  %v620 = vadd.f32 %v145, %v619
  %v621 = vpop.f32.mrf.mxu0
  %v622 = vadd.f32 %v141, %v621
  %v623 = vpop.f32.mrf.mxu0
  %v624 = vadd.f32 %v145, %v623
  %625 = vmatprep.mubr.bf16.mxu0 0
  %626 = vmatmul.mubr.bf16.gmra.mxu0 %v63
  %v627 = vpop.f32.mrf.mxu0
  %v628 = vadd.f32 %v141, %v627
  %v629 = vpop.f32.mrf.mxu0
  %v630 = vadd.f32 %v145, %v629
  %v631 = vpop.f32.mrf.mxu0
  %v632 = vadd.f32 %v141, %v631
  %v633 = vpop.f32.mrf.mxu0
  %v634 = vadd.f32 %v145, %v633
  %635 = vdwg.mxu0
  %636 = vmatprep.subr.bf16.mxu0 %v423
  %637 = vmatpush1.bf16.msra.mxu0 %v422
  %638 = vmatprep.subr.bf16.mxu0 %v415
  %639 = vmatpush1.bf16.msra.mxu0 %v414
  %640 = vmatprep.subr.bf16.mxu0 %v407
  %641 = vmatpush1.bf16.msra.mxu0 %v406
  %642 = vmatprep.subr.bf16.mxu0 %v399
  %643 = vmatpush1.bf16.msra.mxu0 %v398
  %644 = vmatprep.subr.bf16.mxu0 %v391
  %645 = vmatpush1.bf16.msra.mxu0 %v390
  %646 = vmatprep.subr.bf16.mxu0 %v383
  %647 = vmatpush1.bf16.msra.mxu0 %v382
  %648 = vmatprep.subr.bf16.mxu0 %v375
  %649 = vmatpush1.bf16.msra.mxu0 %v374
  %650 = vmatprep.subr.bf16.mxu0 %v367
  %651 = vmatpush1.bf16.msra.mxu0 %v366
  %652 = vmatprep.subr.bf16.mxu0 0
  %653 = vmatpush2.bf16.msra.mxu0 0
  %654 = vmatprep.subr.bf16.mxu0 0
  %655 = vmatpush2.bf16.msra.mxu0 0
  %656 = vmatprep.subr.bf16.mxu0 0
  %657 = vmatpush2.bf16.msra.mxu0 0
  %658 = vmatprep.subr.bf16.mxu0 0
  %659 = vmatpush2.bf16.msra.mxu0 0
  %660 = vmatprep.subr.bf16.mxu0 0
  %661 = vmatpush2.bf16.msra.mxu0 0
  %662 = vmatprep.subr.bf16.mxu0 0
  %663 = vmatpush2.bf16.msra.mxu0 0
  %664 = vmatprep.subr.bf16.mxu0 0
  %665 = vmatpush2.bf16.msra.mxu0 0
  %666 = vmatprep.subr.bf16.mxu0 0
  %667 = vmatpush2.bf16.msra.mxu0 0
  %668 = vmatprep.mubr.bf16.mxu0 0
  %669 = vmatmul.mubr.bf16.gmra.mxu0 %v60
  %v670 = vpop.f32.mrf.mxu0
  %v671 = vadd.f32 %v149, %v670
  %v672 = vpop.f32.mrf.mxu0
  %v673 = vadd.f32 %v153, %v672
  %v674 = vpop.f32.mrf.mxu0
  %v675 = vadd.f32 %v149, %v674
  %v676 = vpop.f32.mrf.mxu0
  %v677 = vadd.f32 %v153, %v676
  %678 = vmatprep.mubr.bf16.mxu0 0
  %679 = vmatmul.mubr.bf16.gmra.mxu0 %v61
  %v680 = vpop.f32.mrf.mxu0
  %v681 = vadd.f32 %v149, %v680
  %v682 = vpop.f32.mrf.mxu0
  %v683 = vadd.f32 %v153, %v682
  %v684 = vpop.f32.mrf.mxu0
  %v685 = vadd.f32 %v149, %v684
  %v686 = vpop.f32.mrf.mxu0
  %v687 = vadd.f32 %v153, %v686
  %688 = vmatprep.mubr.bf16.mxu0 0
  %689 = vmatmul.mubr.bf16.gmra.mxu0 %v62
  %v690 = vpop.f32.mrf.mxu0
  %v691 = vadd.f32 %v149, %v690
  %v692 = vpop.f32.mrf.mxu0
  %v693 = vadd.f32 %v153, %v692
  %v694 = vpop.f32.mrf.mxu0
  %v695 = vadd.f32 %v149, %v694
  %v696 = vpop.f32.mrf.mxu0
  %v697 = vadd.f32 %v153, %v696
  %698 = vmatprep.mubr.bf16.mxu0 0
  %699 = vmatmul.mubr.bf16.gmra.mxu0 %v63
  %v700 = vpop.f32.mrf.mxu0
  %v701 = vadd.f32 %v149, %v700
  %v702 = vpop.f32.mrf.mxu0
  %v703 = vadd.f32 %v153, %v702
  %v704 = vpop.f32.mrf.mxu0
  %v705 = vadd.f32 %v149, %v704
  %v706 = vpop.f32.mrf.mxu0
  %v707 = vadd.f32 %v153, %v706
  %708 = vdwg.mxu0
  %709 = vmatprep.subr.bf16.mxu0 %v425
  %710 = vmatpush1.bf16.msra.mxu0 %v424
  %711 = vmatprep.subr.bf16.mxu0 %v417
  %712 = vmatpush1.bf16.msra.mxu0 %v416
  %713 = vmatprep.subr.bf16.mxu0 %v409
  %714 = vmatpush1.bf16.msra.mxu0 %v408
  %715 = vmatprep.subr.bf16.mxu0 %v401
  %716 = vmatpush1.bf16.msra.mxu0 %v400
  %717 = vmatprep.subr.bf16.mxu0 %v393
  %718 = vmatpush1.bf16.msra.mxu0 %v392
  %719 = vmatprep.subr.bf16.mxu0 %v385
  %720 = vmatpush1.bf16.msra.mxu0 %v384
  %721 = vmatprep.subr.bf16.mxu0 %v377
  %722 = vmatpush1.bf16.msra.mxu0 %v376
  %723 = vmatprep.subr.bf16.mxu0 %v369
  %724 = vmatpush1.bf16.msra.mxu0 %v368
  %725 = vmatprep.subr.bf16.mxu0 0
  %726 = vmatpush2.bf16.msra.mxu0 0
  %727 = vmatprep.subr.bf16.mxu0 0
  %728 = vmatpush2.bf16.msra.mxu0 0
  %729 = vmatprep.subr.bf16.mxu0 0
  %730 = vmatpush2.bf16.msra.mxu0 0
  %731 = vmatprep.subr.bf16.mxu0 0
  %732 = vmatpush2.bf16.msra.mxu0 0
  %733 = vmatprep.subr.bf16.mxu0 0
  %734 = vmatpush2.bf16.msra.mxu0 0
  %735 = vmatprep.subr.bf16.mxu0 0
  %736 = vmatpush2.bf16.msra.mxu0 0
  %737 = vmatprep.subr.bf16.mxu0 0
  %738 = vmatpush2.bf16.msra.mxu0 0
  %739 = vmatprep.subr.bf16.mxu0 0
  %740 = vmatpush2.bf16.msra.mxu0 0
  %741 = vmatprep.mubr.bf16.mxu0 0
  %742 = vmatmul.mubr.bf16.gmra.mxu0 %v60
  %v743 = vpop.f32.mrf.mxu0
  %v744 = vadd.f32 %v157, %v743
  %v745 = vpop.f32.mrf.mxu0
  %v746 = vadd.f32 %v161, %v745
  %v747 = vpop.f32.mrf.mxu0
  %v748 = vadd.f32 %v157, %v747
  %v749 = vpop.f32.mrf.mxu0
  %v750 = vadd.f32 %v161, %v749
  %751 = vmatprep.mubr.bf16.mxu0 0
  %752 = vmatmul.mubr.bf16.gmra.mxu0 %v61
  %v753 = vpop.f32.mrf.mxu0
  %v754 = vadd.f32 %v157, %v753
  %v755 = vpop.f32.mrf.mxu0
  %v756 = vadd.f32 %v161, %v755
  %v757 = vpop.f32.mrf.mxu0
  %v758 = vadd.f32 %v157, %v757
  %v759 = vpop.f32.mrf.mxu0
  %v760 = vadd.f32 %v161, %v759
  %761 = vmatprep.mubr.bf16.mxu0 0
  %762 = vmatmul.mubr.bf16.gmra.mxu0 %v62
  %v763 = vpop.f32.mrf.mxu0
  %v764 = vadd.f32 %v157, %v763
  %v765 = vpop.f32.mrf.mxu0
  %v766 = vadd.f32 %v161, %v765
  %v767 = vpop.f32.mrf.mxu0
  %v768 = vadd.f32 %v157, %v767
  %v769 = vpop.f32.mrf.mxu0
  %v770 = vadd.f32 %v161, %v769
  %771 = vmatprep.mubr.bf16.mxu0 0
  %772 = vmatmul.mubr.bf16.gmra.mxu0 %v63
  %v773 = vpop.f32.mrf.mxu0
  %v774 = vadd.f32 %v157, %v773
  %v775 = vpop.f32.mrf.mxu0
  %v776 = vadd.f32 %v161, %v775
  %v777 = vpop.f32.mrf.mxu0
  %v778 = vadd.f32 %v157, %v777
  %v779 = vpop.f32.mrf.mxu0
  %v780 = vadd.f32 %v161, %v779
  %781 = vdwg.mxu0
  %782 = vst [vmem:[#allocation2] sm:$0xff] %v525
  %783 = vst [vmem:[#allocation2 + $0x8] sm:$0xff] %v527
  %784 = vst [vmem:[#allocation2 + $0x10] sm:$0xff] %v598
  %785 = vst [vmem:[#allocation2 + $0x18] sm:$0xff] %v600
  %786 = vst [vmem:[#allocation2 + $0x20] sm:$0xff] %v529
  %787 = vst [vmem:[#allocation2 + $0x28] sm:$0xff] %v531
  %788 = vst [vmem:[#allocation2 + $0x30] sm:$0xff] %v602
  %789 = vst [vmem:[#allocation2 + $0x38] sm:$0xff] %v604
  %790 = vst [vmem:[#allocation2 + $0x40] sm:$0xff] %v535
  %791 = vst [vmem:[#allocation2 + $0x48] sm:$0xff] %v537
  %792 = vst [vmem:[#allocation2 + $0x50] sm:$0xff] %v608
  %793 = vst [vmem:[#allocation2 + $0x58] sm:$0xff] %v610
  %794 = vst [vmem:[#allocation2 + $0x60] sm:$0xff] %v539
  %795 = vst [vmem:[#allocation2 + $0x68] sm:$0xff] %v541
  %796 = vst [vmem:[#allocation2 + $0x70] sm:$0xff] %v612
  %797 = vst [vmem:[#allocation2 + $0x78] sm:$0xff] %v614
  %798 = vst [vmem:[#allocation2 + $0x80] sm:$0xff] %v545
  %799 = vst [vmem:[#allocation2 + $0x88] sm:$0xff] %v547
  %800 = vst [vmem:[#allocation2 + $0x90] sm:$0xff] %v618
  %801 = vst [vmem:[#allocation2 + $0x98] sm:$0xff] %v620
  %802 = vst [vmem:[#allocation2 + $0xa0] sm:$0xff] %v549
  %803 = vst [vmem:[#allocation2 + $0xa8] sm:$0xff] %v551
  %804 = vst [vmem:[#allocation2 + $0xb0] sm:$0xff] %v622
  %805 = vst [vmem:[#allocation2 + $0xb8] sm:$0xff] %v624
  %806 = vst [vmem:[#allocation2 + $0xc0] sm:$0xff] %v555
  %807 = vst [vmem:[#allocation2 + $0xc8] sm:$0xff] %v557
  %808 = vst [vmem:[#allocation2 + $0xd0] sm:$0xff] %v628
  %809 = vst [vmem:[#allocation2 + $0xd8] sm:$0xff] %v630
  %810 = vst [vmem:[#allocation2 + $0xe0] sm:$0xff] %v559
  %811 = vst [vmem:[#allocation2 + $0xe8] sm:$0xff] %v561
  %812 = vst [vmem:[#allocation2 + $0xf0] sm:$0xff] %v632
  %813 = vst [vmem:[#allocation2 + $0xf8] sm:$0xff] %v634
  %814 = vst [vmem:[#allocation3] sm:$0xff] %v671
  %815 = vst [vmem:[#allocation3 + $0x8] sm:$0xff] %v673
  %816 = vst [vmem:[#allocation3 + $0x10] sm:$0xff] %v744
  %817 = vst [vmem:[#allocation3 + $0x18] sm:$0xff] %v746
  %818 = vst [vmem:[#allocation3 + $0x20] sm:$0xff] %v675
  %819 = vst [vmem:[#allocation3 + $0x28] sm:$0xff] %v677
  %820 = vst [vmem:[#allocation3 + $0x30] sm:$0xff] %v748
  %821 = vst [vmem:[#allocation3 + $0x38] sm:$0xff] %v750
  %822 = vst [vmem:[#allocation3 + $0x40] sm:$0xff] %v681
  %823 = vst [vmem:[#allocation3 + $0x48] sm:$0xff] %v683
  %824 = vst [vmem:[#allocation3 + $0x50] sm:$0xff] %v754
  %825 = vst [vmem:[#allocation3 + $0x58] sm:$0xff] %v756
  %826 = vst [vmem:[#allocation3 + $0x60] sm:$0xff] %v685
  %827 = vst [vmem:[#allocation3 + $0x68] sm:$0xff] %v687
  %828 = vst [vmem:[#allocation3 + $0x70] sm:$0xff] %v758
  %829 = vst [vmem:[#allocation3 + $0x78] sm:$0xff] %v760
  %830 = vst [vmem:[#allocation3 + $0x80] sm:$0xff] %v691
  %831 = vst [vmem:[#allocation3 + $0x88] sm:$0xff] %v693
  %832 = vst [vmem:[#allocation3 + $0x90] sm:$0xff] %v764
  %833 = vst [vmem:[#allocation3 + $0x98] sm:$0xff] %v766
  %834 = vst [vmem:[#allocation3 + $0xa0] sm:$0xff] %v695
  %835 = vst [vmem:[#allocation3 + $0xa8] sm:$0xff] %v697
  %836 = vst [vmem:[#allocation3 + $0xb0] sm:$0xff] %v768
  %837 = vst [vmem:[#allocation3 + $0xb8] sm:$0xff] %v770
  %838 = vst [vmem:[#allocation3 + $0xc0] sm:$0xff] %v701
  %839 = vst [vmem:[#allocation3 + $0xc8] sm:$0xff] %v703
  %840 = vst [vmem:[#allocation3 + $0xd0] sm:$0xff] %v774
  %841 = vst [vmem:[#allocation3 + $0xd8] sm:$0xff] %v776
  %842 = vst [vmem:[#allocation3 + $0xe0] sm:$0xff] %v705
  %843 = vst [vmem:[#allocation3 + $0xe8] sm:$0xff] %v707
  %844 = vst [vmem:[#allocation3 + $0xf0] sm:$0xff] %v778
  %845 = vst [vmem:[#allocation3 + $0xf8] sm:$0xff] %v780
  %v846 = vld [vmem:[%s5] sm:$0xff]
  %v847 = vld [vmem:[%s5 + $0x8] sm:$0xff]
  %v848 = vld [vmem:[%s5 + $0x10] sm:$0xff]
  %v849 = vld [vmem:[%s5 + $0x18] sm:$0xff]
  %v850 = vld [vmem:[%s5 + $0x20] sm:$0xff]
  %v851 = vld [vmem:[%s5 + $0x28] sm:$0xff]
  %v852 = vld [vmem:[%s5 + $0x30] sm:$0xff]
  %v853 = vld [vmem:[%s5 + $0x38] sm:$0xff]
  %v854 = vld [vmem:[%s5 + $0x40] sm:$0xff]
  %v855 = vld [vmem:[%s5 + $0x48] sm:$0xff]
  %v856 = vld [vmem:[%s5 + $0x50] sm:$0xff]
  %v857 = vld [vmem:[%s5 + $0x58] sm:$0xff]
  %v858 = vld [vmem:[%s5 + $0x60] sm:$0xff]
  %v859 = vld [vmem:[%s5 + $0x68] sm:$0xff]
  %v860 = vld [vmem:[%s5 + $0x70] sm:$0xff]
  %v861 = vld [vmem:[%s5 + $0x78] sm:$0xff]
  %v862 = vld [vmem:[%s5 + $0x80] sm:$0xff]
  %v863 = vld [vmem:[%s5 + $0x88] sm:$0xff]
  %v864 = vld [vmem:[%s5 + $0x90] sm:$0xff]
  %v865 = vld [vmem:[%s5 + $0x98] sm:$0xff]
  %v866 = vld [vmem:[%s5 + $0xa0] sm:$0xff]
  %v867 = vld [vmem:[%s5 + $0xa8] sm:$0xff]
  %v868 = vld [vmem:[%s5 + $0xb0] sm:$0xff]
  %v869 = vld [vmem:[%s5 + $0xb8] sm:$0xff]
  %v870 = vld [vmem:[%s5 + $0xc0] sm:$0xff]
  %v871 = vld [vmem:[%s5 + $0xc8] sm:$0xff]
  %v872 = vld [vmem:[%s5 + $0xd0] sm:$0xff]
  %v873 = vld [vmem:[%s5 + $0xd8] sm:$0xff]
  %v874 = vld [vmem:[%s5 + $0xe0] sm:$0xff]
  %v875 = vld [vmem:[%s5 + $0xe8] sm:$0xff]
  %v876 = vld [vmem:[%s5 + $0xf0] sm:$0xff]
  %v877 = vld [vmem:[%s5 + $0xf8] sm:$0xff]
  %v878 = vld [vmem:[%s6] sm:$0xff]
  %v879 = vld [vmem:[%s6 + $0x8] sm:$0xff]
  %v880 = vld [vmem:[%s6 + $0x10] sm:$0xff]
  %v881 = vld [vmem:[%s6 + $0x18] sm:$0xff]
  %v882 = vld [vmem:[%s6 + $0x20] sm:$0xff]
  %v883 = vld [vmem:[%s6 + $0x28] sm:$0xff]
  %v884 = vld [vmem:[%s6 + $0x30] sm:$0xff]
  %v885 = vld [vmem:[%s6 + $0x38] sm:$0xff]
  %v886 = vld [vmem:[%s6 + $0x40] sm:$0xff]
  %v887 = vld [vmem:[%s6 + $0x48] sm:$0xff]
  %v888 = vld [vmem:[%s6 + $0x50] sm:$0xff]
  %v889 = vld [vmem:[%s6 + $0x58] sm:$0xff]
  %v890 = vld [vmem:[%s6 + $0x60] sm:$0xff]
  %v891 = vld [vmem:[%s6 + $0x68] sm:$0xff]
  %v892 = vld [vmem:[%s6 + $0x70] sm:$0xff]
  %v893 = vld [vmem:[%s6 + $0x78] sm:$0xff]
  %v894 = vld [vmem:[%s6 + $0x80] sm:$0xff]
  %v895 = vld [vmem:[%s6 + $0x88] sm:$0xff]
  %v896 = vld [vmem:[%s6 + $0x90] sm:$0xff]
  %v897 = vld [vmem:[%s6 + $0x98] sm:$0xff]
  %v898 = vld [vmem:[%s6 + $0xa0] sm:$0xff]
  %v899 = vld [vmem:[%s6 + $0xa8] sm:$0xff]
  %v900 = vld [vmem:[%s6 + $0xb0] sm:$0xff]
  %v901 = vld [vmem:[%s6 + $0xb8] sm:$0xff]
  %v902 = vld [vmem:[%s6 + $0xc0] sm:$0xff]
  %v903 = vld [vmem:[%s6 + $0xc8] sm:$0xff]
  %v904 = vld [vmem:[%s6 + $0xd0] sm:$0xff]
  %v905 = vld [vmem:[%s6 + $0xd8] sm:$0xff]
  %v906 = vld [vmem:[%s6 + $0xe0] sm:$0xff]
  %v907 = vld [vmem:[%s6 + $0xe8] sm:$0xff]
  %v908 = vld [vmem:[%s6 + $0xf0] sm:$0xff]
  %v909 = vld [vmem:[%s6 + $0xf8] sm:$0xff]
  loop: start=0, step=1, limit=8
  $region58: #{lstm_crf_forward.1} parent=0 // loop_pre_header
    _
  $region59: #{lstm_crf_forward.1} parent=0 // loop_header
    %s911 = sphi 0, %s915
    %p912 = scmp.ge.s32.totalorder %s911, 8
    %v916 = vphi 0.0, %v1452
    %v917 = vphi 0.0, %v1450
    %v918 = vphi 0.0, %v1476
    %v919 = vphi 0.0, %v1474
  $region60: #{lstm_crf_forward.1} parent=0 // loop_header_branch
    %914 = sbr.rel (%p912) target = $region64
  $region61: #{lstm_crf_forward.1} parent=0 // loop_body
    %s920 = ssub.s32 7, %s911
    %s921 = smul.u32 %s911, 4
    %s922 = smul.addr %s921, 8
    %s923 = scalar_lea.vmem [#allocation2], %s922
    %v924 = vld [vmem:[%s923] sm:$0xff]
    %v925 = vld [vmem:[%s923 + $0x8] sm:$0xff]
    %v926 = vld [vmem:[%s923 + $0x10] sm:$0xff]
    %v927 = vld [vmem:[%s923 + $0x18] sm:$0xff]
    %v928 = vpack.c.bf16 %v916, %v916
    %v961 = vunpack.c.l.b16 %v846
    %v962 = vunpack.c.h.b16 %v846
    %v963 = vunpack.c.l.b16 %v847
    %v964 = vunpack.c.h.b16 %v847
    %v965 = vunpack.c.l.b16 %v848
    %v966 = vunpack.c.h.b16 %v848
    %v967 = vunpack.c.l.b16 %v849
    %v968 = vunpack.c.h.b16 %v849
    %v969 = vunpack.c.l.b16 %v850
    %v970 = vunpack.c.h.b16 %v850
    %v971 = vunpack.c.l.b16 %v851
    %v972 = vunpack.c.h.b16 %v851
    %v973 = vunpack.c.l.b16 %v852
    %v974 = vunpack.c.h.b16 %v852
    %v975 = vunpack.c.l.b16 %v853
    %v976 = vunpack.c.h.b16 %v853
    %v977 = vunpack.c.l.b16 %v854
    %v978 = vunpack.c.h.b16 %v854
    %v979 = vunpack.c.l.b16 %v855
    %v980 = vunpack.c.h.b16 %v855
    %v981 = vunpack.c.l.b16 %v856
    %v982 = vunpack.c.h.b16 %v856
    %v983 = vunpack.c.l.b16 %v857
    %v984 = vunpack.c.h.b16 %v857
    %v985 = vunpack.c.l.b16 %v858
    %v986 = vunpack.c.h.b16 %v858
    %v987 = vunpack.c.l.b16 %v859
    %v988 = vunpack.c.h.b16 %v859
    %v989 = vunpack.c.l.b16 %v860
    %v990 = vunpack.c.h.b16 %v860
    %v991 = vunpack.c.l.b16 %v861
    %v992 = vunpack.c.h.b16 %v861
    %v993 = vunpack.c.l.b16 %v862
    %v994 = vunpack.c.h.b16 %v862
    %v995 = vunpack.c.l.b16 %v863
    %v996 = vunpack.c.h.b16 %v863
    %v997 = vunpack.c.l.b16 %v864
    %v998 = vunpack.c.h.b16 %v864
    %v999 = vunpack.c.l.b16 %v865
    %v1000 = vunpack.c.h.b16 %v865
    %v1001 = vunpack.c.l.b16 %v866
    %v1002 = vunpack.c.h.b16 %v866
    %v1003 = vunpack.c.l.b16 %v867
    %v1004 = vunpack.c.h.b16 %v867
    %v1005 = vunpack.c.l.b16 %v868
    %v1006 = vunpack.c.h.b16 %v868
    %v1007 = vunpack.c.l.b16 %v869
    %v1008 = vunpack.c.h.b16 %v869
    %v1009 = vunpack.c.l.b16 %v870
    %v1010 = vunpack.c.h.b16 %v870
    %v1011 = vunpack.c.l.b16 %v871
    %v1012 = vunpack.c.h.b16 %v871
    %v1013 = vunpack.c.l.b16 %v872
    %v1014 = vunpack.c.h.b16 %v872
    %v1015 = vunpack.c.l.b16 %v873
    %v1016 = vunpack.c.h.b16 %v873
    %v1017 = vunpack.c.l.b16 %v874
    %v1018 = vunpack.c.h.b16 %v874
    %v1019 = vunpack.c.l.b16 %v875
    %v1020 = vunpack.c.h.b16 %v875
    %v1021 = vunpack.c.l.b16 %v876
    %v1022 = vunpack.c.h.b16 %v876
    %v1023 = vunpack.c.l.b16 %v877
    %v1024 = vunpack.c.h.b16 %v877
    %v1025 = vpack.c.b16 %v965, %v961
    %v1026 = vpack.c.b16 %v966, %v962
    %v1027 = vpack.c.b16 %v967, %v963
    %v1028 = vpack.c.b16 %v968, %v964
    %v1029 = vpack.c.b16 %v973, %v969
    %v1030 = vpack.c.b16 %v974, %v970
    %v1031 = vpack.c.b16 %v975, %v971
    %v1032 = vpack.c.b16 %v976, %v972
    %v1033 = vpack.c.b16 %v981, %v977
    %v1034 = vpack.c.b16 %v982, %v978
    %v1035 = vpack.c.b16 %v983, %v979
    %v1036 = vpack.c.b16 %v984, %v980
    %v1037 = vpack.c.b16 %v989, %v985
    %v1038 = vpack.c.b16 %v990, %v986
    %v1039 = vpack.c.b16 %v991, %v987
    %v1040 = vpack.c.b16 %v992, %v988
    %v1041 = vpack.c.b16 %v997, %v993
    %v1042 = vpack.c.b16 %v998, %v994
    %v1043 = vpack.c.b16 %v999, %v995
    %v1044 = vpack.c.b16 %v1000, %v996
    %v1045 = vpack.c.b16 %v1005, %v1001
    %v1046 = vpack.c.b16 %v1006, %v1002
    %v1047 = vpack.c.b16 %v1007, %v1003
    %v1048 = vpack.c.b16 %v1008, %v1004
    %v1049 = vpack.c.b16 %v1013, %v1009
    %v1050 = vpack.c.b16 %v1014, %v1010
    %v1051 = vpack.c.b16 %v1015, %v1011
    %v1052 = vpack.c.b16 %v1016, %v1012
    %v1053 = vpack.c.b16 %v1021, %v1017
    %v1054 = vpack.c.b16 %v1022, %v1018
    %v1055 = vpack.c.b16 %v1023, %v1019
    %v1056 = vpack.c.b16 %v1024, %v1020
    %1089 = vmatprep.subr.bf16.mxu0 %v1054
    %1090 = vmatpush1.bf16.msra.mxu0 %v1053
    %1091 = vmatprep.subr.bf16.mxu0 %v1050
    %1092 = vmatpush1.bf16.msra.mxu0 %v1049
    %1093 = vmatprep.subr.bf16.mxu0 %v1046
    %1094 = vmatpush1.bf16.msra.mxu0 %v1045
    %1095 = vmatprep.subr.bf16.mxu0 %v1042
    %1096 = vmatpush1.bf16.msra.mxu0 %v1041
    %1097 = vmatprep.subr.bf16.mxu0 %v1038
    %1098 = vmatpush1.bf16.msra.mxu0 %v1037
    %1099 = vmatprep.subr.bf16.mxu0 %v1034
    %1100 = vmatpush1.bf16.msra.mxu0 %v1033
    %1101 = vmatprep.subr.bf16.mxu0 %v1030
    %1102 = vmatpush1.bf16.msra.mxu0 %v1029
    %1103 = vmatprep.subr.bf16.mxu0 %v1026
    %1104 = vmatpush1.bf16.msra.mxu0 %v1025
    %1105 = vmatprep.subr.bf16.mxu0 0
    %1106 = vmatpush2.bf16.msra.mxu0 0
    %1107 = vmatprep.subr.bf16.mxu0 0
    %1108 = vmatpush2.bf16.msra.mxu0 0
    %1109 = vmatprep.subr.bf16.mxu0 0
    %1110 = vmatpush2.bf16.msra.mxu0 0
    %1111 = vmatprep.subr.bf16.mxu0 0
    %1112 = vmatpush2.bf16.msra.mxu0 0
    %1113 = vmatprep.subr.bf16.mxu0 0
    %1114 = vmatpush2.bf16.msra.mxu0 0
    %1115 = vmatprep.subr.bf16.mxu0 0
    %1116 = vmatpush2.bf16.msra.mxu0 0
    %1117 = vmatprep.subr.bf16.mxu0 0
    %1118 = vmatpush2.bf16.msra.mxu0 0
    %1119 = vmatprep.subr.bf16.mxu0 0
    %1120 = vmatpush2.bf16.msra.mxu0 0
    %1121 = vmatprep.mubr.bf16.mxu0 0
    %1122 = vmatmul.mubr.bf16.gmra.mxu0 %v928
    %v1123 = vpop.f32.mrf.mxu0
    %v1124 = vadd.f32 0.0, %v1123
    %v1125 = vpop.f32.mrf.mxu0
    %v1126 = vadd.f32 0.0, %v1125
    %v1127 = vpop.f32.mrf.mxu0
    %v1128 = vpop.f32.mrf.mxu0
    %1129 = vdwg.mxu0
    %1130 = vmatprep.subr.bf16.mxu0 %v1056
    %1131 = vmatpush1.bf16.msra.mxu0 %v1055
    %1132 = vmatprep.subr.bf16.mxu0 %v1052
    %1133 = vmatpush1.bf16.msra.mxu0 %v1051
    %1134 = vmatprep.subr.bf16.mxu0 %v1048
    %1135 = vmatpush1.bf16.msra.mxu0 %v1047
    %1136 = vmatprep.subr.bf16.mxu0 %v1044
    %1137 = vmatpush1.bf16.msra.mxu0 %v1043
    %1138 = vmatprep.subr.bf16.mxu0 %v1040
    %1139 = vmatpush1.bf16.msra.mxu0 %v1039
    %1140 = vmatprep.subr.bf16.mxu0 %v1036
    %1141 = vmatpush1.bf16.msra.mxu0 %v1035
    %1142 = vmatprep.subr.bf16.mxu0 %v1032
    %1143 = vmatpush1.bf16.msra.mxu0 %v1031
    %1144 = vmatprep.subr.bf16.mxu0 %v1028
    %1145 = vmatpush1.bf16.msra.mxu0 %v1027
    %1146 = vmatprep.subr.bf16.mxu0 0
    %1147 = vmatpush2.bf16.msra.mxu0 0
    %1148 = vmatprep.subr.bf16.mxu0 0
    %1149 = vmatpush2.bf16.msra.mxu0 0
    %1150 = vmatprep.subr.bf16.mxu0 0
    %1151 = vmatpush2.bf16.msra.mxu0 0
    %1152 = vmatprep.subr.bf16.mxu0 0
    %1153 = vmatpush2.bf16.msra.mxu0 0
    %1154 = vmatprep.subr.bf16.mxu0 0
    %1155 = vmatpush2.bf16.msra.mxu0 0
    %1156 = vmatprep.subr.bf16.mxu0 0
    %1157 = vmatpush2.bf16.msra.mxu0 0
    %1158 = vmatprep.subr.bf16.mxu0 0
    %1159 = vmatpush2.bf16.msra.mxu0 0
    %1160 = vmatprep.subr.bf16.mxu0 0
    %1161 = vmatpush2.bf16.msra.mxu0 0
    %1162 = vmatprep.mubr.bf16.mxu0 0
    %1163 = vmatmul.mubr.bf16.gmra.mxu0 %v928
    %v1164 = vpop.f32.mrf.mxu0
    %v1165 = vadd.f32 0.0, %v1164
    %v1166 = vpop.f32.mrf.mxu0
    %v1167 = vadd.f32 0.0, %v1166
    %v1168 = vpop.f32.mrf.mxu0
    %v1169 = vpop.f32.mrf.mxu0
    %1170 = vdwg.mxu0
    %v1171 = vadd.f32 %v924, %v1124
    %v1172 = vadd.f32 %v925, %v1126
    %v1173 = vadd.f32 %v926, %v1165
    %v1174 = vadd.f32 %v927, %v1167
    %s1175 = smul.u32 %s920, 4
    %s1176 = smul.addr %s1175, 8
    %s1177 = scalar_lea.vmem [#allocation3], %s1176
    %v1178 = vld [vmem:[%s1177] sm:$0xff]
    %v1179 = vld [vmem:[%s1177 + $0x8] sm:$0xff]
    %v1180 = vld [vmem:[%s1177 + $0x10] sm:$0xff]
    %v1181 = vld [vmem:[%s1177 + $0x18] sm:$0xff]
    %v1182 = vpack.c.bf16 %v918, %v918
    %v1215 = vunpack.c.l.b16 %v878
    %v1216 = vunpack.c.h.b16 %v878
    %v1217 = vunpack.c.l.b16 %v879
    %v1218 = vunpack.c.h.b16 %v879
    %v1219 = vunpack.c.l.b16 %v880
    %v1220 = vunpack.c.h.b16 %v880
    %v1221 = vunpack.c.l.b16 %v881
    %v1222 = vunpack.c.h.b16 %v881
    %v1223 = vunpack.c.l.b16 %v882
    %v1224 = vunpack.c.h.b16 %v882
    %v1225 = vunpack.c.l.b16 %v883
    %v1226 = vunpack.c.h.b16 %v883
    %v1227 = vunpack.c.l.b16 %v884
    %v1228 = vunpack.c.h.b16 %v884
    %v1229 = vunpack.c.l.b16 %v885
    %v1230 = vunpack.c.h.b16 %v885
    %v1231 = vunpack.c.l.b16 %v886
    %v1232 = vunpack.c.h.b16 %v886
    %v1233 = vunpack.c.l.b16 %v887
    %v1234 = vunpack.c.h.b16 %v887
    %v1235 = vunpack.c.l.b16 %v888
    %v1236 = vunpack.c.h.b16 %v888
    %v1237 = vunpack.c.l.b16 %v889
    %v1238 = vunpack.c.h.b16 %v889
    %v1239 = vunpack.c.l.b16 %v890
    %v1240 = vunpack.c.h.b16 %v890
    %v1241 = vunpack.c.l.b16 %v891
    %v1242 = vunpack.c.h.b16 %v891
    %v1243 = vunpack.c.l.b16 %v892
    %v1244 = vunpack.c.h.b16 %v892
    %v1245 = vunpack.c.l.b16 %v893
    %v1246 = vunpack.c.h.b16 %v893
    %v1247 = vunpack.c.l.b16 %v894
    %v1248 = vunpack.c.h.b16 %v894
    %v1249 = vunpack.c.l.b16 %v895
    %v1250 = vunpack.c.h.b16 %v895
    %v1251 = vunpack.c.l.b16 %v896
    %v1252 = vunpack.c.h.b16 %v896
    %v1253 = vunpack.c.l.b16 %v897
    %v1254 = vunpack.c.h.b16 %v897
    %v1255 = vunpack.c.l.b16 %v898
    %v1256 = vunpack.c.h.b16 %v898
    %v1257 = vunpack.c.l.b16 %v899
    %v1258 = vunpack.c.h.b16 %v899
    %v1259 = vunpack.c.l.b16 %v900
    %v1260 = vunpack.c.h.b16 %v900
    %v1261 = vunpack.c.l.b16 %v901
    %v1262 = vunpack.c.h.b16 %v901
    %v1263 = vunpack.c.l.b16 %v902
    %v1264 = vunpack.c.h.b16 %v902
    %v1265 = vunpack.c.l.b16 %v903
    %v1266 = vunpack.c.h.b16 %v903
    %v1267 = vunpack.c.l.b16 %v904
    %v1268 = vunpack.c.h.b16 %v904
    %v1269 = vunpack.c.l.b16 %v905
    %v1270 = vunpack.c.h.b16 %v905
    %v1271 = vunpack.c.l.b16 %v906
    %v1272 = vunpack.c.h.b16 %v906
    %v1273 = vunpack.c.l.b16 %v907
    %v1274 = vunpack.c.h.b16 %v907
    %v1275 = vunpack.c.l.b16 %v908
    %v1276 = vunpack.c.h.b16 %v908
    %v1277 = vunpack.c.l.b16 %v909
    %v1278 = vunpack.c.h.b16 %v909
    %v1279 = vpack.c.b16 %v1219, %v1215
    %v1280 = vpack.c.b16 %v1220, %v1216
    %v1281 = vpack.c.b16 %v1221, %v1217
    %v1282 = vpack.c.b16 %v1222, %v1218
    %v1283 = vpack.c.b16 %v1227, %v1223
    %v1284 = vpack.c.b16 %v1228, %v1224
    %v1285 = vpack.c.b16 %v1229, %v1225
    %v1286 = vpack.c.b16 %v1230, %v1226
    %v1287 = vpack.c.b16 %v1235, %v1231
    %v1288 = vpack.c.b16 %v1236, %v1232
    %v1289 = vpack.c.b16 %v1237, %v1233
    %v1290 = vpack.c.b16 %v1238, %v1234
    %v1291 = vpack.c.b16 %v1243, %v1239
    %v1292 = vpack.c.b16 %v1244, %v1240
    %v1293 = vpack.c.b16 %v1245, %v1241
    %v1294 = vpack.c.b16 %v1246, %v1242
    %v1295 = vpack.c.b16 %v1251, %v1247
    %v1296 = vpack.c.b16 %v1252, %v1248
    %v1297 = vpack.c.b16 %v1253, %v1249
    %v1298 = vpack.c.b16 %v1254, %v1250
    %v1299 = vpack.c.b16 %v1259, %v1255
    %v1300 = vpack.c.b16 %v1260, %v1256
    %v1301 = vpack.c.b16 %v1261, %v1257
    %v1302 = vpack.c.b16 %v1262, %v1258
    %v1303 = vpack.c.b16 %v1267, %v1263
    %v1304 = vpack.c.b16 %v1268, %v1264
    %v1305 = vpack.c.b16 %v1269, %v1265
    %v1306 = vpack.c.b16 %v1270, %v1266
    %v1307 = vpack.c.b16 %v1275, %v1271
    %v1308 = vpack.c.b16 %v1276, %v1272
    %v1309 = vpack.c.b16 %v1277, %v1273
    %v1310 = vpack.c.b16 %v1278, %v1274
    %1343 = vmatprep.subr.bf16.mxu0 %v1308
    %1344 = vmatpush1.bf16.msra.mxu0 %v1307
    %1345 = vmatprep.subr.bf16.mxu0 %v1304
    %1346 = vmatpush1.bf16.msra.mxu0 %v1303
    %1347 = vmatprep.subr.bf16.mxu0 %v1300
    %1348 = vmatpush1.bf16.msra.mxu0 %v1299
    %1349 = vmatprep.subr.bf16.mxu0 %v1296
    %1350 = vmatpush1.bf16.msra.mxu0 %v1295
    %1351 = vmatprep.subr.bf16.mxu0 %v1292
    %1352 = vmatpush1.bf16.msra.mxu0 %v1291
    %1353 = vmatprep.subr.bf16.mxu0 %v1288
    %1354 = vmatpush1.bf16.msra.mxu0 %v1287
    %1355 = vmatprep.subr.bf16.mxu0 %v1284
    %1356 = vmatpush1.bf16.msra.mxu0 %v1283
    %1357 = vmatprep.subr.bf16.mxu0 %v1280
    %1358 = vmatpush1.bf16.msra.mxu0 %v1279
    %1359 = vmatprep.subr.bf16.mxu0 0
    %1360 = vmatpush2.bf16.msra.mxu0 0
    %1361 = vmatprep.subr.bf16.mxu0 0
    %1362 = vmatpush2.bf16.msra.mxu0 0
    %1363 = vmatprep.subr.bf16.mxu0 0
    %1364 = vmatpush2.bf16.msra.mxu0 0
    %1365 = vmatprep.subr.bf16.mxu0 0
    %1366 = vmatpush2.bf16.msra.mxu0 0
    %1367 = vmatprep.subr.bf16.mxu0 0
    %1368 = vmatpush2.bf16.msra.mxu0 0
    %1369 = vmatprep.subr.bf16.mxu0 0
    %1370 = vmatpush2.bf16.msra.mxu0 0
    %1371 = vmatprep.subr.bf16.mxu0 0
    %1372 = vmatpush2.bf16.msra.mxu0 0
    %1373 = vmatprep.subr.bf16.mxu0 0
    %1374 = vmatpush2.bf16.msra.mxu0 0
    %1375 = vmatprep.mubr.bf16.mxu0 0
    %1376 = vmatmul.mubr.bf16.gmra.mxu0 %v1182
    %v1377 = vpop.f32.mrf.mxu0
    %v1378 = vadd.f32 0.0, %v1377
    %v1379 = vpop.f32.mrf.mxu0
    %v1380 = vadd.f32 0.0, %v1379
    %v1381 = vpop.f32.mrf.mxu0
    %v1382 = vpop.f32.mrf.mxu0
    %1383 = vdwg.mxu0
    %1384 = vmatprep.subr.bf16.mxu0 %v1310
    %1385 = vmatpush1.bf16.msra.mxu0 %v1309
    %1386 = vmatprep.subr.bf16.mxu0 %v1306
    %1387 = vmatpush1.bf16.msra.mxu0 %v1305
    %1388 = vmatprep.subr.bf16.mxu0 %v1302
    %1389 = vmatpush1.bf16.msra.mxu0 %v1301
    %1390 = vmatprep.subr.bf16.mxu0 %v1298
    %1391 = vmatpush1.bf16.msra.mxu0 %v1297
    %1392 = vmatprep.subr.bf16.mxu0 %v1294
    %1393 = vmatpush1.bf16.msra.mxu0 %v1293
    %1394 = vmatprep.subr.bf16.mxu0 %v1290
    %1395 = vmatpush1.bf16.msra.mxu0 %v1289
    %1396 = vmatprep.subr.bf16.mxu0 %v1286
    %1397 = vmatpush1.bf16.msra.mxu0 %v1285
    %1398 = vmatprep.subr.bf16.mxu0 %v1282
    %1399 = vmatpush1.bf16.msra.mxu0 %v1281
    %1400 = vmatprep.subr.bf16.mxu0 0
    %1401 = vmatpush2.bf16.msra.mxu0 0
    %1402 = vmatprep.subr.bf16.mxu0 0
    %1403 = vmatpush2.bf16.msra.mxu0 0
    %1404 = vmatprep.subr.bf16.mxu0 0
    %1405 = vmatpush2.bf16.msra.mxu0 0
    %1406 = vmatprep.subr.bf16.mxu0 0
    %1407 = vmatpush2.bf16.msra.mxu0 0
    %1408 = vmatprep.subr.bf16.mxu0 0
    %1409 = vmatpush2.bf16.msra.mxu0 0
    %1410 = vmatprep.subr.bf16.mxu0 0
    %1411 = vmatpush2.bf16.msra.mxu0 0
    %1412 = vmatprep.subr.bf16.mxu0 0
    %1413 = vmatpush2.bf16.msra.mxu0 0
    %1414 = vmatprep.subr.bf16.mxu0 0
    %1415 = vmatpush2.bf16.msra.mxu0 0
    %1416 = vmatprep.mubr.bf16.mxu0 0
    %1417 = vmatmul.mubr.bf16.gmra.mxu0 %v1182
    %v1418 = vpop.f32.mrf.mxu0
    %v1419 = vadd.f32 0.0, %v1418
    %v1420 = vpop.f32.mrf.mxu0
    %v1421 = vadd.f32 0.0, %v1420
    %v1422 = vpop.f32.mrf.mxu0
    %v1423 = vpop.f32.mrf.mxu0
    %1424 = vdwg.mxu0
    %v1425 = vadd.f32 %v1178, %v1378
    %v1426 = vadd.f32 %v1179, %v1380
    %v1427 = vadd.f32 %v1180, %v1419
    %v1428 = vadd.f32 %v1181, %v1421
    %v1429 = vxor.u32 %v1171, 2147483648
    %v1430 = vmul.f32 %v1429, 1.442695
    %v1431 = vpow.pop %v1430
    %v1432 = vadd.f32 %v1431, 1.0
    %v1433 = vrcp.pop %v1432
    %v1434 = vmul.f32 1.0, %v1433
    %v1435 = vxor.u32 %v1172, 2147483648
    %v1436 = vmul.f32 %v1435, 1.442695
    %v1437 = vpow.pop %v1436
    %v1438 = vadd.f32 %v1437, 1.0
    %v1439 = vrcp.pop %v1438
    %v1440 = vmul.f32 1.0, %v1439
    %v1441 = vtanh.pop %v1173
    %v1442 = vxor.u32 %v1174, 2147483648
    %v1443 = vmul.f32 %v1442, 1.442695
    %v1444 = vpow.pop %v1443
    %v1445 = vadd.f32 %v1444, 1.0
    %v1446 = vrcp.pop %v1445
    %v1447 = vmul.f32 1.0, %v1446
    %v1448 = vmul.f32 %v1440, %v917
    %v1449 = vmul.f32 %v1434, %v1441
    %v1450 = vadd.f32 %v1448, %v1449
    %v1451 = vtanh.pop %v1450
    %v1452 = vmul.f32 %v1447, %v1451
    %v1453 = vxor.u32 %v1425, 2147483648
    %v1454 = vmul.f32 %v1453, 1.442695
    %v1455 = vpow.pop %v1454
    %v1456 = vadd.f32 %v1455, 1.0
    %v1457 = vrcp.pop %v1456
    %v1458 = vmul.f32 1.0, %v1457
    %v1459 = vxor.u32 %v1426, 2147483648
    %v1460 = vmul.f32 %v1459, 1.442695
    %v1461 = vpow.pop %v1460
    %v1462 = vadd.f32 %v1461, 1.0
    %v1463 = vrcp.pop %v1462
    %v1464 = vmul.f32 1.0, %v1463
    %v1465 = vtanh.pop %v1427
    %v1466 = vxor.u32 %v1428, 2147483648
    %v1467 = vmul.f32 %v1466, 1.442695
    %v1468 = vpow.pop %v1467
    %v1469 = vadd.f32 %v1468, 1.0
    %v1470 = vrcp.pop %v1469
    %v1471 = vmul.f32 1.0, %v1470
    %v1472 = vmul.f32 %v1464, %v919
    %v1473 = vmul.f32 %v1458, %v1465
    %v1474 = vadd.f32 %v1472, %v1473
    %v1475 = vtanh.pop %v1474
    %v1476 = vmul.f32 %v1471, %v1475
    %s1477 = smul.u32 %s911, 8
    %s1478 = scalar_lea.vmem [#allocation4], %s1477
    %1479 = vst [vmem:[%s1478] sm:$0xff] %v1452
    %s1480 = smul.u32 %s920, 8
    %s1481 = scalar_lea.vmem [#allocation5], %s1480
    %1482 = vst [vmem:[%s1481] sm:$0xff] %v1476
  $region62: #{lstm_crf_forward.1} parent=0 // loop_footer
    %s915 = sadd.s32 1, %s911
  $region63: #{lstm_crf_forward.1} parent=0 // loop_footer_branch
    %910 = sbr.rel target = $region59
  $region64: #{lstm_crf_forward.1} parent=0 // loop_exit
    _
  %v1483 = vld [vmem:[#allocation4] sm:$0xff]
  %v1484 = vld [vmem:[#allocation4 + $0x8] sm:$0xff]
  %v1485 = vld [vmem:[#allocation4 + $0x10] sm:$0xff]
  %v1486 = vld [vmem:[#allocation4 + $0x18] sm:$0xff]
  %v1487 = vld [vmem:[#allocation4 + $0x20] sm:$0xff]
  %v1488 = vld [vmem:[#allocation4 + $0x28] sm:$0xff]
  %v1489 = vld [vmem:[#allocation4 + $0x30] sm:$0xff]
  %v1490 = vld [vmem:[#allocation4 + $0x38] sm:$0xff]
  %v1491 = vpack.c.bf16 %v1484, %v1483
  %v1492 = vpack.c.bf16 %v1486, %v1485
  %v1493 = vpack.c.bf16 %v1488, %v1487
  %v1494 = vpack.c.bf16 %v1490, %v1489
  %v1495 = vld [vmem:[#allocation5] sm:$0xff]
  %v1496 = vld [vmem:[#allocation5 + $0x8] sm:$0xff]
  %v1497 = vld [vmem:[#allocation5 + $0x10] sm:$0xff]
  %v1498 = vld [vmem:[#allocation5 + $0x18] sm:$0xff]
  %v1499 = vld [vmem:[#allocation5 + $0x20] sm:$0xff]
  %v1500 = vld [vmem:[#allocation5 + $0x28] sm:$0xff]
  %v1501 = vld [vmem:[#allocation5 + $0x30] sm:$0xff]
  %v1502 = vld [vmem:[#allocation5 + $0x38] sm:$0xff]
  %v1503 = vpack.c.bf16 %v1496, %v1495
  %v1504 = vpack.c.bf16 %v1498, %v1497
  %v1505 = vpack.c.bf16 %v1500, %v1499
  %v1506 = vpack.c.bf16 %v1502, %v1501
  %v1507 = vld [vmem:[%s8] sm:$0xf]
  %v1508 = vld [vmem:[%s8 + $0x4] sm:$0xf]
  %v1509 = vld [vmem:[%s8 + $0x8] sm:$0xf]
  %v1510 = vld [vmem:[%s8 + $0xc] sm:$0xf]
  %v1511 = vld [vmem:[%s8 + $0x10] sm:$0xf]
  %v1512 = vld [vmem:[%s8 + $0x14] sm:$0xf]
  %v1513 = vld [vmem:[%s8 + $0x18] sm:$0xf]
  %v1514 = vld [vmem:[%s8 + $0x1c] sm:$0xf]
  %v1515 = vld [vmem:[%s8 + $0x20] sm:$0xf]
  %v1516 = vld [vmem:[%s8 + $0x24] sm:$0xf]
  %v1517 = vld [vmem:[%s8 + $0x28] sm:$0xf]
  %v1518 = vld [vmem:[%s8 + $0x2c] sm:$0xf]
  %v1519 = vld [vmem:[%s8 + $0x30] sm:$0xf]
  %v1520 = vld [vmem:[%s8 + $0x34] sm:$0xf]
  %v1521 = vld [vmem:[%s8 + $0x38] sm:$0xf]
  %v1522 = vld [vmem:[%s8 + $0x3c] sm:$0xf]
  %v1523 = vld [vmem:[%s9] sm:$0xf]
  %v1524 = vld [vmem:[%s9 + $0x4] sm:$0xf]
  %v1525 = vld [vmem:[%s9 + $0x8] sm:$0xf]
  %v1526 = vld [vmem:[%s9 + $0xc] sm:$0xf]
  %v1527 = vld [vmem:[%s9 + $0x10] sm:$0xf]
  %v1528 = vld [vmem:[%s9 + $0x14] sm:$0xf]
  %v1529 = vld [vmem:[%s9 + $0x18] sm:$0xf]
  %v1530 = vld [vmem:[%s9 + $0x1c] sm:$0xf]
  %v1531 = vld [vmem:[%s9 + $0x20] sm:$0xf]
  %v1532 = vld [vmem:[%s9 + $0x24] sm:$0xf]
  %v1533 = vld [vmem:[%s9 + $0x28] sm:$0xf]
  %v1534 = vld [vmem:[%s9 + $0x2c] sm:$0xf]
  %v1535 = vld [vmem:[%s9 + $0x30] sm:$0xf]
  %v1536 = vld [vmem:[%s9 + $0x34] sm:$0xf]
  %v1537 = vld [vmem:[%s9 + $0x38] sm:$0xf]
  %v1538 = vld [vmem:[%s9 + $0x3c] sm:$0xf]
  %v1555 = vunpack.c.l.b16 %v1523
  %v1556 = vunpack.c.l.b16 %v1524
  %v1557 = vunpack.c.l.b16 %v1525
  %v1558 = vunpack.c.l.b16 %v1526
  %v1559 = vunpack.c.l.b16 %v1527
  %v1560 = vunpack.c.l.b16 %v1528
  %v1561 = vunpack.c.l.b16 %v1529
  %v1562 = vunpack.c.l.b16 %v1530
  %v1563 = vunpack.c.l.b16 %v1531
  %v1564 = vunpack.c.l.b16 %v1532
  %v1565 = vunpack.c.l.b16 %v1533
  %v1566 = vunpack.c.l.b16 %v1534
  %v1567 = vunpack.c.l.b16 %v1535
  %v1568 = vunpack.c.l.b16 %v1536
  %v1569 = vunpack.c.l.b16 %v1537
  %v1570 = vunpack.c.l.b16 %v1538
  %v1571 = vpack.c.b16 %v1556, %v1555
  %v1572 = vpack.c.b16 %v1558, %v1557
  %v1573 = vpack.c.b16 %v1560, %v1559
  %v1574 = vpack.c.b16 %v1562, %v1561
  %v1575 = vpack.c.b16 %v1564, %v1563
  %v1576 = vpack.c.b16 %v1566, %v1565
  %v1577 = vpack.c.b16 %v1568, %v1567
  %v1578 = vpack.c.b16 %v1570, %v1569
  %1587 = vmatprep.subr.bf16.mxu0 0
  %1588 = vmatpush1.bf16.msra.mxu0 %v1578
  %1589 = vmatprep.subr.bf16.mxu0 0
  %1590 = vmatpush1.bf16.msra.mxu0 %v1577
  %1591 = vmatprep.subr.bf16.mxu0 0
  %1592 = vmatpush1.bf16.msra.mxu0 %v1576
  %1593 = vmatprep.subr.bf16.mxu0 0
  %1594 = vmatpush1.bf16.msra.mxu0 %v1575
  %1595 = vmatprep.subr.bf16.mxu0 0
  %1596 = vmatpush1.bf16.msra.mxu0 %v1574
  %1597 = vmatprep.subr.bf16.mxu0 0
  %1598 = vmatpush1.bf16.msra.mxu0 %v1573
  %1599 = vmatprep.subr.bf16.mxu0 0
  %1600 = vmatpush1.bf16.msra.mxu0 %v1572
  %1601 = vmatprep.subr.bf16.mxu0 0
  %1602 = vmatpush1.bf16.msra.mxu0 %v1571
  %1603 = vmatprep.subr.bf16.mxu0 0
  %1604 = vmatpush2.bf16.msra.mxu0 0
  %1605 = vmatprep.subr.bf16.mxu0 0
  %1606 = vmatpush2.bf16.msra.mxu0 0
  %1607 = vmatprep.subr.bf16.mxu0 0
  %1608 = vmatpush2.bf16.msra.mxu0 0
  %1609 = vmatprep.subr.bf16.mxu0 0
  %1610 = vmatpush2.bf16.msra.mxu0 0
  %1611 = vmatprep.subr.bf16.mxu0 0
  %1612 = vmatpush2.bf16.msra.mxu0 0
  %1613 = vmatprep.subr.bf16.mxu0 0
  %1614 = vmatpush2.bf16.msra.mxu0 0
  %1615 = vmatprep.subr.bf16.mxu0 0
  %1616 = vmatpush2.bf16.msra.mxu0 0
  %1617 = vmatprep.subr.bf16.mxu0 0
  %1618 = vmatpush2.bf16.msra.mxu0 0
  %1619 = vmatprep.mubr.bf16.mxu0 0
  %1620 = vmatmul.mubr.bf16.gmra.mxu0 %v1503
  %v1621 = vpop.f32.mrf.mxu0
  %v1622 = vadd.f32 0.0, %v1621
  %v1623 = vpop.f32.mrf.mxu0
  %v1624 = vpop.f32.mrf.mxu0
  %v1625 = vadd.f32 0.0, %v1624
  %v1626 = vpop.f32.mrf.mxu0
  %1627 = vmatprep.mubr.bf16.mxu0 0
  %1628 = vmatmul.mubr.bf16.gmra.mxu0 %v1504
  %v1629 = vpop.f32.mrf.mxu0
  %v1630 = vadd.f32 0.0, %v1629
  %v1631 = vpop.f32.mrf.mxu0
  %v1632 = vpop.f32.mrf.mxu0
  %v1633 = vadd.f32 0.0, %v1632
  %v1634 = vpop.f32.mrf.mxu0
  %1635 = vmatprep.mubr.bf16.mxu0 0
  %1636 = vmatmul.mubr.bf16.gmra.mxu0 %v1505
  %v1637 = vpop.f32.mrf.mxu0
  %v1638 = vadd.f32 0.0, %v1637
  %v1639 = vpop.f32.mrf.mxu0
  %v1640 = vpop.f32.mrf.mxu0
  %v1641 = vadd.f32 0.0, %v1640
  %v1642 = vpop.f32.mrf.mxu0
  %1643 = vmatprep.mubr.bf16.mxu0 0
  %1644 = vmatmul.mubr.bf16.gmra.mxu0 %v1506
  %v1645 = vpop.f32.mrf.mxu0
  %v1646 = vadd.f32 0.0, %v1645
  %v1647 = vpop.f32.mrf.mxu0
  %v1648 = vpop.f32.mrf.mxu0
  %v1649 = vadd.f32 0.0, %v1648
  %v1650 = vpop.f32.mrf.mxu0
  %1651 = vdwg.mxu0
  %v1668 = vunpack.c.l.b16 %v1507
  %v1669 = vunpack.c.l.b16 %v1508
  %v1670 = vunpack.c.l.b16 %v1509
  %v1671 = vunpack.c.l.b16 %v1510
  %v1672 = vunpack.c.l.b16 %v1511
  %v1673 = vunpack.c.l.b16 %v1512
  %v1674 = vunpack.c.l.b16 %v1513
  %v1675 = vunpack.c.l.b16 %v1514
  %v1676 = vunpack.c.l.b16 %v1515
  %v1677 = vunpack.c.l.b16 %v1516
  %v1678 = vunpack.c.l.b16 %v1517
  %v1679 = vunpack.c.l.b16 %v1518
  %v1680 = vunpack.c.l.b16 %v1519
  %v1681 = vunpack.c.l.b16 %v1520
  %v1682 = vunpack.c.l.b16 %v1521
  %v1683 = vunpack.c.l.b16 %v1522
  %v1684 = vpack.c.b16 %v1669, %v1668
  %v1685 = vpack.c.b16 %v1671, %v1670
  %v1686 = vpack.c.b16 %v1673, %v1672
  %v1687 = vpack.c.b16 %v1675, %v1674
  %v1688 = vpack.c.b16 %v1677, %v1676
  %v1689 = vpack.c.b16 %v1679, %v1678
  %v1690 = vpack.c.b16 %v1681, %v1680
  %v1691 = vpack.c.b16 %v1683, %v1682
  %1700 = vmatprep.subr.bf16.mxu0 0
  %1701 = vmatpush1.bf16.msra.mxu0 %v1691
  %1702 = vmatprep.subr.bf16.mxu0 0
  %1703 = vmatpush1.bf16.msra.mxu0 %v1690
  %1704 = vmatprep.subr.bf16.mxu0 0
  %1705 = vmatpush1.bf16.msra.mxu0 %v1689
  %1706 = vmatprep.subr.bf16.mxu0 0
  %1707 = vmatpush1.bf16.msra.mxu0 %v1688
  %1708 = vmatprep.subr.bf16.mxu0 0
  %1709 = vmatpush1.bf16.msra.mxu0 %v1687
  %1710 = vmatprep.subr.bf16.mxu0 0
  %1711 = vmatpush1.bf16.msra.mxu0 %v1686
  %1712 = vmatprep.subr.bf16.mxu0 0
  %1713 = vmatpush1.bf16.msra.mxu0 %v1685
  %1714 = vmatprep.subr.bf16.mxu0 0
  %1715 = vmatpush1.bf16.msra.mxu0 %v1684
  %1716 = vmatprep.subr.bf16.mxu0 0
  %1717 = vmatpush2.bf16.msra.mxu0 0
  %1718 = vmatprep.subr.bf16.mxu0 0
  %1719 = vmatpush2.bf16.msra.mxu0 0
  %1720 = vmatprep.subr.bf16.mxu0 0
  %1721 = vmatpush2.bf16.msra.mxu0 0
  %1722 = vmatprep.subr.bf16.mxu0 0
  %1723 = vmatpush2.bf16.msra.mxu0 0
  %1724 = vmatprep.subr.bf16.mxu0 0
  %1725 = vmatpush2.bf16.msra.mxu0 0
  %1726 = vmatprep.subr.bf16.mxu0 0
  %1727 = vmatpush2.bf16.msra.mxu0 0
  %1728 = vmatprep.subr.bf16.mxu0 0
  %1729 = vmatpush2.bf16.msra.mxu0 0
  %1730 = vmatprep.subr.bf16.mxu0 0
  %1731 = vmatpush2.bf16.msra.mxu0 0
  %1732 = vmatprep.mubr.bf16.mxu0 0
  %1733 = vmatmul.mubr.bf16.gmra.mxu0 %v1491
  %v1734 = vpop.f32.mrf.mxu0
  %v1735 = vadd.f32 %v1622, %v1734
  %v1736 = vpop.f32.mrf.mxu0
  %v1737 = vpop.f32.mrf.mxu0
  %v1738 = vadd.f32 %v1625, %v1737
  %v1739 = vpop.f32.mrf.mxu0
  %1740 = vmatprep.mubr.bf16.mxu0 0
  %1741 = vmatmul.mubr.bf16.gmra.mxu0 %v1492
  %v1742 = vpop.f32.mrf.mxu0
  %v1743 = vadd.f32 %v1630, %v1742
  %v1744 = vpop.f32.mrf.mxu0
  %v1745 = vpop.f32.mrf.mxu0
  %v1746 = vadd.f32 %v1633, %v1745
  %v1747 = vpop.f32.mrf.mxu0
  %1748 = vmatprep.mubr.bf16.mxu0 0
  %1749 = vmatmul.mubr.bf16.gmra.mxu0 %v1493
  %v1750 = vpop.f32.mrf.mxu0
  %v1751 = vadd.f32 %v1638, %v1750
  %v1752 = vpop.f32.mrf.mxu0
  %v1753 = vpop.f32.mrf.mxu0
  %v1754 = vadd.f32 %v1641, %v1753
  %v1755 = vpop.f32.mrf.mxu0
  %1756 = vmatprep.mubr.bf16.mxu0 0
  %1757 = vmatmul.mubr.bf16.gmra.mxu0 %v1494
  %v1758 = vpop.f32.mrf.mxu0
  %v1759 = vadd.f32 %v1646, %v1758
  %v1760 = vpop.f32.mrf.mxu0
  %v1761 = vpop.f32.mrf.mxu0
  %v1762 = vadd.f32 %v1649, %v1761
  %v1763 = vpop.f32.mrf.mxu0
  %1764 = vdwg.mxu0
  %v1765 = vld [vmem:[%s10] sm:$0x1]
  %v1767 = vlaneseq
  %v1768 = vshrl.u32 %v1767, 7
  %v1769 = vsub.s32 0, %v1768
  %v1770 = vrot.slane %v1765, %v1769
  %v1772 = vadd.f32 %v1735, %v1770
  %v1773 = vadd.f32 %v1738, %v1770
  %v1774 = vadd.f32 %v1743, %v1770
  %v1775 = vadd.f32 %v1746, %v1770
  %v1776 = vadd.f32 %v1751, %v1770
  %v1777 = vadd.f32 %v1754, %v1770
  %v1778 = vadd.f32 %v1759, %v1770
  %v1779 = vadd.f32 %v1762, %v1770
  %vm1780 = vcmask 64512
  %1781 = vst.msk [vmem:[%s14] sm:$0xff] %vm1780, %v1772
  %1782 = vst.msk [vmem:[%s14 + $0x8] sm:$0xff] %vm1780, %v1773
  %1783 = vst.msk [vmem:[%s14 + $0x10] sm:$0xff] %vm1780, %v1774
  %1784 = vst.msk [vmem:[%s14 + $0x18] sm:$0xff] %vm1780, %v1775
  %1785 = vst.msk [vmem:[%s14 + $0x20] sm:$0xff] %vm1780, %v1776
  %1786 = vst.msk [vmem:[%s14 + $0x28] sm:$0xff] %vm1780, %v1777
  %1787 = vst.msk [vmem:[%s14 + $0x30] sm:$0xff] %vm1780, %v1778
  %1788 = vst.msk [vmem:[%s14 + $0x38] sm:$0xff] %vm1780, %v1779
  %v1789 = vld [vmem:[%s11] sm:$0xff]
  %v1790 = vld [vmem:[%s12] sm:$0x1]
  %v1791 = vld [vmem:[%s13] sm:$0x1]
  %v1792 = vlaneseq
  %v1793 = vshrl.u32 %v1792, 7
  %v1794 = vlaneseq
  %v1795 = vand.u32 %v1794, 127
  %v1796 = vld [vmem:[%s14] sm:$0xff]
  %v1798 = vlaneseq
  %v1799 = vshrl.u32 %v1798, 7
  %v1800 = vsub.s32 0, %v1799
  %v1801 = vrot.slane %v1790, %v1800
  %v1803 = vadd.f32 %v1801, %v1796
  %v1804 = vld [vmem:[%s1] sm:$0xff]
  %v1805 = vmul.f32 %v1803, %v1804
  %v1806 = vsel %vm1780, %v1805, 0.0
  %1807 = vadd.xlane.f32.xlu0 %v1806
  %v1808 = vpop.xlane.xlu0 %1807
  %1809 = vst.msk [vmem:[%s15] sm:$0xff] %vm1780, %v1795
  loop: start=1, step=1, limit=8
  $region65: #{lstm_crf_forward.1} parent=0 // loop_pre_header
    _
  $region66: #{lstm_crf_forward.1} parent=0 // loop_header
    %s1811 = sphi 1, %s1815
    %p1812 = scmp.ge.s32.totalorder %s1811, 8
    %v1816 = vphi %v1803, %v2181
    %v1817 = vphi %v1808, %v2358
    %v1818 = vphi %v1803, %v2609
  $region67: #{lstm_crf_forward.1} parent=0 // loop_header_branch
    %1814 = sbr.rel (%p1812) target = $region71
  $region68: #{lstm_crf_forward.1} parent=0 // loop_body
    %s1819 = smul.u32 %s1811, 8
    %s1820 = scalar_lea.vmem %s14, %s1819
    %v1821 = vld [vmem:[%s1820] sm:$0xff]
    %s1822 = scalar_lea.vmem %s3, %s1819
    %v1823 = vld [vmem:[%s1822] sm:$0xff]
    %s1824 = scalar_lea.vmem %s1, %s1819
    %v1825 = vld [vmem:[%s1824] sm:$0xff]
    %s1826 = ssub.s32 %s1811, 1
    %s1827 = smul.u32 %s1826, 8
    %s1828 = scalar_lea.vmem %s1, %s1827
    %v1829 = vld [vmem:[%s1828] sm:$0xff]
    %v1830 = vlaneseq
    %v1831 = vshrl.u32 %v1830, 7
    %v1832 = vsub.s32 0, %v1831
    %v1833 = vrot.slane %v1816, %v1832
    %1835 = vbcast.lane.b32.xlu0 %v1833, 256
    %v1836 = vpop.permute.xlu0 %1835
    %v1837 = vlaneseq
    %v1838 = vshrl.u32 %v1837, 7
    %v1839 = vsub.s32 1, %v1838
    %v1840 = vrot.slane %v1816, %v1839
    %1842 = vbcast.lane.b32.xlu0 %v1840, 256
    %v1843 = vpop.permute.xlu0 %1842
    %v1844 = vlaneseq
    %v1845 = vshrl.u32 %v1844, 7
    %v1846 = vsub.s32 2, %v1845
    %v1847 = vrot.slane %v1816, %v1846
    %1849 = vbcast.lane.b32.xlu0 %v1847, 256
    %v1850 = vpop.permute.xlu0 %1849
    %v1851 = vlaneseq
    %v1852 = vshrl.u32 %v1851, 7
    %v1853 = vsub.s32 3, %v1852
    %v1854 = vrot.slane %v1816, %v1853
    %1856 = vbcast.lane.b32.xlu0 %v1854, 256
    %v1857 = vpop.permute.xlu0 %1856
    %v1858 = vlaneseq
    %v1859 = vshrl.u32 %v1858, 7
    %v1860 = vsub.s32 4, %v1859
    %v1861 = vrot.slane %v1816, %v1860
    %1863 = vbcast.lane.b32.xlu0 %v1861, 256
    %v1864 = vpop.permute.xlu0 %1863
    %v1865 = vlaneseq
    %v1866 = vshrl.u32 %v1865, 7
    %v1867 = vsub.s32 5, %v1866
    %v1868 = vrot.slane %v1816, %v1867
    %1870 = vbcast.lane.b32.xlu0 %v1868, 256
    %v1871 = vpop.permute.xlu0 %1870
    %v1872 = vlaneseq
    %v1873 = vshrl.u32 %v1872, 7
    %v1874 = vsub.s32 6, %v1873
    %v1875 = vrot.slane %v1816, %v1874
    %1877 = vbcast.lane.b32.xlu0 %v1875, 256
    %v1878 = vpop.permute.xlu0 %1877
    %v1879 = vlaneseq
    %v1880 = vshrl.u32 %v1879, 7
    %v1881 = vsub.s32 7, %v1880
    %v1882 = vrot.slane %v1816, %v1881
    %1884 = vbcast.lane.b32.xlu0 %v1882, 256
    %v1885 = vpop.permute.xlu0 %1884
    %v1886 = vadd.f32 %v1836, %v1789
    %v1887 = vadd.f32 %v1843, %v1789
    %v1888 = vadd.f32 %v1850, %v1789
    %v1889 = vadd.f32 %v1857, %v1789
    %v1890 = vadd.f32 %v1864, %v1789
    %v1891 = vadd.f32 %v1871, %v1789
    %v1892 = vadd.f32 %v1878, %v1789
    %v1893 = vadd.f32 %v1885, %v1789
    %v1895 = vcombine.high %v1821, %v1821
    %v1897 = vunpack.c.l.s4 1966171168
    %v1898 = vunpack.c.0.s8 %v1897
    %v1899 = vlaneseq
    %v1900 = vshrl.u32 %v1899, 7
    %v1901 = vsub.s32 %v1898, %v1900
    %v1902 = vrot.slane %v1821, %v1901
    %v1904 = vunpack.c.l.s4 1966171168
    %v1905 = vunpack.c.0.s8 %v1904
    %v1906 = vlaneseq
    %v1907 = vshrl.u32 %v1906, 7
    %v1908 = vsub.s32 %v1905, %v1907
    %v1909 = vrot.slane %v1895, %v1908
    %v1910 = vcombine.high %v1902, %v1902
    %v1911 = vcombine.high %v1909, %v1909
    %v1913 = vunpack.c.l.s4 1966171168
    %v1914 = vunpack.c.0.s8 %v1913
    %v1915 = vlaneseq
    %v1916 = vshrl.u32 %v1915, 7
    %v1917 = vsub.s32 %v1914, %v1916
    %v1918 = vrot.slane %v1902, %v1917
    %v1920 = vunpack.c.l.s4 1966171168
    %v1921 = vunpack.c.0.s8 %v1920
    %v1922 = vlaneseq
    %v1923 = vshrl.u32 %v1922, 7
    %v1924 = vsub.s32 %v1921, %v1923
    %v1925 = vrot.slane %v1909, %v1924
    %v1927 = vunpack.c.l.s4 1966171168
    %v1928 = vunpack.c.0.s8 %v1927
    %v1929 = vlaneseq
    %v1930 = vshrl.u32 %v1929, 7
    %v1931 = vsub.s32 %v1928, %v1930
    %v1932 = vrot.slane %v1910, %v1931
    %v1934 = vunpack.c.l.s4 1966171168
    %v1935 = vunpack.c.0.s8 %v1934
    %v1936 = vlaneseq
    %v1937 = vshrl.u32 %v1936, 7
    %v1938 = vsub.s32 %v1935, %v1937
    %v1939 = vrot.slane %v1911, %v1938
    %v1940 = vcombine.high %v1918, %v1918
    %v1941 = vcombine.high %v1925, %v1925
    %v1942 = vcombine.high %v1932, %v1932
    %v1943 = vcombine.high %v1939, %v1939
    %v1944 = vlaneseq
    %v1945 = vshrl.u32 %v1944, 7
    %v1946 = vsub.s32 0, %v1945
    %v1947 = vrot.slane %v1918, %v1946
    %v1948 = vlaneseq
    %v1949 = vshrl.u32 %v1948, 7
    %v1950 = vsub.s32 0, %v1949
    %v1951 = vrot.slane %v1932, %v1950
    %v1952 = vlaneseq
    %v1953 = vshrl.u32 %v1952, 7
    %v1954 = vsub.s32 0, %v1953
    %v1955 = vrot.slane %v1940, %v1954
    %v1956 = vlaneseq
    %v1957 = vshrl.u32 %v1956, 7
    %v1958 = vsub.s32 0, %v1957
    %v1959 = vrot.slane %v1942, %v1958
    %v1960 = vlaneseq
    %v1961 = vshrl.u32 %v1960, 7
    %v1962 = vsub.s32 0, %v1961
    %v1963 = vrot.slane %v1925, %v1962
    %v1964 = vlaneseq
    %v1965 = vshrl.u32 %v1964, 7
    %v1966 = vsub.s32 0, %v1965
    %v1967 = vrot.slane %v1939, %v1966
    %v1968 = vlaneseq
    %v1969 = vshrl.u32 %v1968, 7
    %v1970 = vsub.s32 0, %v1969
    %v1971 = vrot.slane %v1941, %v1970
    %v1972 = vlaneseq
    %v1973 = vshrl.u32 %v1972, 7
    %v1974 = vsub.s32 0, %v1973
    %v1975 = vrot.slane %v1943, %v1974
    %v1984 = vadd.f32 %v1886, %v1947
    %v1985 = vadd.f32 %v1887, %v1951
    %v1986 = vadd.f32 %v1888, %v1955
    %v1987 = vadd.f32 %v1889, %v1959
    %v1988 = vadd.f32 %v1890, %v1963
    %v1989 = vadd.f32 %v1891, %v1967
    %v1990 = vadd.f32 %v1892, %v1971
    %v1991 = vadd.f32 %v1893, %v1975
    %v1992 = vsel %vm1780, %v1984, -inf
    %v1993 = vrot.slane %v1992, 4
    %v1994 = vmax.f32 %v1992, %v1993
    %v1995 = vrot.slane %v1994, 2
    %v1996 = vmax.f32 %v1994, %v1995
    %v1997 = vrot.slane %v1996, 1
    %v1998 = vmax.f32 %v1996, %v1997
    %v1999 = vsel %vm1780, %v1985, -inf
    %v2000 = vrot.slane %v1999, 4
    %v2001 = vmax.f32 %v1999, %v2000
    %v2002 = vrot.slane %v2001, 2
    %v2003 = vmax.f32 %v2001, %v2002
    %v2004 = vrot.slane %v2003, 1
    %v2005 = vmax.f32 %v2003, %v2004
    %v2006 = vsel %vm1780, %v1986, -inf
    %v2007 = vrot.slane %v2006, 4
    %v2008 = vmax.f32 %v2006, %v2007
    %v2009 = vrot.slane %v2008, 2
    %v2010 = vmax.f32 %v2008, %v2009
    %v2011 = vrot.slane %v2010, 1
    %v2012 = vmax.f32 %v2010, %v2011
    %v2013 = vsel %vm1780, %v1987, -inf
    %v2014 = vrot.slane %v2013, 4
    %v2015 = vmax.f32 %v2013, %v2014
    %v2016 = vrot.slane %v2015, 2
    %v2017 = vmax.f32 %v2015, %v2016
    %v2018 = vrot.slane %v2017, 1
    %v2019 = vmax.f32 %v2017, %v2018
    %v2020 = vsel %vm1780, %v1988, -inf
    %v2021 = vrot.slane %v2020, 4
    %v2022 = vmax.f32 %v2020, %v2021
    %v2023 = vrot.slane %v2022, 2
    %v2024 = vmax.f32 %v2022, %v2023
    %v2025 = vrot.slane %v2024, 1
    %v2026 = vmax.f32 %v2024, %v2025
    %v2027 = vsel %vm1780, %v1989, -inf
    %v2028 = vrot.slane %v2027, 4
    %v2029 = vmax.f32 %v2027, %v2028
    %v2030 = vrot.slane %v2029, 2
    %v2031 = vmax.f32 %v2029, %v2030
    %v2032 = vrot.slane %v2031, 1
    %v2033 = vmax.f32 %v2031, %v2032
    %v2034 = vsel %vm1780, %v1990, -inf
    %v2035 = vrot.slane %v2034, 4
    %v2036 = vmax.f32 %v2034, %v2035
    %v2037 = vrot.slane %v2036, 2
    %v2038 = vmax.f32 %v2036, %v2037
    %v2039 = vrot.slane %v2038, 1
    %v2040 = vmax.f32 %v2038, %v2039
    %v2041 = vsel %vm1780, %v1991, -inf
    %v2042 = vrot.slane %v2041, 4
    %v2043 = vmax.f32 %v2041, %v2042
    %v2044 = vrot.slane %v2043, 2
    %v2045 = vmax.f32 %v2043, %v2044
    %v2046 = vrot.slane %v2045, 1
    %v2047 = vmax.f32 %v2045, %v2046
    %v2048 = vsub.f32 %v1984, %v1998
    %v2049 = vsub.f32 %v1985, %v2005
    %v2050 = vsub.f32 %v1986, %v2012
    %v2051 = vsub.f32 %v1987, %v2019
    %v2052 = vsub.f32 %v1988, %v2026
    %v2053 = vsub.f32 %v1989, %v2033
    %v2054 = vsub.f32 %v1990, %v2040
    %v2055 = vsub.f32 %v1991, %v2047
    %v2056 = vmul.f32 %v2048, 1.442695
    %v2057 = vpow.pop %v2056
    %v2058 = vmul.f32 %v2049, 1.442695
    %v2059 = vpow.pop %v2058
    %v2060 = vmul.f32 %v2050, 1.442695
    %v2061 = vpow.pop %v2060
    %v2062 = vmul.f32 %v2051, 1.442695
    %v2063 = vpow.pop %v2062
    %v2064 = vmul.f32 %v2052, 1.442695
    %v2065 = vpow.pop %v2064
    %v2066 = vmul.f32 %v2053, 1.442695
    %v2067 = vpow.pop %v2066
    %v2068 = vmul.f32 %v2054, 1.442695
    %v2069 = vpow.pop %v2068
    %v2070 = vmul.f32 %v2055, 1.442695
    %v2071 = vpow.pop %v2070
    %v2072 = vsel %vm1780, %v2057, 0.0
    %v2073 = vrot.slane %v2072, 4
    %v2074 = vadd.f32 %v2072, %v2073
    %v2075 = vrot.slane %v2074, 2
    %v2076 = vadd.f32 %v2074, %v2075
    %v2077 = vrot.slane %v2076, 1
    %v2078 = vadd.f32 %v2076, %v2077
    %v2079 = vsel %vm1780, %v2059, 0.0
    %v2080 = vrot.slane %v2079, 4
    %v2081 = vadd.f32 %v2079, %v2080
    %v2082 = vrot.slane %v2081, 2
    %v2083 = vadd.f32 %v2081, %v2082
    %v2084 = vrot.slane %v2083, 1
    %v2085 = vadd.f32 %v2083, %v2084
    %v2086 = vsel %vm1780, %v2061, 0.0
    %v2087 = vrot.slane %v2086, 4
    %v2088 = vadd.f32 %v2086, %v2087
    %v2089 = vrot.slane %v2088, 2
    %v2090 = vadd.f32 %v2088, %v2089
    %v2091 = vrot.slane %v2090, 1
    %v2092 = vadd.f32 %v2090, %v2091
    %v2093 = vsel %vm1780, %v2063, 0.0
    %v2094 = vrot.slane %v2093, 4
    %v2095 = vadd.f32 %v2093, %v2094
    %v2096 = vrot.slane %v2095, 2
    %v2097 = vadd.f32 %v2095, %v2096
    %v2098 = vrot.slane %v2097, 1
    %v2099 = vadd.f32 %v2097, %v2098
    %v2100 = vsel %vm1780, %v2065, 0.0
    %v2101 = vrot.slane %v2100, 4
    %v2102 = vadd.f32 %v2100, %v2101
    %v2103 = vrot.slane %v2102, 2
    %v2104 = vadd.f32 %v2102, %v2103
    %v2105 = vrot.slane %v2104, 1
    %v2106 = vadd.f32 %v2104, %v2105
    %v2107 = vsel %vm1780, %v2067, 0.0
    %v2108 = vrot.slane %v2107, 4
    %v2109 = vadd.f32 %v2107, %v2108
    %v2110 = vrot.slane %v2109, 2
    %v2111 = vadd.f32 %v2109, %v2110
    %v2112 = vrot.slane %v2111, 1
    %v2113 = vadd.f32 %v2111, %v2112
    %v2114 = vsel %vm1780, %v2069, 0.0
    %v2115 = vrot.slane %v2114, 4
    %v2116 = vadd.f32 %v2114, %v2115
    %v2117 = vrot.slane %v2116, 2
    %v2118 = vadd.f32 %v2116, %v2117
    %v2119 = vrot.slane %v2118, 1
    %v2120 = vadd.f32 %v2118, %v2119
    %v2121 = vsel %vm1780, %v2071, 0.0
    %v2122 = vrot.slane %v2121, 4
    %v2123 = vadd.f32 %v2121, %v2122
    %v2124 = vrot.slane %v2123, 2
    %v2125 = vadd.f32 %v2123, %v2124
    %v2126 = vrot.slane %v2125, 1
    %v2127 = vadd.f32 %v2125, %v2126
    %v2128 = vlog2.pop %v2078
    %v2129 = vmul.f32 %v2128, 0.6931472
    %v2130 = vlog2.pop %v2085
    %v2131 = vmul.f32 %v2130, 0.6931472
    %v2132 = vlog2.pop %v2092
    %v2133 = vmul.f32 %v2132, 0.6931472
    %v2134 = vlog2.pop %v2099
    %v2135 = vmul.f32 %v2134, 0.6931472
    %v2136 = vlog2.pop %v2106
    %v2137 = vmul.f32 %v2136, 0.6931472
    %v2138 = vlog2.pop %v2113
    %v2139 = vmul.f32 %v2138, 0.6931472
    %v2140 = vlog2.pop %v2120
    %v2141 = vmul.f32 %v2140, 0.6931472
    %v2142 = vlog2.pop %v2127
    %v2143 = vmul.f32 %v2142, 0.6931472
    %v2144 = vadd.f32 %v1998, %v2129
    %v2145 = vadd.f32 %v2005, %v2131
    %v2146 = vadd.f32 %v2012, %v2133
    %v2147 = vadd.f32 %v2019, %v2135
    %v2148 = vadd.f32 %v2026, %v2137
    %v2149 = vadd.f32 %v2033, %v2139
    %v2150 = vadd.f32 %v2040, %v2141
    %v2151 = vadd.f32 %v2047, %v2143
    %vm2152 = vcmp.gt.f32.partialorder %v1823, 0.0
    %v2153 = vsel %vm2152, 1, 0
    %2154 = vset.pattern.permute.xlu0 0
    %2155 = vperm.xlu0 %2154, %v2153
    %v2156 = vpop.permute.xlu0 %2155
    %vm2157 = vcmp.eq.s32.totalorder %v2156, 1
    %vm2166 = vcmask 1041409
    %v2167 = vsel %vm2166, %v2145, %v2144
    %vm2168 = vcmask 1042434
    %v2169 = vsel %vm2168, %v2146, %v2167
    %vm2170 = vcmask 1043459
    %v2171 = vsel %vm2170, %v2147, %v2169
    %vm2172 = vcmask 1044484
    %v2173 = vsel %vm2172, %v2148, %v2171
    %vm2174 = vcmask 1045509
    %v2175 = vsel %vm2174, %v2149, %v2173
    %vm2176 = vcmask 1046534
    %v2177 = vsel %vm2176, %v2150, %v2175
    %vm2178 = vcmask 1047559
    %v2179 = vsel %vm2178, %v2151, %v2177
    %v2181 = vsel %vm2157, %v2179, %v1816
    %v2182 = vlaneseq
    %v2183 = vshrl.u32 %v2182, 7
    %v2184 = vsub.s32 0, %v2183
    %v2185 = vrot.slane %v1829, %v2184
    %2187 = vbcast.lane.b32.xlu0 %v2185, 256
    %v2188 = vpop.permute.xlu0 %2187
    %v2189 = vlaneseq
    %v2190 = vshrl.u32 %v2189, 7
    %v2191 = vsub.s32 1, %v2190
    %v2192 = vrot.slane %v1829, %v2191
    %2194 = vbcast.lane.b32.xlu0 %v2192, 256
    %v2195 = vpop.permute.xlu0 %2194
    %v2196 = vlaneseq
    %v2197 = vshrl.u32 %v2196, 7
    %v2198 = vsub.s32 2, %v2197
    %v2199 = vrot.slane %v1829, %v2198
    %2201 = vbcast.lane.b32.xlu0 %v2199, 256
    %v2202 = vpop.permute.xlu0 %2201
    %v2203 = vlaneseq
    %v2204 = vshrl.u32 %v2203, 7
    %v2205 = vsub.s32 3, %v2204
    %v2206 = vrot.slane %v1829, %v2205
    %2208 = vbcast.lane.b32.xlu0 %v2206, 256
    %v2209 = vpop.permute.xlu0 %2208
    %v2210 = vlaneseq
    %v2211 = vshrl.u32 %v2210, 7
    %v2212 = vsub.s32 4, %v2211
    %v2213 = vrot.slane %v1829, %v2212
    %2215 = vbcast.lane.b32.xlu0 %v2213, 256
    %v2216 = vpop.permute.xlu0 %2215
    %v2217 = vlaneseq
    %v2218 = vshrl.u32 %v2217, 7
    %v2219 = vsub.s32 5, %v2218
    %v2220 = vrot.slane %v1829, %v2219
    %2222 = vbcast.lane.b32.xlu0 %v2220, 256
    %v2223 = vpop.permute.xlu0 %2222
    %v2224 = vlaneseq
    %v2225 = vshrl.u32 %v2224, 7
    %v2226 = vsub.s32 6, %v2225
    %v2227 = vrot.slane %v1829, %v2226
    %2229 = vbcast.lane.b32.xlu0 %v2227, 256
    %v2230 = vpop.permute.xlu0 %2229
    %v2231 = vlaneseq
    %v2232 = vshrl.u32 %v2231, 7
    %v2233 = vsub.s32 7, %v2232
    %v2234 = vrot.slane %v1829, %v2233
    %2236 = vbcast.lane.b32.xlu0 %v2234, 256
    %v2237 = vpop.permute.xlu0 %2236
    %v2238 = vmul.f32 %v2188, %v1789
    %v2239 = vmul.f32 %v2195, %v1789
    %v2240 = vmul.f32 %v2202, %v1789
    %v2241 = vmul.f32 %v2209, %v1789
    %v2242 = vmul.f32 %v2216, %v1789
    %v2243 = vmul.f32 %v2223, %v1789
    %v2244 = vmul.f32 %v2230, %v1789
    %v2245 = vmul.f32 %v2237, %v1789
    %v2246 = vsel %vm1780, %v2238, 0.0
    %v2247 = vrot.slane %v2246, 4
    %v2248 = vadd.f32 %v2246, %v2247
    %v2249 = vrot.slane %v2248, 2
    %v2250 = vadd.f32 %v2248, %v2249
    %v2251 = vrot.slane %v2250, 1
    %v2252 = vadd.f32 %v2250, %v2251
    %v2253 = vsel %vm1780, %v2239, 0.0
    %v2254 = vrot.slane %v2253, 4
    %v2255 = vadd.f32 %v2253, %v2254
    %v2256 = vrot.slane %v2255, 2
    %v2257 = vadd.f32 %v2255, %v2256
    %v2258 = vrot.slane %v2257, 1
    %v2259 = vadd.f32 %v2257, %v2258
    %v2260 = vsel %vm1780, %v2240, 0.0
    %v2261 = vrot.slane %v2260, 4
    %v2262 = vadd.f32 %v2260, %v2261
    %v2263 = vrot.slane %v2262, 2
    %v2264 = vadd.f32 %v2262, %v2263
    %v2265 = vrot.slane %v2264, 1
    %v2266 = vadd.f32 %v2264, %v2265
    %v2267 = vsel %vm1780, %v2241, 0.0
    %v2268 = vrot.slane %v2267, 4
    %v2269 = vadd.f32 %v2267, %v2268
    %v2270 = vrot.slane %v2269, 2
    %v2271 = vadd.f32 %v2269, %v2270
    %v2272 = vrot.slane %v2271, 1
    %v2273 = vadd.f32 %v2271, %v2272
    %v2274 = vsel %vm1780, %v2242, 0.0
    %v2275 = vrot.slane %v2274, 4
    %v2276 = vadd.f32 %v2274, %v2275
    %v2277 = vrot.slane %v2276, 2
    %v2278 = vadd.f32 %v2276, %v2277
    %v2279 = vrot.slane %v2278, 1
    %v2280 = vadd.f32 %v2278, %v2279
    %v2281 = vsel %vm1780, %v2243, 0.0
    %v2282 = vrot.slane %v2281, 4
    %v2283 = vadd.f32 %v2281, %v2282
    %v2284 = vrot.slane %v2283, 2
    %v2285 = vadd.f32 %v2283, %v2284
    %v2286 = vrot.slane %v2285, 1
    %v2287 = vadd.f32 %v2285, %v2286
    %v2288 = vsel %vm1780, %v2244, 0.0
    %v2289 = vrot.slane %v2288, 4
    %v2290 = vadd.f32 %v2288, %v2289
    %v2291 = vrot.slane %v2290, 2
    %v2292 = vadd.f32 %v2290, %v2291
    %v2293 = vrot.slane %v2292, 1
    %v2294 = vadd.f32 %v2292, %v2293
    %v2295 = vsel %vm1780, %v2245, 0.0
    %v2296 = vrot.slane %v2295, 4
    %v2297 = vadd.f32 %v2295, %v2296
    %v2298 = vrot.slane %v2297, 2
    %v2299 = vadd.f32 %v2297, %v2298
    %v2300 = vrot.slane %v2299, 1
    %v2301 = vadd.f32 %v2299, %v2300
    %v2303 = vrot.slane %v1825, 1
    %v2304 = vrot.slane %v1825, 2
    %v2305 = vrot.slane %v1825, 3
    %v2306 = vrot.slane %v1825, 4
    %v2307 = vrot.slane %v1825, 5
    %v2308 = vrot.slane %v1825, 6
    %v2309 = vrot.slane %v1825, 7
    %v2318 = vmul.f32 %v2252, %v1825
    %v2319 = vmul.f32 %v2259, %v2303
    %v2320 = vmul.f32 %v2266, %v2304
    %v2321 = vmul.f32 %v2273, %v2305
    %v2322 = vmul.f32 %v2280, %v2306
    %v2323 = vmul.f32 %v2287, %v2307
    %v2324 = vmul.f32 %v2294, %v2308
    %v2325 = vmul.f32 %v2301, %v2309
    %v2334 = vrot.slane %v2319, 7
    %v2335 = vsel %vm2166, %v2334, %v2318
    %v2336 = vrot.slane %v2320, 6
    %v2337 = vsel %vm2168, %v2336, %v2335
    %v2338 = vrot.slane %v2321, 5
    %v2339 = vsel %vm2170, %v2338, %v2337
    %v2340 = vrot.slane %v2322, 4
    %v2341 = vsel %vm2172, %v2340, %v2339
    %v2342 = vrot.slane %v2323, 3
    %v2343 = vsel %vm2174, %v2342, %v2341
    %v2344 = vrot.slane %v2324, 2
    %v2345 = vsel %vm2176, %v2344, %v2343
    %v2346 = vrot.slane %v2325, 1
    %v2347 = vsel %vm2178, %v2346, %v2345
    %v2349 = vsel %vm1780, %v2347, 0.0
    %2350 = vadd.xlane.f32.xlu0 %v2349
    %v2351 = vpop.xlane.xlu0 %2350
    %v2352 = vmul.f32 %v1821, %v1825
    %v2353 = vsel %vm1780, %v2352, 0.0
    %2354 = vadd.xlane.f32.xlu0 %v2353
    %v2355 = vpop.xlane.xlu0 %2354
    %v2356 = vadd.f32 %v2351, %v2355
    %v2357 = vmul.f32 %v1823, %v2356
    %v2358 = vadd.f32 %v1817, %v2357
    %v2359 = vlaneseq
    %v2360 = vshrl.u32 %v2359, 7
    %v2361 = vsub.s32 0, %v2360
    %v2362 = vrot.slane %v1818, %v2361
    %2364 = vbcast.lane.b32.xlu0 %v2362, 256
    %v2365 = vpop.permute.xlu0 %2364
    %v2366 = vlaneseq
    %v2367 = vshrl.u32 %v2366, 7
    %v2368 = vsub.s32 1, %v2367
    %v2369 = vrot.slane %v1818, %v2368
    %2371 = vbcast.lane.b32.xlu0 %v2369, 256
    %v2372 = vpop.permute.xlu0 %2371
    %v2373 = vlaneseq
    %v2374 = vshrl.u32 %v2373, 7
    %v2375 = vsub.s32 2, %v2374
    %v2376 = vrot.slane %v1818, %v2375
    %2378 = vbcast.lane.b32.xlu0 %v2376, 256
    %v2379 = vpop.permute.xlu0 %2378
    %v2380 = vlaneseq
    %v2381 = vshrl.u32 %v2380, 7
    %v2382 = vsub.s32 3, %v2381
    %v2383 = vrot.slane %v1818, %v2382
    %2385 = vbcast.lane.b32.xlu0 %v2383, 256
    %v2386 = vpop.permute.xlu0 %2385
    %v2387 = vlaneseq
    %v2388 = vshrl.u32 %v2387, 7
    %v2389 = vsub.s32 4, %v2388
    %v2390 = vrot.slane %v1818, %v2389
    %2392 = vbcast.lane.b32.xlu0 %v2390, 256
    %v2393 = vpop.permute.xlu0 %2392
    %v2394 = vlaneseq
    %v2395 = vshrl.u32 %v2394, 7
    %v2396 = vsub.s32 5, %v2395
    %v2397 = vrot.slane %v1818, %v2396
    %2399 = vbcast.lane.b32.xlu0 %v2397, 256
    %v2400 = vpop.permute.xlu0 %2399
    %v2401 = vlaneseq
    %v2402 = vshrl.u32 %v2401, 7
    %v2403 = vsub.s32 6, %v2402
    %v2404 = vrot.slane %v1818, %v2403
    %2406 = vbcast.lane.b32.xlu0 %v2404, 256
    %v2407 = vpop.permute.xlu0 %2406
    %v2408 = vlaneseq
    %v2409 = vshrl.u32 %v2408, 7
    %v2410 = vsub.s32 7, %v2409
    %v2411 = vrot.slane %v1818, %v2410
    %2413 = vbcast.lane.b32.xlu0 %v2411, 256
    %v2414 = vpop.permute.xlu0 %2413
    %v2415 = vadd.f32 %v2365, %v1789
    %v2416 = vadd.f32 %v2372, %v1789
    %v2417 = vadd.f32 %v2379, %v1789
    %v2418 = vadd.f32 %v2386, %v1789
    %v2419 = vadd.f32 %v2393, %v1789
    %v2420 = vadd.f32 %v2400, %v1789
    %v2421 = vadd.f32 %v2407, %v1789
    %v2422 = vadd.f32 %v2414, %v1789
    %v2423 = vadd.f32 %v2415, %v1947
    %v2424 = vadd.f32 %v2416, %v1951
    %v2425 = vadd.f32 %v2417, %v1955
    %v2426 = vadd.f32 %v2418, %v1959
    %v2427 = vadd.f32 %v2419, %v1963
    %v2428 = vadd.f32 %v2420, %v1967
    %v2429 = vadd.f32 %v2421, %v1971
    %v2430 = vadd.f32 %v2422, %v1975
    %v2431 = vsel %vm1780, %v2423, -inf
    %v2432 = vrot.slane %v2431, 4
    %v2433 = vmax.f32 %v2431, %v2432
    %v2434 = vrot.slane %v2433, 2
    %v2435 = vmax.f32 %v2433, %v2434
    %v2436 = vrot.slane %v2435, 1
    %v2437 = vmax.f32 %v2435, %v2436
    %v2438 = vsel %vm1780, %v2424, -inf
    %v2439 = vrot.slane %v2438, 4
    %v2440 = vmax.f32 %v2438, %v2439
    %v2441 = vrot.slane %v2440, 2
    %v2442 = vmax.f32 %v2440, %v2441
    %v2443 = vrot.slane %v2442, 1
    %v2444 = vmax.f32 %v2442, %v2443
    %v2445 = vsel %vm1780, %v2425, -inf
    %v2446 = vrot.slane %v2445, 4
    %v2447 = vmax.f32 %v2445, %v2446
    %v2448 = vrot.slane %v2447, 2
    %v2449 = vmax.f32 %v2447, %v2448
    %v2450 = vrot.slane %v2449, 1
    %v2451 = vmax.f32 %v2449, %v2450
    %v2452 = vsel %vm1780, %v2426, -inf
    %v2453 = vrot.slane %v2452, 4
    %v2454 = vmax.f32 %v2452, %v2453
    %v2455 = vrot.slane %v2454, 2
    %v2456 = vmax.f32 %v2454, %v2455
    %v2457 = vrot.slane %v2456, 1
    %v2458 = vmax.f32 %v2456, %v2457
    %v2459 = vsel %vm1780, %v2427, -inf
    %v2460 = vrot.slane %v2459, 4
    %v2461 = vmax.f32 %v2459, %v2460
    %v2462 = vrot.slane %v2461, 2
    %v2463 = vmax.f32 %v2461, %v2462
    %v2464 = vrot.slane %v2463, 1
    %v2465 = vmax.f32 %v2463, %v2464
    %v2466 = vsel %vm1780, %v2428, -inf
    %v2467 = vrot.slane %v2466, 4
    %v2468 = vmax.f32 %v2466, %v2467
    %v2469 = vrot.slane %v2468, 2
    %v2470 = vmax.f32 %v2468, %v2469
    %v2471 = vrot.slane %v2470, 1
    %v2472 = vmax.f32 %v2470, %v2471
    %v2473 = vsel %vm1780, %v2429, -inf
    %v2474 = vrot.slane %v2473, 4
    %v2475 = vmax.f32 %v2473, %v2474
    %v2476 = vrot.slane %v2475, 2
    %v2477 = vmax.f32 %v2475, %v2476
    %v2478 = vrot.slane %v2477, 1
    %v2479 = vmax.f32 %v2477, %v2478
    %v2480 = vsel %vm1780, %v2430, -inf
    %v2481 = vrot.slane %v2480, 4
    %v2482 = vmax.f32 %v2480, %v2481
    %v2483 = vrot.slane %v2482, 2
    %v2484 = vmax.f32 %v2482, %v2483
    %v2485 = vrot.slane %v2484, 1
    %v2486 = vmax.f32 %v2484, %v2485
    %vm2487 = vcmp.ge.f32.partialorder %v2423, %v2437
    %vm2488 = vcmp.ge.f32.partialorder %v2424, %v2444
    %vm2489 = vcmp.ge.f32.partialorder %v2425, %v2451
    %vm2490 = vcmp.ge.f32.partialorder %v2426, %v2458
    %vm2491 = vcmp.ge.f32.partialorder %v2427, %v2465
    %vm2492 = vcmp.ge.f32.partialorder %v2428, %v2472
    %vm2493 = vcmp.ge.f32.partialorder %v2429, %v2479
    %vm2494 = vcmp.ge.f32.partialorder %v2430, %v2486
    %v2495 = vsel %vm2487, %v1793, 8
    %v2496 = vsel %vm2488, %v1793, 8
    %v2497 = vsel %vm2489, %v1793, 8
    %v2498 = vsel %vm2490, %v1793, 8
    %v2499 = vsel %vm2491, %v1793, 8
    %v2500 = vsel %vm2492, %v1793, 8
    %v2501 = vsel %vm2493, %v1793, 8
    %v2502 = vsel %vm2494, %v1793, 8
    %v2503 = vsel %vm1780, %v2495, 2147483647
    %v2504 = vrot.slane %v2503, 4
    %vm2505 = vcmp.lt.s32.totalorder %v2503, %v2504
    %v2506 = vsel %vm2505, %v2503, %v2504
    %v2507 = vrot.slane %v2506, 2
    %vm2508 = vcmp.lt.s32.totalorder %v2506, %v2507
    %v2509 = vsel %vm2508, %v2506, %v2507
    %v2510 = vrot.slane %v2509, 1
    %vm2511 = vcmp.lt.s32.totalorder %v2509, %v2510
    %v2512 = vsel %vm2511, %v2509, %v2510
    %v2513 = vsel %vm1780, %v2496, 2147483647
    %v2514 = vrot.slane %v2513, 4
    %vm2515 = vcmp.lt.s32.totalorder %v2513, %v2514
    %v2516 = vsel %vm2515, %v2513, %v2514
    %v2517 = vrot.slane %v2516, 2
    %vm2518 = vcmp.lt.s32.totalorder %v2516, %v2517
    %v2519 = vsel %vm2518, %v2516, %v2517
    %v2520 = vrot.slane %v2519, 1
    %vm2521 = vcmp.lt.s32.totalorder %v2519, %v2520
    %v2522 = vsel %vm2521, %v2519, %v2520
    %v2523 = vsel %vm1780, %v2497, 2147483647
    %v2524 = vrot.slane %v2523, 4
    %vm2525 = vcmp.lt.s32.totalorder %v2523, %v2524
    %v2526 = vsel %vm2525, %v2523, %v2524
    %v2527 = vrot.slane %v2526, 2
    %vm2528 = vcmp.lt.s32.totalorder %v2526, %v2527
    %v2529 = vsel %vm2528, %v2526, %v2527
    %v2530 = vrot.slane %v2529, 1
    %vm2531 = vcmp.lt.s32.totalorder %v2529, %v2530
    %v2532 = vsel %vm2531, %v2529, %v2530
    %v2533 = vsel %vm1780, %v2498, 2147483647
    %v2534 = vrot.slane %v2533, 4
    %vm2535 = vcmp.lt.s32.totalorder %v2533, %v2534
    %v2536 = vsel %vm2535, %v2533, %v2534
    %v2537 = vrot.slane %v2536, 2
    %vm2538 = vcmp.lt.s32.totalorder %v2536, %v2537
    %v2539 = vsel %vm2538, %v2536, %v2537
    %v2540 = vrot.slane %v2539, 1
    %vm2541 = vcmp.lt.s32.totalorder %v2539, %v2540
    %v2542 = vsel %vm2541, %v2539, %v2540
    %v2543 = vsel %vm1780, %v2499, 2147483647
    %v2544 = vrot.slane %v2543, 4
    %vm2545 = vcmp.lt.s32.totalorder %v2543, %v2544
    %v2546 = vsel %vm2545, %v2543, %v2544
    %v2547 = vrot.slane %v2546, 2
    %vm2548 = vcmp.lt.s32.totalorder %v2546, %v2547
    %v2549 = vsel %vm2548, %v2546, %v2547
    %v2550 = vrot.slane %v2549, 1
    %vm2551 = vcmp.lt.s32.totalorder %v2549, %v2550
    %v2552 = vsel %vm2551, %v2549, %v2550
    %v2553 = vsel %vm1780, %v2500, 2147483647
    %v2554 = vrot.slane %v2553, 4
    %vm2555 = vcmp.lt.s32.totalorder %v2553, %v2554
    %v2556 = vsel %vm2555, %v2553, %v2554
    %v2557 = vrot.slane %v2556, 2
    %vm2558 = vcmp.lt.s32.totalorder %v2556, %v2557
    %v2559 = vsel %vm2558, %v2556, %v2557
    %v2560 = vrot.slane %v2559, 1
    %vm2561 = vcmp.lt.s32.totalorder %v2559, %v2560
    %v2562 = vsel %vm2561, %v2559, %v2560
    %v2563 = vsel %vm1780, %v2501, 2147483647
    %v2564 = vrot.slane %v2563, 4
    %vm2565 = vcmp.lt.s32.totalorder %v2563, %v2564
    %v2566 = vsel %vm2565, %v2563, %v2564
    %v2567 = vrot.slane %v2566, 2
    %vm2568 = vcmp.lt.s32.totalorder %v2566, %v2567
    %v2569 = vsel %vm2568, %v2566, %v2567
    %v2570 = vrot.slane %v2569, 1
    %vm2571 = vcmp.lt.s32.totalorder %v2569, %v2570
    %v2572 = vsel %vm2571, %v2569, %v2570
    %v2573 = vsel %vm1780, %v2502, 2147483647
    %v2574 = vrot.slane %v2573, 4
    %vm2575 = vcmp.lt.s32.totalorder %v2573, %v2574
    %v2576 = vsel %vm2575, %v2573, %v2574
    %v2577 = vrot.slane %v2576, 2
    %vm2578 = vcmp.lt.s32.totalorder %v2576, %v2577
    %v2579 = vsel %vm2578, %v2576, %v2577
    %v2580 = vrot.slane %v2579, 1
    %vm2581 = vcmp.lt.s32.totalorder %v2579, %v2580
    %v2582 = vsel %vm2581, %v2579, %v2580
    %v2583 = vsel %vm2166, %v2522, %v2512
    %v2584 = vsel %vm2168, %v2532, %v2583
    %v2585 = vsel %vm2170, %v2542, %v2584
    %v2586 = vsel %vm2172, %v2552, %v2585
    %v2587 = vsel %vm2174, %v2562, %v2586
    %v2588 = vsel %vm2176, %v2572, %v2587
    %v2589 = vsel %vm2178, %v2582, %v2588
    %v2590 = vsel %vm2157, %v2589, %v1795
    %s2591 = scalar_lea.vmem %s15, %s1819
    %2592 = vst.msk [vmem:[%s2591] sm:$0xff] %vm1780, %v2590
    %v2601 = vsel %vm2166, %v2444, %v2437
    %v2602 = vsel %vm2168, %v2451, %v2601
    %v2603 = vsel %vm2170, %v2458, %v2602
    %v2604 = vsel %vm2172, %v2465, %v2603
    %v2605 = vsel %vm2174, %v2472, %v2604
    %v2606 = vsel %vm2176, %v2479, %v2605
    %v2607 = vsel %vm2178, %v2486, %v2606
    %v2609 = vsel %vm2157, %v2607, %v1818
  $region69: #{lstm_crf_forward.1} parent=0 // loop_footer
    %s1815 = sadd.s32 1, %s1811
  $region70: #{lstm_crf_forward.1} parent=0 // loop_footer_branch
    %1810 = sbr.rel target = $region66
  $region71: #{lstm_crf_forward.1} parent=0 // loop_exit
    _
  %v2611 = vlaneseq
  %v2612 = vshrl.u32 %v2611, 7
  %v2613 = vsub.s32 0, %v2612
  %v2614 = vrot.slane %v1791, %v2613
  %v2616 = vadd.f32 %v1816, %v2614
  %v2617 = vsel %vm1780, %v2616, -inf
  %2618 = vmax.xlane.f32.xlu0 %v2617
  %v2619 = vpop.xlane.xlu0 %2618
  %v2620 = vsub.f32 %v2616, %v2619
  %v2621 = vmul.f32 %v2620, 1.442695
  %v2622 = vpow.pop %v2621
  %v2623 = vsel %vm1780, %v2622, 0.0
  %2624 = vadd.xlane.f32.xlu0 %v2623
  %v2625 = vpop.xlane.xlu0 %2624
  %v2626 = vlog2.pop %v2625
  %v2627 = vmul.f32 %v2626, 0.6931472
  %v2628 = vadd.f32 %v2619, %v2627
  %v2629 = vld [vmem:[%s2] sm:$0xff]
  %v2630 = vmul.f32 %v2614, %v2629
  %v2631 = vsel %vm1780, %v2630, 0.0
  %2632 = vadd.xlane.f32.xlu0 %v2631
  %v2633 = vpop.xlane.xlu0 %2632
  %v2634 = vadd.f32 %v1817, %v2633
  %v2635 = vsub.f32 %v2628, %v2634
  %vm2636 = vcmask 7168
  %2637 = vst.msk [vmem:[%s17] sm:$0xff] %vm2636, %v2635
  %v2638 = vadd.f32 %v1818, %v2614
  %2639 = vst.msk [vmem:[%s16] sm:$0xff] %vm1780, %v2638
  // Predicated region
  $region72: #{lstm_crf_forward.1} parent=0 // pred_check
    _
  $region73: #{lstm_crf_forward.1} parent=0 // pred_check_branch
    %2641 = sbr.rel (0) target = $region75
  $region74: #{lstm_crf_forward.1} parent=0 // pred_region
    _
  $region75: #{lstm_crf_forward.1} parent=0 // pred_fallthru
    _
  // Predicated region
  $region76: #{lstm_crf_forward.1} parent=0 // pred_check
    _
  $region77: #{lstm_crf_forward.1} parent=0 // pred_check_branch
    %2643 = sbr.rel (0) target = $region79
  $region78: #{lstm_crf_forward.1} parent=0 // pred_region
    _
  $region79: #{lstm_crf_forward.1} parent=0 // pred_fallthru
    _
  // Predicated region
  $region80: #{lstm_crf_forward.1} parent=0 // pred_check
    _
  $region81: #{lstm_crf_forward.1} parent=0 // pred_check_branch
    %2645 = sbr.rel (0) target = $region83
  $region82: #{lstm_crf_forward.1} parent=0 // pred_region
    _
  $region83: #{lstm_crf_forward.1} parent=0 // pred_fallthru
    _
  // Predicated region
  $region84: #{lstm_crf_forward.1} parent=0 // pred_check
    _
  $region85: #{lstm_crf_forward.1} parent=0 // pred_check_branch
    %2647 = sbr.rel (0) target = $region87
  $region86: #{lstm_crf_forward.1} parent=0 // pred_region
    _
  $region87: #{lstm_crf_forward.1} parent=0 // pred_fallthru
    _
  // Predicated region
  $region88: #{lstm_crf_forward.1} parent=0 // pred_check
    _
  $region89: #{lstm_crf_forward.1} parent=0 // pred_check_branch
    %2649 = sbr.rel (0) target = $region91
  $region90: #{lstm_crf_forward.1} parent=0 // pred_region
    _
  $region91: #{lstm_crf_forward.1} parent=0 // pred_fallthru
    _
  // Predicated region
  $region92: #{lstm_crf_forward.1} parent=0 // pred_check
    _
  $region93: #{lstm_crf_forward.1} parent=0 // pred_check_branch
    %2651 = sbr.rel (0) target = $region95
  $region94: #{lstm_crf_forward.1} parent=0 // pred_region
    _
  $region95: #{lstm_crf_forward.1} parent=0 // pred_fallthru
    _
  // Predicated region
  $region96: #{lstm_crf_forward.1} parent=0 // pred_check
    _
  $region97: #{lstm_crf_forward.1} parent=0 // pred_check_branch
    %2653 = sbr.rel (0) target = $region99
  $region98: #{lstm_crf_forward.1} parent=0 // pred_region
    _
  $region99: #{lstm_crf_forward.1} parent=0 // pred_fallthru
    _
  // Predicated region
  $region100: #{lstm_crf_forward.1} parent=0 // pred_check
    _
  $region101: #{lstm_crf_forward.1} parent=0 // pred_check_branch
    %2655 = sbr.rel (0) target = $region103
  $region102: #{lstm_crf_forward.1} parent=0 // pred_region
    _
  $region103: #{lstm_crf_forward.1} parent=0 // pred_fallthru
    _

</llo_original>
